<compile_context>
chip_gen: v5e
topology: v5e:2x2
jax: 0.10.0
libtpu: 0.0.40
codegen_flags: <defaults>
</compile_context>

<pallas_src>
import jax
import jax.numpy as jnp
from jax.experimental import pallas as pl
from jax.experimental.pallas import tpu as pltpu


_FMAP_WIDTHS = (8, 16, 32, 64)     # 2n for n = 4, 8, 16, 32
_C_DIM = 256                        # conditioning channels
_XPAD = 64                          # uniform padded width of the x path
_IN_WIDTH = 384                     # packed input slab: c(256)|x(64)|m|nf|nl|pad
_PACK_WIDTH = 128                   # packed output slab: fmaps(120)|post(1)|pad


# ------------------------------ Pallas kernel -------------------------------

def fused_msd_kernel(in_ref, wss_ref, wcs1_ref, wcs2_ref, bias_ref, post_ref,
                     out_ref):
    """4 Dblocks + conv_post over all B*T rows in one shot."""
    M = in_ref.shape[0]
    cdt = wss_ref.dtype                      # matmul operand dtype (bf16/f32)

    c = in_ref[:, 0:_C_DIM]                  # (M, 256) f32
    x = in_ref[:, _C_DIM:_C_DIM + _XPAD]     # (M, 64)  f32 (true width 4)
    m = in_ref[:, 320:321]                   # (M, 1)   mask
    not_first = in_ref[:, 321:322]           # (M, 1)   0 at t==0 within a batch
    not_last = in_ref[:, 322:323]            # (M, 1)   0 at t==T-1

    def shift_prev(h):                       # h[t-1], zero past segment start
        return pltpu.roll(h, 1, axis=0) * not_first

    def shift_next(h):                       # h[t+1], zero past segment end
        return pltpu.roll(h, M - 1, axis=0) * not_last

    def leaky(h):                            # LeakyReLU(0.1): vmul + vmax
        return jnp.maximum(h, 0.1 * h)

    def conv3_folded(h, w, b):
        # y[t] = [h[t-1] | h[t] | h[t+1]] @ W_folded + b   (SAME, k=3)
        hcat = jnp.concatenate([shift_prev(h), h, shift_next(h)], axis=-1)
        return jnp.dot(hcat.astype(cdt), w,
                       preferred_element_type=jnp.float32) + b

    fmaps = []
    for i in range(4):
        bb = bias_ref[i]                     # (4, 256) f32
        b_ss1 = bb[0:1, :_XPAD]
        b_cs1 = bb[1:2, :_XPAD]
        b_ss2 = bb[2:3, :_XPAD]
        b_cs2 = bb[3:4, :]

        # x path: folded K (input is only 64 lanes wide, concat is cheap)
        xx = conv3_folded(x, wss_ref[i, 0], b_ss1)                    # (M, 64)

        # c path cs1: Cin=256 -> three K=256 dots, roll the narrow outputs
        cb = c.astype(cdt)
        z0 = jnp.dot(cb, wcs1_ref[i, 0], preferred_element_type=jnp.float32)
        z1 = jnp.dot(cb, wcs1_ref[i, 1], preferred_element_type=jnp.float32)
        z2 = jnp.dot(cb, wcs1_ref[i, 2], preferred_element_type=jnp.float32)
        cc = shift_prev(z0) + z1 + shift_next(z2) + b_cs1             # (M, 64)

        xx = conv3_folded(leaky(xx + cc), wss_ref[i, 1], b_ss2) + xx  # (M, 64)
        c = conv3_folded(leaky(cc), wcs2_ref[i], b_cs2) + c           # (M, 256)

        x = xx * m                     # fmap_i (padded columns stay zero)
        c = c * m                      # stays on-chip for the next block
        fmaps.append(x)

    # conv_post: 1x1 conv to a single channel == per-row dot (VPU + XLU).
    wp = post_ref[0:1, :]              # (1, 64)
    bp = post_ref[1:2, 0:1]            # (1, 1)
    post = jnp.sum(x * wp, axis=-1, keepdims=True) + bp

    parts = [f[:, :w] for f, w in zip(fmaps, _FMAP_WIDTHS)]
    pad = jnp.zeros((M, _PACK_WIDTH - sum(_FMAP_WIDTHS) - 1), jnp.float32)
    out_ref[...] = jnp.concatenate(parts + [post, pad], axis=-1).astype(
        out_ref.dtype)


# --------------------------- parameter slab packing --------------------------

def pack_params(params, compute_dtype=jnp.bfloat16):
    """Fold / pad / stack all conv weights into a handful of dense slabs."""

    def fold_pad(w, cin_pad, cout_pad):
        # (3, Cin, Cout) -> zero-pad channels -> (3*cin_pad, cout_pad)
        k, cin, cout = w.shape
        wp = jnp.zeros((k, cin_pad, cout_pad), jnp.float32)
        wp = wp.at[:, :cin, :cout].set(w)
        return wp.reshape(k * cin_pad, cout_pad)

    wss, wcs1, wcs2, bias = [], [], [], []
    for p in params["blocks"]:
        two_n = p["w_ss1"].shape[-1]
        wss.append(jnp.stack([fold_pad(p["w_ss1"], _XPAD, _XPAD),
                              fold_pad(p["w_ss2"], _XPAD, _XPAD)]))
        w1 = jnp.zeros((3, _C_DIM, _XPAD), jnp.float32)
        wcs1.append(w1.at[:, :, :two_n].set(p["w_cs1"]))       # keep tap axis
        wcs2.append(fold_pad(p["w_cs2"], _XPAD, _C_DIM))
        b = jnp.zeros((4, _C_DIM), jnp.float32)
        b = b.at[0, :two_n].set(p["b_ss1"][0])
        b = b.at[1, :two_n].set(p["b_cs1"][0])
        b = b.at[2, :two_n].set(p["b_ss2"][0])
        b = b.at[3, :].set(p["b_cs2"][0])
        bias.append(b)

    post = jnp.zeros((2, _XPAD), jnp.float32)
    post = post.at[0, :].set(params["w_post"][:, 0])
    post = post.at[1, 0].set(params["b_post"][0, 0])

    return dict(
        wss=jnp.stack(wss).astype(compute_dtype),     # (4, 2, 192, 64)
        wcs1=jnp.stack(wcs1).astype(compute_dtype),   # (4, 3, 256, 64)
        wcs2=jnp.stack(wcs2).astype(compute_dtype),   # (4, 192, 256)
        bias=jnp.stack(bias),                         # (4, 4, 256) f32
        post=post,                                    # (2, 64)     f32
    )


# ------------------------------- JAX wrapper ---------------------------------

def multi_spectro_discriminator(x, c, mask, packed_params):
    """x: (B,T,4), c: (B,T,256), mask: (B,T,1) -> ((B,T,1), [4 fmaps])."""
    B, T, n0 = x.shape
    M = B * T

    # Lane-dense packed input slab: c | x(pad 64) | mask | not_first | not_last
    cf = c.reshape(M, _C_DIM)
    xf = jnp.pad(x.reshape(M, n0), ((0, 0), (0, _XPAD - n0)))
    mf = mask.reshape(M, 1)
    tpos = jnp.arange(T, dtype=jnp.int32)
    nf = jnp.tile((tpos != 0).astype(jnp.float32), B).reshape(M, 1)
    nl = jnp.tile((tpos != T - 1).astype(jnp.float32), B).reshape(M, 1)
    pad = jnp.zeros((M, _IN_WIDTH - _C_DIM - _XPAD - 3), jnp.float32)
    in_slab = jnp.concatenate([cf, xf, mf, nf, nl, pad], axis=-1)

    packed = pl.pallas_call(
        fused_msd_kernel,
        out_shape=jax.ShapeDtypeStruct((M, _PACK_WIDTH), jnp.float32),
    )(in_slab, packed_params["wss"], packed_params["wcs1"],
      packed_params["wcs2"], packed_params["bias"], packed_params["post"])

    packed = packed.reshape(B, T, _PACK_WIDTH)
    fmap, off = [], 0
    for w in _FMAP_WIDTHS:
        fmap.append(packed[..., off:off + w])
        off += w
    out = packed[..., off:off + 1]
    return out, fmap


# --------------------------- parameters (synthetic) ---------------------------

def init_params(key):
    # weight_norm at init reproduces the underlying weight, so a plain
    # deterministic init is faithful to the module's forward semantics.
    params = {"blocks": []}

    def w_init(k, shape, fan_in):
        return (jax.random.normal(k, shape, jnp.float32)
                / jnp.sqrt(float(fan_in))).astype(jnp.float32)

    for i in range(4):
        n = 4 * 2 ** i
        ks = jax.random.split(jax.random.fold_in(key, i), 8)
        params["blocks"].append(dict(
            w_ss1=w_init(ks[0], (3, n, 2 * n), 3 * n),
            b_ss1=0.01 * jax.random.normal(ks[1], (1, 2 * n), jnp.float32),
            w_ss2=w_init(ks[2], (3, 2 * n, 2 * n), 3 * 2 * n),
            b_ss2=0.01 * jax.random.normal(ks[3], (1, 2 * n), jnp.float32),
            w_cs1=w_init(ks[4], (3, _C_DIM, 2 * n), 3 * _C_DIM),
            b_cs1=0.01 * jax.random.normal(ks[5], (1, 2 * n), jnp.float32),
            w_cs2=w_init(ks[6], (3, 2 * n, _C_DIM), 3 * 2 * n),
            b_cs2=0.01 * jax.random.normal(ks[7], (1, _C_DIM), jnp.float32),
        ))
    k1, k2 = jax.random.split(jax.random.fold_in(key, 100))
    params["w_post"] = w_init(k1, (64, 1), 64)   # conv_post: Conv1d(64, 1, k=1)
    params["b_post"] = 0.01 * jax.random.normal(k2, (1, 1), jnp.float32)
    return params


# ------------------------------ pure-JAX reference ----------------------------

def _leaky(h):
    return jnp.where(h > 0, h, 0.1 * h)


def _conv1d_ref(x, w, b):
    y = jax.lax.conv_general_dilated(
        x, w, window_strides=(1,), padding=[(1, 1)],
        dimension_numbers=("NWC", "WIO", "NWC"))
    return y + b


def model_ref(x, c, mask, params):
    fmap = []
    for p in params["blocks"]:
        xx = _conv1d_ref(x, p["w_ss1"], p["b_ss1"])
        cc = _conv1d_ref(c, p["w_cs1"], p["b_cs1"])
        xx = _conv1d_ref(_leaky(xx + cc), p["w_ss2"], p["b_ss2"]) + xx
        cc = _conv1d_ref(_leaky(cc), p["w_cs2"], p["b_cs2"]) + c
        x, c = xx * mask, cc * mask
        fmap.append(x)
    out = jnp.einsum("btc,co->bto", x, params["w_post"]) + params["b_post"]
    return out, fmap


# ----------------------------------- main -------------------------------------

if __name__ == "__main__":
    key = jax.random.PRNGKey(0)
    B, T = 2, 16

    params = init_params(jax.random.fold_in(key, 1))
    kx, kc = jax.random.split(jax.random.fold_in(key, 2))
    x = jax.random.normal(kx, (B, T, 4), jnp.float32)       # PyTorch (B, 4, T)
    c = jax.random.normal(kc, (B, T, 256), jnp.float32)     # PyTorch (B, 256, T)
    mask = jnp.broadcast_to(
        (jnp.arange(T) < 12).astype(jnp.float32)[None, :, None], (B, T, 1))

    out_ref, fmap_ref = model_ref(x, c, mask, params)
    fwd = jax.jit(multi_spectro_discriminator)

    # 1) f32-operand run: tight structural check against the pure-JAX reference.
    pp_f32 = pack_params(params, compute_dtype=jnp.float32)
    out32, fmap32 = fwd(x, c, mask, pp_f32)
    out32 = jax.block_until_ready(out32)
    assert jnp.allclose(out32, out_ref, atol=2e-4, rtol=2e-4), "f32 conv_post mismatch"
    for a, r in zip(fmap32, fmap_ref):
        assert jnp.allclose(a, r, atol=2e-4, rtol=2e-4), "f32 fmap mismatch"

    # 2) bf16-operand run (production path): loose tolerance for operand rounding.
    pp_bf16 = pack_params(params, compute_dtype=jnp.bfloat16)
    out_bf, fmap_bf = fwd(x, c, mask, pp_bf16)
    out_bf = jax.block_until_ready(out_bf)
    assert jnp.allclose(out_bf, out_ref, atol=8e-2, rtol=8e-2), "bf16 conv_post mismatch"
    for a, r in zip(fmap_bf, fmap_ref):
        assert jnp.allclose(a, r, atol=8e-2, rtol=8e-2), "bf16 fmap mismatch"

    print("KERNEL_OK")
</pallas_src>

<mosaic_0001>
module attributes {stable_mosaic.version = 11 : i64} {
  func.func @fused_msd_kernel(%arg0: memref<32x384xf32, #tpu.memory_space<vmem>>, %arg1: memref<4x2x192x64xf32, #tpu.memory_space<vmem>>, %arg2: memref<4x3x256x64xf32, #tpu.memory_space<vmem>>, %arg3: memref<4x192x256xf32, #tpu.memory_space<vmem>>, %arg4: memref<4x4x256xf32, #tpu.memory_space<vmem>>, %arg5: memref<2x64xf32, #tpu.memory_space<vmem>>, %arg6: memref<32x128xf32, #tpu.memory_space<vmem>>) attributes {dimension_semantics = [], scalar_prefetch = 0 : i64, scratch_operands = 0 : i64, tpu.core_type = #tpu.core_type<tc>} {
    %c0 = arith.constant 0 : index
    %c0_0 = arith.constant 0 : index
    %0 = vector.load %arg0[%c0, %c0_0] : memref<32x384xf32, #tpu.memory_space<vmem>>, vector<32x256xf32>
    %c0_1 = arith.constant 0 : index
    %c256 = arith.constant 256 : index
    %1 = vector.load %arg0[%c0_1, %c256] : memref<32x384xf32, #tpu.memory_space<vmem>>, vector<32x64xf32>
    %c0_2 = arith.constant 0 : index
    %c320 = arith.constant 320 : index
    %2 = vector.load %arg0[%c0_2, %c320] : memref<32x384xf32, #tpu.memory_space<vmem>>, vector<32x1xf32>
    %c0_3 = arith.constant 0 : index
    %c321 = arith.constant 321 : index
    %3 = vector.load %arg0[%c0_3, %c321] : memref<32x384xf32, #tpu.memory_space<vmem>>, vector<32x1xf32>
    %c0_4 = arith.constant 0 : index
    %c322 = arith.constant 322 : index
    %4 = vector.load %arg0[%c0_4, %c322] : memref<32x384xf32, #tpu.memory_space<vmem>>, vector<32x1xf32>
    %c0_5 = arith.constant 0 : index
    %c0_6 = arith.constant 0 : index
    %c0_7 = arith.constant 0 : index
    %5 = vector.load %arg4[%c0_5, %c0_6, %c0_7] : memref<4x4x256xf32, #tpu.memory_space<vmem>>, vector<1x4x256xf32>
    %6 = vector.shape_cast %5 : vector<1x4x256xf32> to vector<4x256xf32>
    %7 = vector.extract_strided_slice %6 {offsets = [0, 0], sizes = [1, 64], strides = [1, 1]} : vector<4x256xf32> to vector<1x64xf32>
    %8 = vector.extract_strided_slice %6 {offsets = [1, 0], sizes = [1, 64], strides = [1, 1]} : vector<4x256xf32> to vector<1x64xf32>
    %9 = vector.extract_strided_slice %6 {offsets = [2, 0], sizes = [1, 64], strides = [1, 1]} : vector<4x256xf32> to vector<1x64xf32>
    %10 = vector.extract_strided_slice %6 {offsets = [3, 0], sizes = [1, 256], strides = [1, 1]} : vector<4x256xf32> to vector<1x256xf32>
    %c0_8 = arith.constant 0 : index
    %c0_9 = arith.constant 0 : index
    %c0_10 = arith.constant 0 : index
    %c0_11 = arith.constant 0 : index
    %11 = vector.load %arg1[%c0_8, %c0_9, %c0_10, %c0_11] : memref<4x2x192x64xf32, #tpu.memory_space<vmem>>, vector<1x1x192x64xf32>
    %12 = vector.shape_cast %11 : vector<1x1x192x64xf32> to vector<192x64xf32>
    %c1_i32 = arith.constant 1 : i32
    %13 = tpu.dynamic_rotate %1 by %c1_i32 dim 0 : vector<32x64xf32>, i32 -> vector<32x64xf32>
    %14 = vector.broadcast %3 : vector<32x1xf32> to vector<32x64xf32>
    %15 = arith.mulf %13, %14 : vector<32x64xf32>
    %c31_i32 = arith.constant 31 : i32
    %16 = tpu.dynamic_rotate %1 by %c31_i32 dim 0 : vector<32x64xf32>, i32 -> vector<32x64xf32>
    %17 = vector.broadcast %4 : vector<32x1xf32> to vector<32x64xf32>
    %18 = arith.mulf %16, %17 : vector<32x64xf32>
    %19 = tpu.concatenate %15, %1, %18 in 1 : vector<32x64xf32>, vector<32x64xf32>, vector<32x64xf32> -> vector<32x192xf32>
    %cst = arith.constant dense<0.000000e+00> : vector<32x64xf32>
    %20 = tpu.matmul %19, %12, %cst {dimension_numbers = #tpu.dot_dimension_numbers<[1], [0], [0], [1], [0, 0, 1, 1], [], []>} : vector<32x192xf32>, vector<192x64xf32>, vector<32x64xf32> -> vector<32x64xf32>
    %21 = vector.broadcast %7 : vector<1x64xf32> to vector<32x64xf32>
    %22 = arith.addf %20, %21 : vector<32x64xf32>
    %c0_12 = arith.constant 0 : index
    %c0_13 = arith.constant 0 : index
    %c0_14 = arith.constant 0 : index
    %c0_15 = arith.constant 0 : index
    %23 = vector.load %arg2[%c0_12, %c0_13, %c0_14, %c0_15] : memref<4x3x256x64xf32, #tpu.memory_space<vmem>>, vector<1x1x256x64xf32>
    %24 = vector.shape_cast %23 : vector<1x1x256x64xf32> to vector<256x64xf32>
    %cst_16 = arith.constant dense<0.000000e+00> : vector<32x64xf32>
    %25 = tpu.matmul %0, %24, %cst_16 {dimension_numbers = #tpu.dot_dimension_numbers<[1], [0], [0], [1], [0, 0, 1, 1], [], []>} : vector<32x256xf32>, vector<256x64xf32>, vector<32x64xf32> -> vector<32x64xf32>
    %c0_17 = arith.constant 0 : index
    %c1 = arith.constant 1 : index
    %c0_18 = arith.constant 0 : index
    %c0_19 = arith.constant 0 : index
    %26 = vector.load %arg2[%c0_17, %c1, %c0_18, %c0_19] : memref<4x3x256x64xf32, #tpu.memory_space<vmem>>, vector<1x1x256x64xf32>
    %27 = vector.shape_cast %26 : vector<1x1x256x64xf32> to vector<256x64xf32>
    %cst_20 = arith.constant dense<0.000000e+00> : vector<32x64xf32>
    %28 = tpu.matmul %0, %27, %cst_20 {dimension_numbers = #tpu.dot_dimension_numbers<[1], [0], [0], [1], [0, 0, 1, 1], [], []>} : vector<32x256xf32>, vector<256x64xf32>, vector<32x64xf32> -> vector<32x64xf32>
    %c0_21 = arith.constant 0 : index
    %c2 = arith.constant 2 : index
    %c0_22 = arith.constant 0 : index
    %c0_23 = arith.constant 0 : index
    %29 = vector.load %arg2[%c0_21, %c2, %c0_22, %c0_23] : memref<4x3x256x64xf32, #tpu.memory_space<vmem>>, vector<1x1x256x64xf32>
    %30 = vector.shape_cast %29 : vector<1x1x256x64xf32> to vector<256x64xf32>
    %cst_24 = arith.constant dense<0.000000e+00> : vector<32x64xf32>
    %31 = tpu.matmul %0, %30, %cst_24 {dimension_numbers = #tpu.dot_dimension_numbers<[1], [0], [0], [1], [0, 0, 1, 1], [], []>} : vector<32x256xf32>, vector<256x64xf32>, vector<32x64xf32> -> vector<32x64xf32>
    %c1_i32_25 = arith.constant 1 : i32
    %32 = tpu.dynamic_rotate %25 by %c1_i32_25 dim 0 : vector<32x64xf32>, i32 -> vector<32x64xf32>
    %33 = vector.broadcast %3 : vector<32x1xf32> to vector<32x64xf32>
    %34 = arith.mulf %32, %33 : vector<32x64xf32>
    %35 = arith.addf %34, %28 : vector<32x64xf32>
    %c31_i32_26 = arith.constant 31 : i32
    %36 = tpu.dynamic_rotate %31 by %c31_i32_26 dim 0 : vector<32x64xf32>, i32 -> vector<32x64xf32>
    %37 = vector.broadcast %4 : vector<32x1xf32> to vector<32x64xf32>
    %38 = arith.mulf %36, %37 : vector<32x64xf32>
    %39 = arith.addf %35, %38 : vector<32x64xf32>
    %40 = vector.broadcast %8 : vector<1x64xf32> to vector<32x64xf32>
    %41 = arith.addf %39, %40 : vector<32x64xf32>
    %42 = arith.addf %22, %41 : vector<32x64xf32>
    %cst_27 = arith.constant 1.000000e-01 : f32
    %43 = vector.broadcast %cst_27 : f32 to vector<32x64xf32>
    %44 = arith.mulf %43, %42 : vector<32x64xf32>
    %45 = arith.maximumf %42, %44 : vector<32x64xf32>
    %c0_28 = arith.constant 0 : index
    %c1_29 = arith.constant 1 : index
    %c0_30 = arith.constant 0 : index
    %c0_31 = arith.constant 0 : index
    %46 = vector.load %arg1[%c0_28, %c1_29, %c0_30, %c0_31] : memref<4x2x192x64xf32, #tpu.memory_space<vmem>>, vector<1x1x192x64xf32>
    %47 = vector.shape_cast %46 : vector<1x1x192x64xf32> to vector<192x64xf32>
    %c1_i32_32 = arith.constant 1 : i32
    %48 = tpu.dynamic_rotate %45 by %c1_i32_32 dim 0 : vector<32x64xf32>, i32 -> vector<32x64xf32>
    %49 = vector.broadcast %3 : vector<32x1xf32> to vector<32x64xf32>
    %50 = arith.mulf %48, %49 : vector<32x64xf32>
    %c31_i32_33 = arith.constant 31 : i32
    %51 = tpu.dynamic_rotate %45 by %c31_i32_33 dim 0 : vector<32x64xf32>, i32 -> vector<32x64xf32>
    %52 = vector.broadcast %4 : vector<32x1xf32> to vector<32x64xf32>
    %53 = arith.mulf %51, %52 : vector<32x64xf32>
    %54 = tpu.concatenate %50, %45, %53 in 1 : vector<32x64xf32>, vector<32x64xf32>, vector<32x64xf32> -> vector<32x192xf32>
    %cst_34 = arith.constant dense<0.000000e+00> : vector<32x64xf32>
    %55 = tpu.matmul %54, %47, %cst_34 {dimension_numbers = #tpu.dot_dimension_numbers<[1], [0], [0], [1], [0, 0, 1, 1], [], []>} : vector<32x192xf32>, vector<192x64xf32>, vector<32x64xf32> -> vector<32x64xf32>
    %56 = vector.broadcast %9 : vector<1x64xf32> to vector<32x64xf32>
    %57 = arith.addf %55, %56 : vector<32x64xf32>
    %58 = arith.addf %57, %22 : vector<32x64xf32>
    %cst_35 = arith.constant 1.000000e-01 : f32
    %59 = vector.broadcast %cst_35 : f32 to vector<32x64xf32>
    %60 = arith.mulf %59, %41 : vector<32x64xf32>
    %61 = arith.maximumf %41, %60 : vector<32x64xf32>
    %c0_36 = arith.constant 0 : index
    %c0_37 = arith.constant 0 : index
    %c0_38 = arith.constant 0 : index
    %62 = vector.load %arg3[%c0_36, %c0_37, %c0_38] : memref<4x192x256xf32, #tpu.memory_space<vmem>>, vector<1x192x256xf32>
    %63 = vector.shape_cast %62 : vector<1x192x256xf32> to vector<192x256xf32>
    %c1_i32_39 = arith.constant 1 : i32
    %64 = tpu.dynamic_rotate %61 by %c1_i32_39 dim 0 : vector<32x64xf32>, i32 -> vector<32x64xf32>
    %65 = vector.broadcast %3 : vector<32x1xf32> to vector<32x64xf32>
    %66 = arith.mulf %64, %65 : vector<32x64xf32>
    %c31_i32_40 = arith.constant 31 : i32
    %67 = tpu.dynamic_rotate %61 by %c31_i32_40 dim 0 : vector<32x64xf32>, i32 -> vector<32x64xf32>
    %68 = vector.broadcast %4 : vector<32x1xf32> to vector<32x64xf32>
    %69 = arith.mulf %67, %68 : vector<32x64xf32>
    %70 = tpu.concatenate %66, %61, %69 in 1 : vector<32x64xf32>, vector<32x64xf32>, vector<32x64xf32> -> vector<32x192xf32>
    %cst_41 = arith.constant dense<0.000000e+00> : vector<32x256xf32>
    %71 = tpu.matmul %70, %63, %cst_41 {dimension_numbers = #tpu.dot_dimension_numbers<[1], [0], [0], [1], [0, 0, 1, 1], [], []>} : vector<32x192xf32>, vector<192x256xf32>, vector<32x256xf32> -> vector<32x256xf32>
    %72 = vector.broadcast %10 : vector<1x256xf32> to vector<32x256xf32>
    %73 = arith.addf %71, %72 : vector<32x256xf32>
    %74 = arith.addf %73, %0 : vector<32x256xf32>
    %75 = vector.broadcast %2 : vector<32x1xf32> to vector<32x64xf32>
    %76 = arith.mulf %58, %75 : vector<32x64xf32>
    %77 = vector.broadcast %2 : vector<32x1xf32> to vector<32x256xf32>
    %78 = arith.mulf %74, %77 : vector<32x256xf32>
    %c1_42 = arith.constant 1 : index
    %c0_43 = arith.constant 0 : index
    %c0_44 = arith.constant 0 : index
    %79 = vector.load %arg4[%c1_42, %c0_43, %c0_44] : memref<4x4x256xf32, #tpu.memory_space<vmem>>, vector<1x4x256xf32>
    %80 = vector.shape_cast %79 : vector<1x4x256xf32> to vector<4x256xf32>
    %81 = vector.extract_strided_slice %80 {offsets = [0, 0], sizes = [1, 64], strides = [1, 1]} : vector<4x256xf32> to vector<1x64xf32>
    %82 = vector.extract_strided_slice %80 {offsets = [1, 0], sizes = [1, 64], strides = [1, 1]} : vector<4x256xf32> to vector<1x64xf32>
    %83 = vector.extract_strided_slice %80 {offsets = [2, 0], sizes = [1, 64], strides = [1, 1]} : vector<4x256xf32> to vector<1x64xf32>
    %84 = vector.extract_strided_slice %80 {offsets = [3, 0], sizes = [1, 256], strides = [1, 1]} : vector<4x256xf32> to vector<1x256xf32>
    %c1_45 = arith.constant 1 : index
    %c0_46 = arith.constant 0 : index
    %c0_47 = arith.constant 0 : index
    %c0_48 = arith.constant 0 : index
    %85 = vector.load %arg1[%c1_45, %c0_46, %c0_47, %c0_48] : memref<4x2x192x64xf32, #tpu.memory_space<vmem>>, vector<1x1x192x64xf32>
    %86 = vector.shape_cast %85 : vector<1x1x192x64xf32> to vector<192x64xf32>
    %c1_i32_49 = arith.constant 1 : i32
    %87 = tpu.dynamic_rotate %76 by %c1_i32_49 dim 0 : vector<32x64xf32>, i32 -> vector<32x64xf32>
    %88 = vector.broadcast %3 : vector<32x1xf32> to vector<32x64xf32>
    %89 = arith.mulf %87, %88 : vector<32x64xf32>
    %c31_i32_50 = arith.constant 31 : i32
    %90 = tpu.dynamic_rotate %76 by %c31_i32_50 dim 0 : vector<32x64xf32>, i32 -> vector<32x64xf32>
    %91 = vector.broadcast %4 : vector<32x1xf32> to vector<32x64xf32>
    %92 = arith.mulf %90, %91 : vector<32x64xf32>
    %93 = tpu.concatenate %89, %76, %92 in 1 : vector<32x64xf32>, vector<32x64xf32>, vector<32x64xf32> -> vector<32x192xf32>
    %cst_51 = arith.constant dense<0.000000e+00> : vector<32x64xf32>
    %94 = tpu.matmul %93, %86, %cst_51 {dimension_numbers = #tpu.dot_dimension_numbers<[1], [0], [0], [1], [0, 0, 1, 1], [], []>} : vector<32x192xf32>, vector<192x64xf32>, vector<32x64xf32> -> vector<32x64xf32>
    %95 = vector.broadcast %81 : vector<1x64xf32> to vector<32x64xf32>
    %96 = arith.addf %94, %95 : vector<32x64xf32>
    %c1_52 = arith.constant 1 : index
    %c0_53 = arith.constant 0 : index
    %c0_54 = arith.constant 0 : index
    %c0_55 = arith.constant 0 : index
    %97 = vector.load %arg2[%c1_52, %c0_53, %c0_54, %c0_55] : memref<4x3x256x64xf32, #tpu.memory_space<vmem>>, vector<1x1x256x64xf32>
    %98 = vector.shape_cast %97 : vector<1x1x256x64xf32> to vector<256x64xf32>
    %cst_56 = arith.constant dense<0.000000e+00> : vector<32x64xf32>
    %99 = tpu.matmul %78, %98, %cst_56 {dimension_numbers = #tpu.dot_dimension_numbers<[1], [0], [0], [1], [0, 0, 1, 1], [], []>} : vector<32x256xf32>, vector<256x64xf32>, vector<32x64xf32> -> vector<32x64xf32>
    %c1_57 = arith.constant 1 : index
    %c1_58 = arith.constant 1 : index
    %c0_59 = arith.constant 0 : index
    %c0_60 = arith.constant 0 : index
    %100 = vector.load %arg2[%c1_57, %c1_58, %c0_59, %c0_60] : memref<4x3x256x64xf32, #tpu.memory_space<vmem>>, vector<1x1x256x64xf32>
    %101 = vector.shape_cast %100 : vector<1x1x256x64xf32> to vector<256x64xf32>
    %cst_61 = arith.constant dense<0.000000e+00> : vector<32x64xf32>
    %102 = tpu.matmul %78, %101, %cst_61 {dimension_numbers = #tpu.dot_dimension_numbers<[1], [0], [0], [1], [0, 0, 1, 1], [], []>} : vector<32x256xf32>, vector<256x64xf32>, vector<32x64xf32> -> vector<32x64xf32>
    %c1_62 = arith.constant 1 : index
    %c2_63 = arith.constant 2 : index
    %c0_64 = arith.constant 0 : index
    %c0_65 = arith.constant 0 : index
    %103 = vector.load %arg2[%c1_62, %c2_63, %c0_64, %c0_65] : memref<4x3x256x64xf32, #tpu.memory_space<vmem>>, vector<1x1x256x64xf32>
    %104 = vector.shape_cast %103 : vector<1x1x256x64xf32> to vector<256x64xf32>
    %cst_66 = arith.constant dense<0.000000e+00> : vector<32x64xf32>
    %105 = tpu.matmul %78, %104, %cst_66 {dimension_numbers = #tpu.dot_dimension_numbers<[1], [0], [0], [1], [0, 0, 1, 1], [], []>} : vector<32x256xf32>, vector<256x64xf32>, vector<32x64xf32> -> vector<32x64xf32>
    %c1_i32_67 = arith.constant 1 : i32
    %106 = tpu.dynamic_rotate %99 by %c1_i32_67 dim 0 : vector<32x64xf32>, i32 -> vector<32x64xf32>
    %107 = vector.broadcast %3 : vector<32x1xf32> to vector<32x64xf32>
    %108 = arith.mulf %106, %107 : vector<32x64xf32>
    %109 = arith.addf %108, %102 : vector<32x64xf32>
    %c31_i32_68 = arith.constant 31 : i32
    %110 = tpu.dynamic_rotate %105 by %c31_i32_68 dim 0 : vector<32x64xf32>, i32 -> vector<32x64xf32>
    %111 = vector.broadcast %4 : vector<32x1xf32> to vector<32x64xf32>
    %112 = arith.mulf %110, %111 : vector<32x64xf32>
    %113 = arith.addf %109, %112 : vector<32x64xf32>
    %114 = vector.broadcast %82 : vector<1x64xf32> to vector<32x64xf32>
    %115 = arith.addf %113, %114 : vector<32x64xf32>
    %116 = arith.addf %96, %115 : vector<32x64xf32>
    %cst_69 = arith.constant 1.000000e-01 : f32
    %117 = vector.broadcast %cst_69 : f32 to vector<32x64xf32>
    %118 = arith.mulf %117, %116 : vector<32x64xf32>
    %119 = arith.maximumf %116, %118 : vector<32x64xf32>
    %c1_70 = arith.constant 1 : index
    %c1_71 = arith.constant 1 : index
    %c0_72 = arith.constant 0 : index
    %c0_73 = arith.constant 0 : index
    %120 = vector.load %arg1[%c1_70, %c1_71, %c0_72, %c0_73] : memref<4x2x192x64xf32, #tpu.memory_space<vmem>>, vector<1x1x192x64xf32>
    %121 = vector.shape_cast %120 : vector<1x1x192x64xf32> to vector<192x64xf32>
    %c1_i32_74 = arith.constant 1 : i32
    %122 = tpu.dynamic_rotate %119 by %c1_i32_74 dim 0 : vector<32x64xf32>, i32 -> vector<32x64xf32>
    %123 = vector.broadcast %3 : vector<32x1xf32> to vector<32x64xf32>
    %124 = arith.mulf %122, %123 : vector<32x64xf32>
    %c31_i32_75 = arith.constant 31 : i32
    %125 = tpu.dynamic_rotate %119 by %c31_i32_75 dim 0 : vector<32x64xf32>, i32 -> vector<32x64xf32>
    %126 = vector.broadcast %4 : vector<32x1xf32> to vector<32x64xf32>
    %127 = arith.mulf %125, %126 : vector<32x64xf32>
    %128 = tpu.concatenate %124, %119, %127 in 1 : vector<32x64xf32>, vector<32x64xf32>, vector<32x64xf32> -> vector<32x192xf32>
    %cst_76 = arith.constant dense<0.000000e+00> : vector<32x64xf32>
    %129 = tpu.matmul %128, %121, %cst_76 {dimension_numbers = #tpu.dot_dimension_numbers<[1], [0], [0], [1], [0, 0, 1, 1], [], []>} : vector<32x192xf32>, vector<192x64xf32>, vector<32x64xf32> -> vector<32x64xf32>
    %130 = vector.broadcast %83 : vector<1x64xf32> to vector<32x64xf32>
    %131 = arith.addf %129, %130 : vector<32x64xf32>
    %132 = arith.addf %131, %96 : vector<32x64xf32>
    %cst_77 = arith.constant 1.000000e-01 : f32
    %133 = vector.broadcast %cst_77 : f32 to vector<32x64xf32>
    %134 = arith.mulf %133, %115 : vector<32x64xf32>
    %135 = arith.maximumf %115, %134 : vector<32x64xf32>
    %c1_78 = arith.constant 1 : index
    %c0_79 = arith.constant 0 : index
    %c0_80 = arith.constant 0 : index
    %136 = vector.load %arg3[%c1_78, %c0_79, %c0_80] : memref<4x192x256xf32, #tpu.memory_space<vmem>>, vector<1x192x256xf32>
    %137 = vector.shape_cast %136 : vector<1x192x256xf32> to vector<192x256xf32>
    %c1_i32_81 = arith.constant 1 : i32
    %138 = tpu.dynamic_rotate %135 by %c1_i32_81 dim 0 : vector<32x64xf32>, i32 -> vector<32x64xf32>
    %139 = vector.broadcast %3 : vector<32x1xf32> to vector<32x64xf32>
    %140 = arith.mulf %138, %139 : vector<32x64xf32>
    %c31_i32_82 = arith.constant 31 : i32
    %141 = tpu.dynamic_rotate %135 by %c31_i32_82 dim 0 : vector<32x64xf32>, i32 -> vector<32x64xf32>
    %142 = vector.broadcast %4 : vector<32x1xf32> to vector<32x64xf32>
    %143 = arith.mulf %141, %142 : vector<32x64xf32>
    %144 = tpu.concatenate %140, %135, %143 in 1 : vector<32x64xf32>, vector<32x64xf32>, vector<32x64xf32> -> vector<32x192xf32>
    %cst_83 = arith.constant dense<0.000000e+00> : vector<32x256xf32>
    %145 = tpu.matmul %144, %137, %cst_83 {dimension_numbers = #tpu.dot_dimension_numbers<[1], [0], [0], [1], [0, 0, 1, 1], [], []>} : vector<32x192xf32>, vector<192x256xf32>, vector<32x256xf32> -> vector<32x256xf32>
    %146 = vector.broadcast %84 : vector<1x256xf32> to vector<32x256xf32>
    %147 = arith.addf %145, %146 : vector<32x256xf32>
    %148 = arith.addf %147, %78 : vector<32x256xf32>
    %149 = vector.broadcast %2 : vector<32x1xf32> to vector<32x64xf32>
    %150 = arith.mulf %132, %149 : vector<32x64xf32>
    %151 = vector.broadcast %2 : vector<32x1xf32> to vector<32x256xf32>
    %152 = arith.mulf %148, %151 : vector<32x256xf32>
    %c2_84 = arith.constant 2 : index
    %c0_85 = arith.constant 0 : index
    %c0_86 = arith.constant 0 : index
    %153 = vector.load %arg4[%c2_84, %c0_85, %c0_86] : memref<4x4x256xf32, #tpu.memory_space<vmem>>, vector<1x4x256xf32>
    %154 = vector.shape_cast %153 : vector<1x4x256xf32> to vector<4x256xf32>
    %155 = vector.extract_strided_slice %154 {offsets = [0, 0], sizes = [1, 64], strides = [1, 1]} : vector<4x256xf32> to vector<1x64xf32>
    %156 = vector.extract_strided_slice %154 {offsets = [1, 0], sizes = [1, 64], strides = [1, 1]} : vector<4x256xf32> to vector<1x64xf32>
    %157 = vector.extract_strided_slice %154 {offsets = [2, 0], sizes = [1, 64], strides = [1, 1]} : vector<4x256xf32> to vector<1x64xf32>
    %158 = vector.extract_strided_slice %154 {offsets = [3, 0], sizes = [1, 256], strides = [1, 1]} : vector<4x256xf32> to vector<1x256xf32>
    %c2_87 = arith.constant 2 : index
    %c0_88 = arith.constant 0 : index
    %c0_89 = arith.constant 0 : index
    %c0_90 = arith.constant 0 : index
    %159 = vector.load %arg1[%c2_87, %c0_88, %c0_89, %c0_90] : memref<4x2x192x64xf32, #tpu.memory_space<vmem>>, vector<1x1x192x64xf32>
    %160 = vector.shape_cast %159 : vector<1x1x192x64xf32> to vector<192x64xf32>
    %c1_i32_91 = arith.constant 1 : i32
    %161 = tpu.dynamic_rotate %150 by %c1_i32_91 dim 0 : vector<32x64xf32>, i32 -> vector<32x64xf32>
    %162 = vector.broadcast %3 : vector<32x1xf32> to vector<32x64xf32>
    %163 = arith.mulf %161, %162 : vector<32x64xf32>
    %c31_i32_92 = arith.constant 31 : i32
    %164 = tpu.dynamic_rotate %150 by %c31_i32_92 dim 0 : vector<32x64xf32>, i32 -> vector<32x64xf32>
    %165 = vector.broadcast %4 : vector<32x1xf32> to vector<32x64xf32>
    %166 = arith.mulf %164, %165 : vector<32x64xf32>
    %167 = tpu.concatenate %163, %150, %166 in 1 : vector<32x64xf32>, vector<32x64xf32>, vector<32x64xf32> -> vector<32x192xf32>
    %cst_93 = arith.constant dense<0.000000e+00> : vector<32x64xf32>
    %168 = tpu.matmul %167, %160, %cst_93 {dimension_numbers = #tpu.dot_dimension_numbers<[1], [0], [0], [1], [0, 0, 1, 1], [], []>} : vector<32x192xf32>, vector<192x64xf32>, vector<32x64xf32> -> vector<32x64xf32>
    %169 = vector.broadcast %155 : vector<1x64xf32> to vector<32x64xf32>
    %170 = arith.addf %168, %169 : vector<32x64xf32>
    %c2_94 = arith.constant 2 : index
    %c0_95 = arith.constant 0 : index
    %c0_96 = arith.constant 0 : index
    %c0_97 = arith.constant 0 : index
    %171 = vector.load %arg2[%c2_94, %c0_95, %c0_96, %c0_97] : memref<4x3x256x64xf32, #tpu.memory_space<vmem>>, vector<1x1x256x64xf32>
    %172 = vector.shape_cast %171 : vector<1x1x256x64xf32> to vector<256x64xf32>
    %cst_98 = arith.constant dense<0.000000e+00> : vector<32x64xf32>
    %173 = tpu.matmul %152, %172, %cst_98 {dimension_numbers = #tpu.dot_dimension_numbers<[1], [0], [0], [1], [0, 0, 1, 1], [], []>} : vector<32x256xf32>, vector<256x64xf32>, vector<32x64xf32> -> vector<32x64xf32>
    %c2_99 = arith.constant 2 : index
    %c1_100 = arith.constant 1 : index
    %c0_101 = arith.constant 0 : index
    %c0_102 = arith.constant 0 : index
    %174 = vector.load %arg2[%c2_99, %c1_100, %c0_101, %c0_102] : memref<4x3x256x64xf32, #tpu.memory_space<vmem>>, vector<1x1x256x64xf32>
    %175 = vector.shape_cast %174 : vector<1x1x256x64xf32> to vector<256x64xf32>
    %cst_103 = arith.constant dense<0.000000e+00> : vector<32x64xf32>
    %176 = tpu.matmul %152, %175, %cst_103 {dimension_numbers = #tpu.dot_dimension_numbers<[1], [0], [0], [1], [0, 0, 1, 1], [], []>} : vector<32x256xf32>, vector<256x64xf32>, vector<32x64xf32> -> vector<32x64xf32>
    %c2_104 = arith.constant 2 : index
    %c2_105 = arith.constant 2 : index
    %c0_106 = arith.constant 0 : index
    %c0_107 = arith.constant 0 : index
    %177 = vector.load %arg2[%c2_104, %c2_105, %c0_106, %c0_107] : memref<4x3x256x64xf32, #tpu.memory_space<vmem>>, vector<1x1x256x64xf32>
    %178 = vector.shape_cast %177 : vector<1x1x256x64xf32> to vector<256x64xf32>
    %cst_108 = arith.constant dense<0.000000e+00> : vector<32x64xf32>
    %179 = tpu.matmul %152, %178, %cst_108 {dimension_numbers = #tpu.dot_dimension_numbers<[1], [0], [0], [1], [0, 0, 1, 1], [], []>} : vector<32x256xf32>, vector<256x64xf32>, vector<32x64xf32> -> vector<32x64xf32>
    %c1_i32_109 = arith.constant 1 : i32
    %180 = tpu.dynamic_rotate %173 by %c1_i32_109 dim 0 : vector<32x64xf32>, i32 -> vector<32x64xf32>
    %181 = vector.broadcast %3 : vector<32x1xf32> to vector<32x64xf32>
    %182 = arith.mulf %180, %181 : vector<32x64xf32>
    %183 = arith.addf %182, %176 : vector<32x64xf32>
    %c31_i32_110 = arith.constant 31 : i32
    %184 = tpu.dynamic_rotate %179 by %c31_i32_110 dim 0 : vector<32x64xf32>, i32 -> vector<32x64xf32>
    %185 = vector.broadcast %4 : vector<32x1xf32> to vector<32x64xf32>
    %186 = arith.mulf %184, %185 : vector<32x64xf32>
    %187 = arith.addf %183, %186 : vector<32x64xf32>
    %188 = vector.broadcast %156 : vector<1x64xf32> to vector<32x64xf32>
    %189 = arith.addf %187, %188 : vector<32x64xf32>
    %190 = arith.addf %170, %189 : vector<32x64xf32>
    %cst_111 = arith.constant 1.000000e-01 : f32
    %191 = vector.broadcast %cst_111 : f32 to vector<32x64xf32>
    %192 = arith.mulf %191, %190 : vector<32x64xf32>
    %193 = arith.maximumf %190, %192 : vector<32x64xf32>
    %c2_112 = arith.constant 2 : index
    %c1_113 = arith.constant 1 : index
    %c0_114 = arith.constant 0 : index
    %c0_115 = arith.constant 0 : index
    %194 = vector.load %arg1[%c2_112, %c1_113, %c0_114, %c0_115] : memref<4x2x192x64xf32, #tpu.memory_space<vmem>>, vector<1x1x192x64xf32>
    %195 = vector.shape_cast %194 : vector<1x1x192x64xf32> to vector<192x64xf32>
    %c1_i32_116 = arith.constant 1 : i32
    %196 = tpu.dynamic_rotate %193 by %c1_i32_116 dim 0 : vector<32x64xf32>, i32 -> vector<32x64xf32>
    %197 = vector.broadcast %3 : vector<32x1xf32> to vector<32x64xf32>
    %198 = arith.mulf %196, %197 : vector<32x64xf32>
    %c31_i32_117 = arith.constant 31 : i32
    %199 = tpu.dynamic_rotate %193 by %c31_i32_117 dim 0 : vector<32x64xf32>, i32 -> vector<32x64xf32>
    %200 = vector.broadcast %4 : vector<32x1xf32> to vector<32x64xf32>
    %201 = arith.mulf %199, %200 : vector<32x64xf32>
    %202 = tpu.concatenate %198, %193, %201 in 1 : vector<32x64xf32>, vector<32x64xf32>, vector<32x64xf32> -> vector<32x192xf32>
    %cst_118 = arith.constant dense<0.000000e+00> : vector<32x64xf32>
    %203 = tpu.matmul %202, %195, %cst_118 {dimension_numbers = #tpu.dot_dimension_numbers<[1], [0], [0], [1], [0, 0, 1, 1], [], []>} : vector<32x192xf32>, vector<192x64xf32>, vector<32x64xf32> -> vector<32x64xf32>
    %204 = vector.broadcast %157 : vector<1x64xf32> to vector<32x64xf32>
    %205 = arith.addf %203, %204 : vector<32x64xf32>
    %206 = arith.addf %205, %170 : vector<32x64xf32>
    %cst_119 = arith.constant 1.000000e-01 : f32
    %207 = vector.broadcast %cst_119 : f32 to vector<32x64xf32>
    %208 = arith.mulf %207, %189 : vector<32x64xf32>
    %209 = arith.maximumf %189, %208 : vector<32x64xf32>
    %c2_120 = arith.constant 2 : index
    %c0_121 = arith.constant 0 : index
    %c0_122 = arith.constant 0 : index
    %210 = vector.load %arg3[%c2_120, %c0_121, %c0_122] : memref<4x192x256xf32, #tpu.memory_space<vmem>>, vector<1x192x256xf32>
    %211 = vector.shape_cast %210 : vector<1x192x256xf32> to vector<192x256xf32>
    %c1_i32_123 = arith.constant 1 : i32
    %212 = tpu.dynamic_rotate %209 by %c1_i32_123 dim 0 : vector<32x64xf32>, i32 -> vector<32x64xf32>
    %213 = vector.broadcast %3 : vector<32x1xf32> to vector<32x64xf32>
    %214 = arith.mulf %212, %213 : vector<32x64xf32>
    %c31_i32_124 = arith.constant 31 : i32
    %215 = tpu.dynamic_rotate %209 by %c31_i32_124 dim 0 : vector<32x64xf32>, i32 -> vector<32x64xf32>
    %216 = vector.broadcast %4 : vector<32x1xf32> to vector<32x64xf32>
    %217 = arith.mulf %215, %216 : vector<32x64xf32>
    %218 = tpu.concatenate %214, %209, %217 in 1 : vector<32x64xf32>, vector<32x64xf32>, vector<32x64xf32> -> vector<32x192xf32>
    %cst_125 = arith.constant dense<0.000000e+00> : vector<32x256xf32>
    %219 = tpu.matmul %218, %211, %cst_125 {dimension_numbers = #tpu.dot_dimension_numbers<[1], [0], [0], [1], [0, 0, 1, 1], [], []>} : vector<32x192xf32>, vector<192x256xf32>, vector<32x256xf32> -> vector<32x256xf32>
    %220 = vector.broadcast %158 : vector<1x256xf32> to vector<32x256xf32>
    %221 = arith.addf %219, %220 : vector<32x256xf32>
    %222 = arith.addf %221, %152 : vector<32x256xf32>
    %223 = vector.broadcast %2 : vector<32x1xf32> to vector<32x64xf32>
    %224 = arith.mulf %206, %223 : vector<32x64xf32>
    %225 = vector.broadcast %2 : vector<32x1xf32> to vector<32x256xf32>
    %226 = arith.mulf %222, %225 : vector<32x256xf32>
    %c3 = arith.constant 3 : index
    %c0_126 = arith.constant 0 : index
    %c0_127 = arith.constant 0 : index
    %227 = vector.load %arg4[%c3, %c0_126, %c0_127] : memref<4x4x256xf32, #tpu.memory_space<vmem>>, vector<1x4x256xf32>
    %228 = vector.shape_cast %227 : vector<1x4x256xf32> to vector<4x256xf32>
    %229 = vector.extract_strided_slice %228 {offsets = [0, 0], sizes = [1, 64], strides = [1, 1]} : vector<4x256xf32> to vector<1x64xf32>
    %230 = vector.extract_strided_slice %228 {offsets = [1, 0], sizes = [1, 64], strides = [1, 1]} : vector<4x256xf32> to vector<1x64xf32>
    %231 = vector.extract_strided_slice %228 {offsets = [2, 0], sizes = [1, 64], strides = [1, 1]} : vector<4x256xf32> to vector<1x64xf32>
    %c3_128 = arith.constant 3 : index
    %c0_129 = arith.constant 0 : index
    %c0_130 = arith.constant 0 : index
    %c0_131 = arith.constant 0 : index
    %232 = vector.load %arg1[%c3_128, %c0_129, %c0_130, %c0_131] : memref<4x2x192x64xf32, #tpu.memory_space<vmem>>, vector<1x1x192x64xf32>
    %233 = vector.shape_cast %232 : vector<1x1x192x64xf32> to vector<192x64xf32>
    %c1_i32_132 = arith.constant 1 : i32
    %234 = tpu.dynamic_rotate %224 by %c1_i32_132 dim 0 : vector<32x64xf32>, i32 -> vector<32x64xf32>
    %235 = vector.broadcast %3 : vector<32x1xf32> to vector<32x64xf32>
    %236 = arith.mulf %234, %235 : vector<32x64xf32>
    %c31_i32_133 = arith.constant 31 : i32
    %237 = tpu.dynamic_rotate %224 by %c31_i32_133 dim 0 : vector<32x64xf32>, i32 -> vector<32x64xf32>
    %238 = vector.broadcast %4 : vector<32x1xf32> to vector<32x64xf32>
    %239 = arith.mulf %237, %238 : vector<32x64xf32>
    %240 = tpu.concatenate %236, %224, %239 in 1 : vector<32x64xf32>, vector<32x64xf32>, vector<32x64xf32> -> vector<32x192xf32>
    %cst_134 = arith.constant dense<0.000000e+00> : vector<32x64xf32>
    %241 = tpu.matmul %240, %233, %cst_134 {dimension_numbers = #tpu.dot_dimension_numbers<[1], [0], [0], [1], [0, 0, 1, 1], [], []>} : vector<32x192xf32>, vector<192x64xf32>, vector<32x64xf32> -> vector<32x64xf32>
    %242 = vector.broadcast %229 : vector<1x64xf32> to vector<32x64xf32>
    %243 = arith.addf %241, %242 : vector<32x64xf32>
    %c3_135 = arith.constant 3 : index
    %c0_136 = arith.constant 0 : index
    %c0_137 = arith.constant 0 : index
    %c0_138 = arith.constant 0 : index
    %244 = vector.load %arg2[%c3_135, %c0_136, %c0_137, %c0_138] : memref<4x3x256x64xf32, #tpu.memory_space<vmem>>, vector<1x1x256x64xf32>
    %245 = vector.shape_cast %244 : vector<1x1x256x64xf32> to vector<256x64xf32>
    %cst_139 = arith.constant dense<0.000000e+00> : vector<32x64xf32>
    %246 = tpu.matmul %226, %245, %cst_139 {dimension_numbers = #tpu.dot_dimension_numbers<[1], [0], [0], [1], [0, 0, 1, 1], [], []>} : vector<32x256xf32>, vector<256x64xf32>, vector<32x64xf32> -> vector<32x64xf32>
    %c3_140 = arith.constant 3 : index
    %c1_141 = arith.constant 1 : index
    %c0_142 = arith.constant 0 : index
    %c0_143 = arith.constant 0 : index
    %247 = vector.load %arg2[%c3_140, %c1_141, %c0_142, %c0_143] : memref<4x3x256x64xf32, #tpu.memory_space<vmem>>, vector<1x1x256x64xf32>
    %248 = vector.shape_cast %247 : vector<1x1x256x64xf32> to vector<256x64xf32>
    %cst_144 = arith.constant dense<0.000000e+00> : vector<32x64xf32>
    %249 = tpu.matmul %226, %248, %cst_144 {dimension_numbers = #tpu.dot_dimension_numbers<[1], [0], [0], [1], [0, 0, 1, 1], [], []>} : vector<32x256xf32>, vector<256x64xf32>, vector<32x64xf32> -> vector<32x64xf32>
    %c3_145 = arith.constant 3 : index
    %c2_146 = arith.constant 2 : index
    %c0_147 = arith.constant 0 : index
    %c0_148 = arith.constant 0 : index
    %250 = vector.load %arg2[%c3_145, %c2_146, %c0_147, %c0_148] : memref<4x3x256x64xf32, #tpu.memory_space<vmem>>, vector<1x1x256x64xf32>
    %251 = vector.shape_cast %250 : vector<1x1x256x64xf32> to vector<256x64xf32>
    %cst_149 = arith.constant dense<0.000000e+00> : vector<32x64xf32>
    %252 = tpu.matmul %226, %251, %cst_149 {dimension_numbers = #tpu.dot_dimension_numbers<[1], [0], [0], [1], [0, 0, 1, 1], [], []>} : vector<32x256xf32>, vector<256x64xf32>, vector<32x64xf32> -> vector<32x64xf32>
    %c1_i32_150 = arith.constant 1 : i32
    %253 = tpu.dynamic_rotate %246 by %c1_i32_150 dim 0 : vector<32x64xf32>, i32 -> vector<32x64xf32>
    %254 = vector.broadcast %3 : vector<32x1xf32> to vector<32x64xf32>
    %255 = arith.mulf %253, %254 : vector<32x64xf32>
    %256 = arith.addf %255, %249 : vector<32x64xf32>
    %c31_i32_151 = arith.constant 31 : i32
    %257 = tpu.dynamic_rotate %252 by %c31_i32_151 dim 0 : vector<32x64xf32>, i32 -> vector<32x64xf32>
    %258 = vector.broadcast %4 : vector<32x1xf32> to vector<32x64xf32>
    %259 = arith.mulf %257, %258 : vector<32x64xf32>
    %260 = arith.addf %256, %259 : vector<32x64xf32>
    %261 = vector.broadcast %230 : vector<1x64xf32> to vector<32x64xf32>
    %262 = arith.addf %260, %261 : vector<32x64xf32>
    %263 = arith.addf %243, %262 : vector<32x64xf32>
    %cst_152 = arith.constant 1.000000e-01 : f32
    %264 = vector.broadcast %cst_152 : f32 to vector<32x64xf32>
    %265 = arith.mulf %264, %263 : vector<32x64xf32>
    %266 = arith.maximumf %263, %265 : vector<32x64xf32>
    %c3_153 = arith.constant 3 : index
    %c1_154 = arith.constant 1 : index
    %c0_155 = arith.constant 0 : index
    %c0_156 = arith.constant 0 : index
    %267 = vector.load %arg1[%c3_153, %c1_154, %c0_155, %c0_156] : memref<4x2x192x64xf32, #tpu.memory_space<vmem>>, vector<1x1x192x64xf32>
    %268 = vector.shape_cast %267 : vector<1x1x192x64xf32> to vector<192x64xf32>
    %c1_i32_157 = arith.constant 1 : i32
    %269 = tpu.dynamic_rotate %266 by %c1_i32_157 dim 0 : vector<32x64xf32>, i32 -> vector<32x64xf32>
    %270 = vector.broadcast %3 : vector<32x1xf32> to vector<32x64xf32>
    %271 = arith.mulf %269, %270 : vector<32x64xf32>
    %c31_i32_158 = arith.constant 31 : i32
    %272 = tpu.dynamic_rotate %266 by %c31_i32_158 dim 0 : vector<32x64xf32>, i32 -> vector<32x64xf32>
    %273 = vector.broadcast %4 : vector<32x1xf32> to vector<32x64xf32>
    %274 = arith.mulf %272, %273 : vector<32x64xf32>
    %275 = tpu.concatenate %271, %266, %274 in 1 : vector<32x64xf32>, vector<32x64xf32>, vector<32x64xf32> -> vector<32x192xf32>
    %cst_159 = arith.constant dense<0.000000e+00> : vector<32x64xf32>
    %276 = tpu.matmul %275, %268, %cst_159 {dimension_numbers = #tpu.dot_dimension_numbers<[1], [0], [0], [1], [0, 0, 1, 1], [], []>} : vector<32x192xf32>, vector<192x64xf32>, vector<32x64xf32> -> vector<32x64xf32>
    %277 = vector.broadcast %231 : vector<1x64xf32> to vector<32x64xf32>
    %278 = arith.addf %276, %277 : vector<32x64xf32>
    %279 = arith.addf %278, %243 : vector<32x64xf32>
    %280 = vector.broadcast %2 : vector<32x1xf32> to vector<32x64xf32>
    %281 = arith.mulf %279, %280 : vector<32x64xf32>
    %c0_160 = arith.constant 0 : index
    %c0_161 = arith.constant 0 : index
    %282 = vector.load %arg5[%c0_160, %c0_161] : memref<2x64xf32, #tpu.memory_space<vmem>>, vector<1x64xf32>
    %c1_162 = arith.constant 1 : index
    %c0_163 = arith.constant 0 : index
    %283 = vector.load %arg5[%c1_162, %c0_163] : memref<2x64xf32, #tpu.memory_space<vmem>>, vector<1x1xf32>
    %284 = vector.broadcast %282 : vector<1x64xf32> to vector<32x64xf32>
    %285 = arith.mulf %281, %284 : vector<32x64xf32>
    %cst_164 = arith.constant dense<0.000000e+00> : vector<32xf32>
    %286 = vector.multi_reduction <add>, %285, %cst_164 [1] : vector<32x64xf32> to vector<32xf32>
    %287 = vector.shape_cast %286 : vector<32xf32> to vector<32x1xf32>
    %288 = vector.broadcast %283 : vector<1x1xf32> to vector<32x1xf32>
    %289 = arith.addf %287, %288 : vector<32x1xf32>
    %290 = vector.extract_strided_slice %76 {offsets = [0, 0], sizes = [32, 8], strides = [1, 1]} : vector<32x64xf32> to vector<32x8xf32>
    %291 = vector.extract_strided_slice %150 {offsets = [0, 0], sizes = [32, 16], strides = [1, 1]} : vector<32x64xf32> to vector<32x16xf32>
    %292 = vector.extract_strided_slice %224 {offsets = [0, 0], sizes = [32, 32], strides = [1, 1]} : vector<32x64xf32> to vector<32x32xf32>
    %cst_165 = arith.constant 0.000000e+00 : f32
    %293 = vector.broadcast %cst_165 : f32 to vector<32x7xf32>
    %294 = tpu.concatenate %290, %291, %292, %281, %289, %293 in 1 : vector<32x8xf32>, vector<32x16xf32>, vector<32x32xf32>, vector<32x64xf32>, vector<32x1xf32>, vector<32x7xf32> -> vector<32x128xf32>
    %c0_166 = arith.constant 0 : index
    %c0_167 = arith.constant 0 : index
    %295 = vector.load %arg6[%c0_166, %c0_167] : memref<32x128xf32, #tpu.memory_space<vmem>>, vector<32x128xf32>
    tpu.vector_store %arg6[%c0_166, %c0_167], %294 {strides = array<i32>} : memref<32x128xf32, #tpu.memory_space<vmem>>, vector<32x128xf32>,
    return
  }
}

</mosaic_0001>

<llo_original>
// kernel: tile.13
$region0: #{tile.13}
  #allocation0 [shape = 's32[1]{0}', space=sflag, size = 0x4, scoped, tag = 'scoped memory for tile.13']
  %s0 = inlined_call_operand.vmem [shape: f32[16], index: 0, kind: input, shape index: {}]
  %s1 = inlined_call_operand.vmem [shape: f32[2,16], index: 1, kind: output, shape index: {}]
  // Predicated region
  $region2: #{tile.13} parent=0 // pred_check
    _
  $region3: #{tile.13} parent=0 // pred_check_branch
    %3 = sbr.rel (0) target = $region5
  $region4: #{tile.13} parent=0 // pred_region
    _
  $region5: #{tile.13} parent=0 // pred_fallthru
    _
  %v4 = vld [vmem:[%s0] ss:$0 sm:$0xff]
  %5 = vst [vmem:[%s1] sm:$0x3] %v4

// kernel: tile.1
$region0: #{tile.1}
  %s0 = inlined_call_operand.vmem [shape: f32[2,16], index: 0, kind: input, shape index: {}]
  %s1 = inlined_call_operand.vmem [shape: f32[32,1], index: 1, kind: output, shape index: {}]
  $region1: #{tile.1} parent=0
    #allocation0 [shape = 'u8[4096]{0}', space=vmem, size = 0x1000, scoped, tag = 'scoped mem for input reshape']
    %s3 = ssub.s32 4, 1
    %v4 = vld [vmem:[%s0] sm:%s3]
    %5 = vst [vmem:[#allocation0] sm:%s3] %v4
    %v6 = vld [vmem:[#allocation0] sm:$0x3]
    %vm7 = vcmask 7168
    %8 = vst.msk [vmem:[%s1] ss:$16 sm:$0x3] %vm7, %v6
    %v9 = vld [vmem:[#allocation0] sm:$0x3]
    %10 = vrot.lane.b32.xlu0 %v9, 127
    %v11 = vpop.permute.xlu0 %10
    %vm12 = vcmask 7168
    %s13 = scalar_lea.vmem %s1, 1
    %14 = vst.msk [vmem:[%s13] ss:$16 sm:$0x3] %vm12, %v11
    %v15 = vld [vmem:[#allocation0] sm:$0x3]
    %16 = vrot.lane.b32.xlu0 %v15, 126
    %v17 = vpop.permute.xlu0 %16
    %vm18 = vcmask 7168
    %s19 = scalar_lea.vmem %s1, 2
    %20 = vst.msk [vmem:[%s19] ss:$16 sm:$0x3] %vm18, %v17
    %v21 = vld [vmem:[#allocation0] sm:$0x3]
    %22 = vrot.lane.b32.xlu0 %v21, 125
    %v23 = vpop.permute.xlu0 %22
    %vm24 = vcmask 7168
    %s25 = scalar_lea.vmem %s1, 3
    %26 = vst.msk [vmem:[%s25] ss:$16 sm:$0x3] %vm24, %v23
    %v27 = vld [vmem:[#allocation0] sm:$0x3]
    %28 = vrot.lane.b32.xlu0 %v27, 124
    %v29 = vpop.permute.xlu0 %28
    %vm30 = vcmask 7168
    %s31 = scalar_lea.vmem %s1, 4
    %32 = vst.msk [vmem:[%s31] ss:$16 sm:$0x3] %vm30, %v29
    %v33 = vld [vmem:[#allocation0] sm:$0x3]
    %34 = vrot.lane.b32.xlu0 %v33, 123
    %v35 = vpop.permute.xlu0 %34
    %vm36 = vcmask 7168
    %s37 = scalar_lea.vmem %s1, 5
    %38 = vst.msk [vmem:[%s37] ss:$16 sm:$0x3] %vm36, %v35
    %v39 = vld [vmem:[#allocation0] sm:$0x3]
    %40 = vrot.lane.b32.xlu0 %v39, 122
    %v41 = vpop.permute.xlu0 %40
    %vm42 = vcmask 7168
    %s43 = scalar_lea.vmem %s1, 6
    %44 = vst.msk [vmem:[%s43] ss:$16 sm:$0x3] %vm42, %v41
    %v45 = vld [vmem:[#allocation0] sm:$0x3]
    %46 = vrot.lane.b32.xlu0 %v45, 121
    %v47 = vpop.permute.xlu0 %46
    %vm48 = vcmask 7168
    %s49 = scalar_lea.vmem %s1, 7
    %50 = vst.msk [vmem:[%s49] ss:$16 sm:$0x3] %vm48, %v47
    %v51 = vld [vmem:[#allocation0] sm:$0x3]
    %52 = vrot.lane.b32.xlu0 %v51, 120
    %v53 = vpop.permute.xlu0 %52
    %vm54 = vcmask 7168
    %s55 = scalar_lea.vmem %s1, 8
    %56 = vst.msk [vmem:[%s55] ss:$16 sm:$0x3] %vm54, %v53
    %v57 = vld [vmem:[#allocation0] sm:$0x3]
    %58 = vrot.lane.b32.xlu0 %v57, 119
    %v59 = vpop.permute.xlu0 %58
    %vm60 = vcmask 7168
    %s61 = scalar_lea.vmem %s1, 9
    %62 = vst.msk [vmem:[%s61] ss:$16 sm:$0x3] %vm60, %v59
    %v63 = vld [vmem:[#allocation0] sm:$0x3]
    %64 = vrot.lane.b32.xlu0 %v63, 118
    %v65 = vpop.permute.xlu0 %64
    %vm66 = vcmask 7168
    %s67 = scalar_lea.vmem %s1, 10
    %68 = vst.msk [vmem:[%s67] ss:$16 sm:$0x3] %vm66, %v65
    %v69 = vld [vmem:[#allocation0] sm:$0x3]
    %70 = vrot.lane.b32.xlu0 %v69, 117
    %v71 = vpop.permute.xlu0 %70
    %vm72 = vcmask 7168
    %s73 = scalar_lea.vmem %s1, 11
    %74 = vst.msk [vmem:[%s73] ss:$16 sm:$0x3] %vm72, %v71
    %v75 = vld [vmem:[#allocation0] sm:$0x3]
    %76 = vrot.lane.b32.xlu0 %v75, 116
    %v77 = vpop.permute.xlu0 %76
    %vm78 = vcmask 7168
    %s79 = scalar_lea.vmem %s1, 12
    %80 = vst.msk [vmem:[%s79] ss:$16 sm:$0x3] %vm78, %v77
    %v81 = vld [vmem:[#allocation0] sm:$0x3]
    %82 = vrot.lane.b32.xlu0 %v81, 115
    %v83 = vpop.permute.xlu0 %82
    %vm84 = vcmask 7168
    %s85 = scalar_lea.vmem %s1, 13
    %86 = vst.msk [vmem:[%s85] ss:$16 sm:$0x3] %vm84, %v83
    %v87 = vld [vmem:[#allocation0] sm:$0x3]
    %88 = vrot.lane.b32.xlu0 %v87, 114
    %v89 = vpop.permute.xlu0 %88
    %vm90 = vcmask 7168
    %s91 = scalar_lea.vmem %s1, 14
    %92 = vst.msk [vmem:[%s91] ss:$16 sm:$0x3] %vm90, %v89
    %v93 = vld [vmem:[#allocation0] sm:$0x3]
    %94 = vrot.lane.b32.xlu0 %v93, 113
    %v95 = vpop.permute.xlu0 %94
    %vm96 = vcmask 7168
    %s97 = scalar_lea.vmem %s1, 15
    %98 = vst.msk [vmem:[%s97] ss:$16 sm:$0x3] %vm96, %v95

// kernel: multi_spectro_discriminator.1
$region0: #{multi_spectro_discriminator.1}
  #allocation0 [shape = 'u32[]', space=smem, size = 0x4, offset = 0x4, fixed_abs, tag = 'smem constant byte address 0x4 - core index']
  #allocation1 [shape = 'u32[72,128]{1,0:T(1,128)}', space=vmem, size = 0x9000, scoped, tag = 'internal scratch']
  %s0 = inlined_call_operand.vmem [shape: f32[32,384], index: 0, kind: input, shape index: {}]
  %s1 = inlined_call_operand.vmem [shape: f32[4,2,192,64], index: 1, kind: input, shape index: {}]
  %s2 = inlined_call_operand.vmem [shape: f32[4,3,256,64], index: 2, kind: input, shape index: {}]
  %s3 = inlined_call_operand.vmem [shape: f32[4,192,256], index: 3, kind: input, shape index: {}]
  %s4 = inlined_call_operand.vmem [shape: f32[4,4,256], index: 4, kind: input, shape index: {}]
  %s5 = inlined_call_operand.vmem [shape: f32[2,64], index: 5, kind: input, shape index: {}]
  %s6 = inlined_call_operand.vmem [shape: f32[32,128], index: 6, kind: output, shape index: {}]
  %s7 = sld [smem:[#allocation0]]
  $region34: #{multi_spectro_discriminator.1} parent=0
    _
  %s9 = ssub.s32 1, %s7
  %s10 = scalar_select 0, %s9, %s7
  // Predicated region
  $region2: #{multi_spectro_discriminator.1} parent=0 // pred_check
    _
  $region3: #{multi_spectro_discriminator.1} parent=0 // pred_check_branch
    %12 = sbr.rel (0) target = $region5
  $region4: #{multi_spectro_discriminator.1} parent=0 // pred_region
    _
  $region5: #{multi_spectro_discriminator.1} parent=0 // pred_fallthru
    _
  // Predicated region
  $region6: #{multi_spectro_discriminator.1} parent=0 // pred_check
    _
  $region7: #{multi_spectro_discriminator.1} parent=0 // pred_check_branch
    %14 = sbr.rel (0) target = $region9
  $region8: #{multi_spectro_discriminator.1} parent=0 // pred_region
    _
  $region9: #{multi_spectro_discriminator.1} parent=0 // pred_fallthru
    _
  // Predicated region
  $region10: #{multi_spectro_discriminator.1} parent=0 // pred_check
    _
  $region11: #{multi_spectro_discriminator.1} parent=0 // pred_check_branch
    %16 = sbr.rel (0) target = $region13
  $region12: #{multi_spectro_discriminator.1} parent=0 // pred_region
    _
  $region13: #{multi_spectro_discriminator.1} parent=0 // pred_fallthru
    _
  // Predicated region
  $region14: #{multi_spectro_discriminator.1} parent=0 // pred_check
    _
  $region15: #{multi_spectro_discriminator.1} parent=0 // pred_check_branch
    %18 = sbr.rel (0) target = $region17
  $region16: #{multi_spectro_discriminator.1} parent=0 // pred_region
    _
  $region17: #{multi_spectro_discriminator.1} parent=0 // pred_fallthru
    _
  // Predicated region
  $region18: #{multi_spectro_discriminator.1} parent=0 // pred_check
    _
  $region19: #{multi_spectro_discriminator.1} parent=0 // pred_check_branch
    %20 = sbr.rel (0) target = $region21
  $region20: #{multi_spectro_discriminator.1} parent=0 // pred_region
    _
  $region21: #{multi_spectro_discriminator.1} parent=0 // pred_fallthru
    _
  // Predicated region
  $region22: #{multi_spectro_discriminator.1} parent=0 // pred_check
    _
  $region23: #{multi_spectro_discriminator.1} parent=0 // pred_check_branch
    %22 = sbr.rel (0) target = $region25
  $region24: #{multi_spectro_discriminator.1} parent=0 // pred_region
    _
  $region25: #{multi_spectro_discriminator.1} parent=0 // pred_fallthru
    _
  %v23 = vld [vmem:[%s0] sm:$0xff]
  %v24 = vld [vmem:[%s0 + $0x8] sm:$0xff]
  %v25 = vld [vmem:[%s0 + $0x18] sm:$0xff]
  %v26 = vld [vmem:[%s0 + $0x20] sm:$0xff]
  %v27 = vld [vmem:[%s0 + $0x30] sm:$0xff]
  %v28 = vld [vmem:[%s0 + $0x38] sm:$0xff]
  %v29 = vld [vmem:[%s0 + $0x48] sm:$0xff]
  %v30 = vld [vmem:[%s0 + $0x50] sm:$0xff]
  %v31 = vld [vmem:[%s0 + $0x10] sm:$0xff]
  %v32 = vld [vmem:[%s0 + $0x28] sm:$0xff]
  %v33 = vld [vmem:[%s0 + $0x40] sm:$0xff]
  %v34 = vld [vmem:[%s0 + $0x58] sm:$0xff]
  %v35 = vld [vmem:[%s4] sm:$0xff]
  %v36 = vld [vmem:[%s1] sm:$0xff]
  %v37 = vld [vmem:[%s1 + $0x8] sm:$0xff]
  %v38 = vld [vmem:[%s1 + $0x10] sm:$0xff]
  %v39 = vld [vmem:[%s1 + $0x18] sm:$0xff]
  %v40 = vld [vmem:[%s1 + $0x20] sm:$0xff]
  %v41 = vld [vmem:[%s1 + $0x28] sm:$0xff]
  %v42 = vld [vmem:[%s1 + $0x30] sm:$0xff]
  %v43 = vld [vmem:[%s1 + $0x38] sm:$0xff]
  %v44 = vld [vmem:[%s1 + $0x40] sm:$0xff]
  %v45 = vld [vmem:[%s1 + $0x48] sm:$0xff]
  %v46 = vld [vmem:[%s1 + $0x50] sm:$0xff]
  %v47 = vld [vmem:[%s1 + $0x58] sm:$0xff]
  %v48 = vld [vmem:[%s1 + $0x60] sm:$0xff]
  %v49 = vld [vmem:[%s1 + $0x68] sm:$0xff]
  %v50 = vld [vmem:[%s1 + $0x70] sm:$0xff]
  %v51 = vld [vmem:[%s1 + $0x78] sm:$0xff]
  %v52 = vld [vmem:[%s1 + $0x80] sm:$0xff]
  %v53 = vld [vmem:[%s1 + $0x88] sm:$0xff]
  %v54 = vld [vmem:[%s1 + $0x90] sm:$0xff]
  %v55 = vld [vmem:[%s1 + $0x98] sm:$0xff]
  %v56 = vld [vmem:[%s1 + $0xa0] sm:$0xff]
  %v57 = vld [vmem:[%s1 + $0xa8] sm:$0xff]
  %v58 = vld [vmem:[%s1 + $0xb0] sm:$0xff]
  %v59 = vld [vmem:[%s1 + $0xb8] sm:$0xff]
  %v60 = vrot.slane %v31, 7
  %v61 = vrot.slane %v32, 7
  %v62 = vrot.slane %v33, 7
  %v63 = vrot.slane %v34, 7
  %v64 = vlaneseq
  %v65 = vshrl.u32 %v64, 7
  %vm66 = vcmp.lt.s32.totalorder %v65, 1
  %v67 = vsel %vm66, %v62, %v63
  %v68 = vsel %vm66, %v61, %v62
  %v69 = vsel %vm66, %v60, %v61
  %v70 = vsel %vm66, %v63, %v60
  %72 = vset.pattern.permute.xlu0 65
  %73 = vperm.xlu0 %72, %v31
  %v74 = vpop.permute.xlu0 %73
  %77 = vset.pattern.permute.xlu0 65
  %78 = vperm.xlu0 %77, %v32
  %v79 = vpop.permute.xlu0 %78
  %82 = vset.pattern.permute.xlu0 65
  %83 = vperm.xlu0 %82, %v33
  %v84 = vpop.permute.xlu0 %83
  %87 = vset.pattern.permute.xlu0 65
  %88 = vperm.xlu0 %87, %v34
  %v89 = vpop.permute.xlu0 %88
  %v91 = vmul.f32 %v70, %v74
  %v92 = vmul.f32 %v69, %v79
  %v93 = vmul.f32 %v68, %v84
  %v94 = vmul.f32 %v67, %v89
  %v95 = vrot.slane %v31, 1
  %v96 = vrot.slane %v32, 1
  %v97 = vrot.slane %v33, 1
  %v98 = vrot.slane %v34, 1
  %vm99 = vcmp.lt.s32.totalorder %v65, 7
  %v100 = vsel %vm99, %v97, %v98
  %v101 = vsel %vm99, %v96, %v97
  %v102 = vsel %vm99, %v95, %v96
  %v103 = vsel %vm99, %v98, %v95
  %104 = vset.pattern.permute.xlu0 66
  %105 = vperm.xlu0 %104, %v31
  %v106 = vpop.permute.xlu0 %105
  %108 = vset.pattern.permute.xlu0 66
  %109 = vperm.xlu0 %108, %v32
  %v110 = vpop.permute.xlu0 %109
  %112 = vset.pattern.permute.xlu0 66
  %113 = vperm.xlu0 %112, %v33
  %v114 = vpop.permute.xlu0 %113
  %116 = vset.pattern.permute.xlu0 66
  %117 = vperm.xlu0 %116, %v34
  %v118 = vpop.permute.xlu0 %117
  %v120 = vmul.f32 %v102, %v106
  %v121 = vmul.f32 %v101, %v110
  %v122 = vmul.f32 %v100, %v114
  %v123 = vmul.f32 %v103, %v118
  %124 = vrot.lane.b32.xlu0 %v31, 64
  %v125 = vpop.permute.xlu0 %124
  %126 = vrot.lane.b32.xlu0 %v32, 64
  %v127 = vpop.permute.xlu0 %126
  %128 = vrot.lane.b32.xlu0 %v33, 64
  %v129 = vpop.permute.xlu0 %128
  %130 = vrot.lane.b32.xlu0 %v34, 64
  %v131 = vpop.permute.xlu0 %130
  %vm136 = vcmask 523264
  %v137 = vsel %vm136, %v91, %v125
  %v138 = vsel %vm136, %v92, %v127
  %v139 = vsel %vm136, %v93, %v129
  %v140 = vsel %vm136, %v94, %v131
  %v141 = vperm.slane %v35, 0
  %v143 = vsel %vm136, %v120, 0
  %v146 = vsel %vm136, %v121, 0
  %v149 = vsel %vm136, %v122, 0
  %v152 = vsel %vm136, %v123, 0
  %154 = vmatpush.msra.mxu0 %v51
  %155 = vmatpush.msra.mxu0 %v50
  %156 = vmatpush.msra.mxu0 %v49
  %157 = vmatpush.msra.mxu0 %v48
  %158 = vmatpush.msra.mxu0 %v47
  %159 = vmatpush.msra.mxu0 %v46
  %160 = vmatpush.msra.mxu0 %v45
  %161 = vmatpush.msra.mxu0 %v44
  %162 = vmatpush.msra.mxu0 %v43
  %163 = vmatpush.msra.mxu0 %v42
  %164 = vmatpush.msra.mxu0 %v41
  %165 = vmatpush.msra.mxu0 %v40
  %166 = vmatpush.msra.mxu0 %v39
  %167 = vmatpush.msra.mxu0 %v38
  %168 = vmatpush.msra.mxu0 %v37
  %169 = vmatpush.msra.mxu0 %v36
  %170 = vmatmul.f32.gmra.mxu0 %v137
  %v171 = vpop.f32.mrf.mxu0
  %v172 = vadd.f32 %v141, %v171
  %173 = vmatmul.f32.gmra.mxu0 %v138
  %v174 = vpop.f32.mrf.mxu0
  %v175 = vadd.f32 %v141, %v174
  %176 = vmatmul.f32.gmra.mxu0 %v139
  %v177 = vpop.f32.mrf.mxu0
  %v178 = vadd.f32 %v141, %v177
  %179 = vmatmul.f32.gmra.mxu0 %v140
  %v180 = vpop.f32.mrf.mxu0
  %v181 = vadd.f32 %v141, %v180
  %182 = vdwg.mxu0
  %183 = vmatpush.msra.mxu0 0.0
  %184 = vmatpush.msra.mxu0 0.0
  %185 = vmatpush.msra.mxu0 0.0
  %186 = vmatpush.msra.mxu0 0.0
  %187 = vmatpush.msra.mxu0 0.0
  %188 = vmatpush.msra.mxu0 0.0
  %189 = vmatpush.msra.mxu0 0.0
  %190 = vmatpush.msra.mxu0 0.0
  %191 = vmatpush.msra.mxu0 %v59
  %192 = vmatpush.msra.mxu0 %v58
  %193 = vmatpush.msra.mxu0 %v57
  %194 = vmatpush.msra.mxu0 %v56
  %195 = vmatpush.msra.mxu0 %v55
  %196 = vmatpush.msra.mxu0 %v54
  %197 = vmatpush.msra.mxu0 %v53
  %198 = vmatpush.msra.mxu0 %v52
  %199 = vmatmul.f32.gmra.mxu0 %v143
  %v200 = vpop.f32.mrf.mxu0
  %v201 = vadd.f32 %v172, %v200
  %202 = vmatmul.f32.gmra.mxu0 %v146
  %v203 = vpop.f32.mrf.mxu0
  %v204 = vadd.f32 %v175, %v203
  %205 = vmatmul.f32.gmra.mxu0 %v149
  %v206 = vpop.f32.mrf.mxu0
  %v207 = vadd.f32 %v178, %v206
  %208 = vmatmul.f32.gmra.mxu0 %v152
  %v209 = vpop.f32.mrf.mxu0
  %v210 = vadd.f32 %v181, %v209
  %211 = vdwg.mxu0
  %v212 = vld [vmem:[%s2] sm:$0xff]
  %v213 = vld [vmem:[%s2 + $0x8] sm:$0xff]
  %v214 = vld [vmem:[%s2 + $0x10] sm:$0xff]
  %v215 = vld [vmem:[%s2 + $0x18] sm:$0xff]
  %v216 = vld [vmem:[%s2 + $0x20] sm:$0xff]
  %v217 = vld [vmem:[%s2 + $0x28] sm:$0xff]
  %v218 = vld [vmem:[%s2 + $0x30] sm:$0xff]
  %v219 = vld [vmem:[%s2 + $0x38] sm:$0xff]
  %v220 = vld [vmem:[%s2 + $0x40] sm:$0xff]
  %v221 = vld [vmem:[%s2 + $0x48] sm:$0xff]
  %v222 = vld [vmem:[%s2 + $0x50] sm:$0xff]
  %v223 = vld [vmem:[%s2 + $0x58] sm:$0xff]
  %v224 = vld [vmem:[%s2 + $0x60] sm:$0xff]
  %v225 = vld [vmem:[%s2 + $0x68] sm:$0xff]
  %v226 = vld [vmem:[%s2 + $0x70] sm:$0xff]
  %v227 = vld [vmem:[%s2 + $0x78] sm:$0xff]
  %v228 = vld [vmem:[%s2 + $0x80] sm:$0xff]
  %v229 = vld [vmem:[%s2 + $0x88] sm:$0xff]
  %v230 = vld [vmem:[%s2 + $0x90] sm:$0xff]
  %v231 = vld [vmem:[%s2 + $0x98] sm:$0xff]
  %v232 = vld [vmem:[%s2 + $0xa0] sm:$0xff]
  %v233 = vld [vmem:[%s2 + $0xa8] sm:$0xff]
  %v234 = vld [vmem:[%s2 + $0xb0] sm:$0xff]
  %v235 = vld [vmem:[%s2 + $0xb8] sm:$0xff]
  %v236 = vld [vmem:[%s2 + $0xc0] sm:$0xff]
  %v237 = vld [vmem:[%s2 + $0xc8] sm:$0xff]
  %v238 = vld [vmem:[%s2 + $0xd0] sm:$0xff]
  %v239 = vld [vmem:[%s2 + $0xd8] sm:$0xff]
  %v240 = vld [vmem:[%s2 + $0xe0] sm:$0xff]
  %v241 = vld [vmem:[%s2 + $0xe8] sm:$0xff]
  %v242 = vld [vmem:[%s2 + $0xf0] sm:$0xff]
  %v243 = vld [vmem:[%s2 + $0xf8] sm:$0xff]
  %244 = vmatpush.msra.mxu0 %v227
  %245 = vmatpush.msra.mxu0 %v226
  %246 = vmatpush.msra.mxu0 %v225
  %247 = vmatpush.msra.mxu0 %v224
  %248 = vmatpush.msra.mxu0 %v223
  %249 = vmatpush.msra.mxu0 %v222
  %250 = vmatpush.msra.mxu0 %v221
  %251 = vmatpush.msra.mxu0 %v220
  %252 = vmatpush.msra.mxu0 %v219
  %253 = vmatpush.msra.mxu0 %v218
  %254 = vmatpush.msra.mxu0 %v217
  %255 = vmatpush.msra.mxu0 %v216
  %256 = vmatpush.msra.mxu0 %v215
  %257 = vmatpush.msra.mxu0 %v214
  %258 = vmatpush.msra.mxu0 %v213
  %259 = vmatpush.msra.mxu0 %v212
  %260 = vmatmul.f32.gmra.mxu0 %v23
  %v261 = vpop.f32.mrf.mxu0
  %v262 = vadd.f32 0.0, %v261
  %263 = vmatmul.f32.gmra.mxu0 %v25
  %v264 = vpop.f32.mrf.mxu0
  %v265 = vadd.f32 0.0, %v264
  %266 = vmatmul.f32.gmra.mxu0 %v27
  %v267 = vpop.f32.mrf.mxu0
  %v268 = vadd.f32 0.0, %v267
  %269 = vmatmul.f32.gmra.mxu0 %v29
  %v270 = vpop.f32.mrf.mxu0
  %v271 = vadd.f32 0.0, %v270
  %272 = vdwg.mxu0
  %273 = vmatpush.msra.mxu0 %v243
  %274 = vmatpush.msra.mxu0 %v242
  %275 = vmatpush.msra.mxu0 %v241
  %276 = vmatpush.msra.mxu0 %v240
  %277 = vmatpush.msra.mxu0 %v239
  %278 = vmatpush.msra.mxu0 %v238
  %279 = vmatpush.msra.mxu0 %v237
  %280 = vmatpush.msra.mxu0 %v236
  %281 = vmatpush.msra.mxu0 %v235
  %282 = vmatpush.msra.mxu0 %v234
  %283 = vmatpush.msra.mxu0 %v233
  %284 = vmatpush.msra.mxu0 %v232
  %285 = vmatpush.msra.mxu0 %v231
  %286 = vmatpush.msra.mxu0 %v230
  %287 = vmatpush.msra.mxu0 %v229
  %288 = vmatpush.msra.mxu0 %v228
  %289 = vmatmul.f32.gmra.mxu0 %v24
  %v290 = vpop.f32.mrf.mxu0
  %v291 = vadd.f32 %v262, %v290
  %292 = vmatmul.f32.gmra.mxu0 %v26
  %v293 = vpop.f32.mrf.mxu0
  %v294 = vadd.f32 %v265, %v293
  %295 = vmatmul.f32.gmra.mxu0 %v28
  %v296 = vpop.f32.mrf.mxu0
  %v297 = vadd.f32 %v268, %v296
  %298 = vmatmul.f32.gmra.mxu0 %v30
  %v299 = vpop.f32.mrf.mxu0
  %v300 = vadd.f32 %v271, %v299
  %301 = vdwg.mxu0
  %s302 = scalar_lea.vmem %s2, 256
  %v303 = vld [vmem:[%s302] sm:$0xff]
  %v304 = vld [vmem:[%s302 + $0x8] sm:$0xff]
  %v305 = vld [vmem:[%s302 + $0x10] sm:$0xff]
  %v306 = vld [vmem:[%s302 + $0x18] sm:$0xff]
  %v307 = vld [vmem:[%s302 + $0x20] sm:$0xff]
  %v308 = vld [vmem:[%s302 + $0x28] sm:$0xff]
  %v309 = vld [vmem:[%s302 + $0x30] sm:$0xff]
  %v310 = vld [vmem:[%s302 + $0x38] sm:$0xff]
  %v311 = vld [vmem:[%s302 + $0x40] sm:$0xff]
  %v312 = vld [vmem:[%s302 + $0x48] sm:$0xff]
  %v313 = vld [vmem:[%s302 + $0x50] sm:$0xff]
  %v314 = vld [vmem:[%s302 + $0x58] sm:$0xff]
  %v315 = vld [vmem:[%s302 + $0x60] sm:$0xff]
  %v316 = vld [vmem:[%s302 + $0x68] sm:$0xff]
  %v317 = vld [vmem:[%s302 + $0x70] sm:$0xff]
  %v318 = vld [vmem:[%s302 + $0x78] sm:$0xff]
  %v319 = vld [vmem:[%s302 + $0x80] sm:$0xff]
  %v320 = vld [vmem:[%s302 + $0x88] sm:$0xff]
  %v321 = vld [vmem:[%s302 + $0x90] sm:$0xff]
  %v322 = vld [vmem:[%s302 + $0x98] sm:$0xff]
  %v323 = vld [vmem:[%s302 + $0xa0] sm:$0xff]
  %v324 = vld [vmem:[%s302 + $0xa8] sm:$0xff]
  %v325 = vld [vmem:[%s302 + $0xb0] sm:$0xff]
  %v326 = vld [vmem:[%s302 + $0xb8] sm:$0xff]
  %v327 = vld [vmem:[%s302 + $0xc0] sm:$0xff]
  %v328 = vld [vmem:[%s302 + $0xc8] sm:$0xff]
  %v329 = vld [vmem:[%s302 + $0xd0] sm:$0xff]
  %v330 = vld [vmem:[%s302 + $0xd8] sm:$0xff]
  %v331 = vld [vmem:[%s302 + $0xe0] sm:$0xff]
  %v332 = vld [vmem:[%s302 + $0xe8] sm:$0xff]
  %v333 = vld [vmem:[%s302 + $0xf0] sm:$0xff]
  %v334 = vld [vmem:[%s302 + $0xf8] sm:$0xff]
  %335 = vmatpush.msra.mxu0 %v318
  %336 = vmatpush.msra.mxu0 %v317
  %337 = vmatpush.msra.mxu0 %v316
  %338 = vmatpush.msra.mxu0 %v315
  %339 = vmatpush.msra.mxu0 %v314
  %340 = vmatpush.msra.mxu0 %v313
  %341 = vmatpush.msra.mxu0 %v312
  %342 = vmatpush.msra.mxu0 %v311
  %343 = vmatpush.msra.mxu0 %v310
  %344 = vmatpush.msra.mxu0 %v309
  %345 = vmatpush.msra.mxu0 %v308
  %346 = vmatpush.msra.mxu0 %v307
  %347 = vmatpush.msra.mxu0 %v306
  %348 = vmatpush.msra.mxu0 %v305
  %349 = vmatpush.msra.mxu0 %v304
  %350 = vmatpush.msra.mxu0 %v303
  %351 = vmatmul.f32.gmra.mxu0 %v23
  %v352 = vpop.f32.mrf.mxu0
  %v353 = vadd.f32 0.0, %v352
  %354 = vmatmul.f32.gmra.mxu0 %v25
  %v355 = vpop.f32.mrf.mxu0
  %v356 = vadd.f32 0.0, %v355
  %357 = vmatmul.f32.gmra.mxu0 %v27
  %v358 = vpop.f32.mrf.mxu0
  %v359 = vadd.f32 0.0, %v358
  %360 = vmatmul.f32.gmra.mxu0 %v29
  %v361 = vpop.f32.mrf.mxu0
  %v362 = vadd.f32 0.0, %v361
  %363 = vdwg.mxu0
  %364 = vmatpush.msra.mxu0 %v334
  %365 = vmatpush.msra.mxu0 %v333
  %366 = vmatpush.msra.mxu0 %v332
  %367 = vmatpush.msra.mxu0 %v331
  %368 = vmatpush.msra.mxu0 %v330
  %369 = vmatpush.msra.mxu0 %v329
  %370 = vmatpush.msra.mxu0 %v328
  %371 = vmatpush.msra.mxu0 %v327
  %372 = vmatpush.msra.mxu0 %v326
  %373 = vmatpush.msra.mxu0 %v325
  %374 = vmatpush.msra.mxu0 %v324
  %375 = vmatpush.msra.mxu0 %v323
  %376 = vmatpush.msra.mxu0 %v322
  %377 = vmatpush.msra.mxu0 %v321
  %378 = vmatpush.msra.mxu0 %v320
  %379 = vmatpush.msra.mxu0 %v319
  %380 = vmatmul.f32.gmra.mxu0 %v24
  %v381 = vpop.f32.mrf.mxu0
  %v382 = vadd.f32 %v353, %v381
  %383 = vmatmul.f32.gmra.mxu0 %v26
  %v384 = vpop.f32.mrf.mxu0
  %v385 = vadd.f32 %v356, %v384
  %386 = vmatmul.f32.gmra.mxu0 %v28
  %v387 = vpop.f32.mrf.mxu0
  %v388 = vadd.f32 %v359, %v387
  %389 = vmatmul.f32.gmra.mxu0 %v30
  %v390 = vpop.f32.mrf.mxu0
  %v391 = vadd.f32 %v362, %v390
  %392 = vdwg.mxu0
  %s393 = scalar_lea.vmem %s2, 512
  %v394 = vld [vmem:[%s393] sm:$0xff]
  %v395 = vld [vmem:[%s393 + $0x8] sm:$0xff]
  %v396 = vld [vmem:[%s393 + $0x10] sm:$0xff]
  %v397 = vld [vmem:[%s393 + $0x18] sm:$0xff]
  %v398 = vld [vmem:[%s393 + $0x20] sm:$0xff]
  %v399 = vld [vmem:[%s393 + $0x28] sm:$0xff]
  %v400 = vld [vmem:[%s393 + $0x30] sm:$0xff]
  %v401 = vld [vmem:[%s393 + $0x38] sm:$0xff]
  %v402 = vld [vmem:[%s393 + $0x40] sm:$0xff]
  %v403 = vld [vmem:[%s393 + $0x48] sm:$0xff]
  %v404 = vld [vmem:[%s393 + $0x50] sm:$0xff]
  %v405 = vld [vmem:[%s393 + $0x58] sm:$0xff]
  %v406 = vld [vmem:[%s393 + $0x60] sm:$0xff]
  %v407 = vld [vmem:[%s393 + $0x68] sm:$0xff]
  %v408 = vld [vmem:[%s393 + $0x70] sm:$0xff]
  %v409 = vld [vmem:[%s393 + $0x78] sm:$0xff]
  %v410 = vld [vmem:[%s393 + $0x80] sm:$0xff]
  %v411 = vld [vmem:[%s393 + $0x88] sm:$0xff]
  %v412 = vld [vmem:[%s393 + $0x90] sm:$0xff]
  %v413 = vld [vmem:[%s393 + $0x98] sm:$0xff]
  %v414 = vld [vmem:[%s393 + $0xa0] sm:$0xff]
  %v415 = vld [vmem:[%s393 + $0xa8] sm:$0xff]
  %v416 = vld [vmem:[%s393 + $0xb0] sm:$0xff]
  %v417 = vld [vmem:[%s393 + $0xb8] sm:$0xff]
  %v418 = vld [vmem:[%s393 + $0xc0] sm:$0xff]
  %v419 = vld [vmem:[%s393 + $0xc8] sm:$0xff]
  %v420 = vld [vmem:[%s393 + $0xd0] sm:$0xff]
  %v421 = vld [vmem:[%s393 + $0xd8] sm:$0xff]
  %v422 = vld [vmem:[%s393 + $0xe0] sm:$0xff]
  %v423 = vld [vmem:[%s393 + $0xe8] sm:$0xff]
  %v424 = vld [vmem:[%s393 + $0xf0] sm:$0xff]
  %v425 = vld [vmem:[%s393 + $0xf8] sm:$0xff]
  %426 = vmatpush.msra.mxu0 %v409
  %427 = vmatpush.msra.mxu0 %v408
  %428 = vmatpush.msra.mxu0 %v407
  %429 = vmatpush.msra.mxu0 %v406
  %430 = vmatpush.msra.mxu0 %v405
  %431 = vmatpush.msra.mxu0 %v404
  %432 = vmatpush.msra.mxu0 %v403
  %433 = vmatpush.msra.mxu0 %v402
  %434 = vmatpush.msra.mxu0 %v401
  %435 = vmatpush.msra.mxu0 %v400
  %436 = vmatpush.msra.mxu0 %v399
  %437 = vmatpush.msra.mxu0 %v398
  %438 = vmatpush.msra.mxu0 %v397
  %439 = vmatpush.msra.mxu0 %v396
  %440 = vmatpush.msra.mxu0 %v395
  %441 = vmatpush.msra.mxu0 %v394
  %442 = vmatmul.f32.gmra.mxu0 %v23
  %v443 = vpop.f32.mrf.mxu0
  %v444 = vadd.f32 0.0, %v443
  %445 = vmatmul.f32.gmra.mxu0 %v25
  %v446 = vpop.f32.mrf.mxu0
  %v447 = vadd.f32 0.0, %v446
  %448 = vmatmul.f32.gmra.mxu0 %v27
  %v449 = vpop.f32.mrf.mxu0
  %v450 = vadd.f32 0.0, %v449
  %451 = vmatmul.f32.gmra.mxu0 %v29
  %v452 = vpop.f32.mrf.mxu0
  %v453 = vadd.f32 0.0, %v452
  %454 = vdwg.mxu0
  %455 = vmatpush.msra.mxu0 %v425
  %456 = vmatpush.msra.mxu0 %v424
  %457 = vmatpush.msra.mxu0 %v423
  %458 = vmatpush.msra.mxu0 %v422
  %459 = vmatpush.msra.mxu0 %v421
  %460 = vmatpush.msra.mxu0 %v420
  %461 = vmatpush.msra.mxu0 %v419
  %462 = vmatpush.msra.mxu0 %v418
  %463 = vmatpush.msra.mxu0 %v417
  %464 = vmatpush.msra.mxu0 %v416
  %465 = vmatpush.msra.mxu0 %v415
  %466 = vmatpush.msra.mxu0 %v414
  %467 = vmatpush.msra.mxu0 %v413
  %468 = vmatpush.msra.mxu0 %v412
  %469 = vmatpush.msra.mxu0 %v411
  %470 = vmatpush.msra.mxu0 %v410
  %471 = vmatmul.f32.gmra.mxu0 %v24
  %v472 = vpop.f32.mrf.mxu0
  %v473 = vadd.f32 %v444, %v472
  %474 = vmatmul.f32.gmra.mxu0 %v26
  %v475 = vpop.f32.mrf.mxu0
  %v476 = vadd.f32 %v447, %v475
  %477 = vmatmul.f32.gmra.mxu0 %v28
  %v478 = vpop.f32.mrf.mxu0
  %v479 = vadd.f32 %v450, %v478
  %480 = vmatmul.f32.gmra.mxu0 %v30
  %v481 = vpop.f32.mrf.mxu0
  %v482 = vadd.f32 %v453, %v481
  %483 = vdwg.mxu0
  %v484 = vrot.slane %v291, 7
  %v485 = vrot.slane %v294, 7
  %v486 = vrot.slane %v297, 7
  %v487 = vrot.slane %v300, 7
  %v488 = vsel %vm66, %v486, %v487
  %v489 = vsel %vm66, %v485, %v486
  %v490 = vsel %vm66, %v484, %v485
  %v491 = vsel %vm66, %v487, %v484
  %v492 = vmul.f32 %v491, %v74
  %v493 = vmul.f32 %v490, %v79
  %v494 = vmul.f32 %v489, %v84
  %v495 = vmul.f32 %v488, %v89
  %v496 = vadd.f32 %v492, %v382
  %v497 = vadd.f32 %v493, %v385
  %v498 = vadd.f32 %v494, %v388
  %v499 = vadd.f32 %v495, %v391
  %v500 = vrot.slane %v473, 1
  %v501 = vrot.slane %v476, 1
  %v502 = vrot.slane %v479, 1
  %v503 = vrot.slane %v482, 1
  %v504 = vsel %vm99, %v502, %v503
  %v505 = vsel %vm99, %v501, %v502
  %v506 = vsel %vm99, %v500, %v501
  %v507 = vsel %vm99, %v503, %v500
  %v508 = vmul.f32 %v506, %v106
  %v509 = vmul.f32 %v505, %v110
  %v510 = vmul.f32 %v504, %v114
  %v511 = vmul.f32 %v507, %v118
  %v512 = vadd.f32 %v496, %v508
  %v513 = vadd.f32 %v497, %v509
  %v514 = vadd.f32 %v498, %v510
  %v515 = vadd.f32 %v499, %v511
  %v516 = vperm.slane %v35, 1
  %v517 = vadd.f32 %v512, %v516
  %v518 = vadd.f32 %v513, %v516
  %v519 = vadd.f32 %v514, %v516
  %v520 = vadd.f32 %v515, %v516
  %v521 = vadd.f32 %v201, %v517
  %v522 = vadd.f32 %v204, %v518
  %v523 = vadd.f32 %v207, %v519
  %v524 = vadd.f32 %v210, %v520
  %v525 = vmul.f32 %v521, 0.1
  %v526 = vmul.f32 %v522, 0.1
  %v527 = vmul.f32 %v523, 0.1
  %v528 = vmul.f32 %v524, 0.1
  %v529 = vmax.f32 %v521, %v525
  %v530 = vmax.f32 %v522, %v526
  %v531 = vmax.f32 %v523, %v527
  %v532 = vmax.f32 %v524, %v528
  %s533 = scalar_lea.vmem %s1, 192
  %v534 = vld [vmem:[%s533] sm:$0xff]
  %v535 = vld [vmem:[%s533 + $0x8] sm:$0xff]
  %v536 = vld [vmem:[%s533 + $0x10] sm:$0xff]
  %v537 = vld [vmem:[%s533 + $0x18] sm:$0xff]
  %v538 = vld [vmem:[%s533 + $0x20] sm:$0xff]
  %v539 = vld [vmem:[%s533 + $0x28] sm:$0xff]
  %v540 = vld [vmem:[%s533 + $0x30] sm:$0xff]
  %v541 = vld [vmem:[%s533 + $0x38] sm:$0xff]
  %v542 = vld [vmem:[%s533 + $0x40] sm:$0xff]
  %v543 = vld [vmem:[%s533 + $0x48] sm:$0xff]
  %v544 = vld [vmem:[%s533 + $0x50] sm:$0xff]
  %v545 = vld [vmem:[%s533 + $0x58] sm:$0xff]
  %v546 = vld [vmem:[%s533 + $0x60] sm:$0xff]
  %v547 = vld [vmem:[%s533 + $0x68] sm:$0xff]
  %v548 = vld [vmem:[%s533 + $0x70] sm:$0xff]
  %v549 = vld [vmem:[%s533 + $0x78] sm:$0xff]
  %v550 = vld [vmem:[%s533 + $0x80] sm:$0xff]
  %v551 = vld [vmem:[%s533 + $0x88] sm:$0xff]
  %v552 = vld [vmem:[%s533 + $0x90] sm:$0xff]
  %v553 = vld [vmem:[%s533 + $0x98] sm:$0xff]
  %v554 = vld [vmem:[%s533 + $0xa0] sm:$0xff]
  %v555 = vld [vmem:[%s533 + $0xa8] sm:$0xff]
  %v556 = vld [vmem:[%s533 + $0xb0] sm:$0xff]
  %v557 = vld [vmem:[%s533 + $0xb8] sm:$0xff]
  %v558 = vrot.slane %v529, 7
  %v559 = vrot.slane %v530, 7
  %v560 = vrot.slane %v531, 7
  %v561 = vrot.slane %v532, 7
  %v562 = vsel %vm66, %v560, %v561
  %v563 = vsel %vm66, %v559, %v560
  %v564 = vsel %vm66, %v558, %v559
  %v565 = vsel %vm66, %v561, %v558
  %v566 = vmul.f32 %v565, %v74
  %v567 = vmul.f32 %v564, %v79
  %v568 = vmul.f32 %v563, %v84
  %v569 = vmul.f32 %v562, %v89
  %v570 = vrot.slane %v529, 1
  %v571 = vrot.slane %v530, 1
  %v572 = vrot.slane %v531, 1
  %v573 = vrot.slane %v532, 1
  %v574 = vsel %vm99, %v572, %v573
  %v575 = vsel %vm99, %v571, %v572
  %v576 = vsel %vm99, %v570, %v571
  %v577 = vsel %vm99, %v573, %v570
  %v578 = vmul.f32 %v576, %v106
  %v579 = vmul.f32 %v575, %v110
  %v580 = vmul.f32 %v574, %v114
  %v581 = vmul.f32 %v577, %v118
  %586 = vrot.lane.b32.xlu0 %v529, 64
  %v587 = vpop.permute.xlu0 %586
  %588 = vrot.lane.b32.xlu0 %v530, 64
  %v589 = vpop.permute.xlu0 %588
  %590 = vrot.lane.b32.xlu0 %v531, 64
  %v591 = vpop.permute.xlu0 %590
  %592 = vrot.lane.b32.xlu0 %v532, 64
  %v593 = vpop.permute.xlu0 %592
  %v598 = vsel %vm136, %v566, %v587
  %v599 = vsel %vm136, %v567, %v589
  %v600 = vsel %vm136, %v568, %v591
  %v601 = vsel %vm136, %v569, %v593
  %v602 = vperm.slane %v35, 2
  %v604 = vsel %vm136, %v578, 0
  %v607 = vsel %vm136, %v579, 0
  %v610 = vsel %vm136, %v580, 0
  %v613 = vsel %vm136, %v581, 0
  %615 = vmatpush.msra.mxu0 %v549
  %616 = vmatpush.msra.mxu0 %v548
  %617 = vmatpush.msra.mxu0 %v547
  %618 = vmatpush.msra.mxu0 %v546
  %619 = vmatpush.msra.mxu0 %v545
  %620 = vmatpush.msra.mxu0 %v544
  %621 = vmatpush.msra.mxu0 %v543
  %622 = vmatpush.msra.mxu0 %v542
  %623 = vmatpush.msra.mxu0 %v541
  %624 = vmatpush.msra.mxu0 %v540
  %625 = vmatpush.msra.mxu0 %v539
  %626 = vmatpush.msra.mxu0 %v538
  %627 = vmatpush.msra.mxu0 %v537
  %628 = vmatpush.msra.mxu0 %v536
  %629 = vmatpush.msra.mxu0 %v535
  %630 = vmatpush.msra.mxu0 %v534
  %631 = vmatmul.f32.gmra.mxu0 %v598
  %v632 = vpop.f32.mrf.mxu0
  %v633 = vadd.f32 %v602, %v632
  %634 = vmatmul.f32.gmra.mxu0 %v599
  %v635 = vpop.f32.mrf.mxu0
  %v636 = vadd.f32 %v602, %v635
  %637 = vmatmul.f32.gmra.mxu0 %v600
  %v638 = vpop.f32.mrf.mxu0
  %v639 = vadd.f32 %v602, %v638
  %640 = vmatmul.f32.gmra.mxu0 %v601
  %v641 = vpop.f32.mrf.mxu0
  %v642 = vadd.f32 %v602, %v641
  %643 = vdwg.mxu0
  %644 = vmatpush.msra.mxu0 0.0
  %645 = vmatpush.msra.mxu0 0.0
  %646 = vmatpush.msra.mxu0 0.0
  %647 = vmatpush.msra.mxu0 0.0
  %648 = vmatpush.msra.mxu0 0.0
  %649 = vmatpush.msra.mxu0 0.0
  %650 = vmatpush.msra.mxu0 0.0
  %651 = vmatpush.msra.mxu0 0.0
  %652 = vmatpush.msra.mxu0 %v557
  %653 = vmatpush.msra.mxu0 %v556
  %654 = vmatpush.msra.mxu0 %v555
  %655 = vmatpush.msra.mxu0 %v554
  %656 = vmatpush.msra.mxu0 %v553
  %657 = vmatpush.msra.mxu0 %v552
  %658 = vmatpush.msra.mxu0 %v551
  %659 = vmatpush.msra.mxu0 %v550
  %660 = vmatmul.f32.gmra.mxu0 %v604
  %v661 = vpop.f32.mrf.mxu0
  %v662 = vadd.f32 %v633, %v661
  %663 = vmatmul.f32.gmra.mxu0 %v607
  %v664 = vpop.f32.mrf.mxu0
  %v665 = vadd.f32 %v636, %v664
  %666 = vmatmul.f32.gmra.mxu0 %v610
  %v667 = vpop.f32.mrf.mxu0
  %v668 = vadd.f32 %v639, %v667
  %669 = vmatmul.f32.gmra.mxu0 %v613
  %v670 = vpop.f32.mrf.mxu0
  %v671 = vadd.f32 %v642, %v670
  %672 = vdwg.mxu0
  %v673 = vadd.f32 %v662, %v201
  %v674 = vadd.f32 %v665, %v204
  %v675 = vadd.f32 %v668, %v207
  %v676 = vadd.f32 %v671, %v210
  %v677 = vmul.f32 %v517, 0.1
  %v678 = vmul.f32 %v518, 0.1
  %v679 = vmul.f32 %v519, 0.1
  %v680 = vmul.f32 %v520, 0.1
  %v681 = vmax.f32 %v517, %v677
  %v682 = vmax.f32 %v518, %v678
  %v683 = vmax.f32 %v519, %v679
  %v684 = vmax.f32 %v520, %v680
  %v685 = vld [vmem:[%s3] sm:$0xff]
  %v686 = vld [vmem:[%s3 + $0x8] sm:$0xff]
  %v687 = vld [vmem:[%s3 + $0x10] sm:$0xff]
  %v688 = vld [vmem:[%s3 + $0x18] sm:$0xff]
  %v689 = vld [vmem:[%s3 + $0x20] sm:$0xff]
  %v690 = vld [vmem:[%s3 + $0x28] sm:$0xff]
  %v691 = vld [vmem:[%s3 + $0x30] sm:$0xff]
  %v692 = vld [vmem:[%s3 + $0x38] sm:$0xff]
  %v693 = vld [vmem:[%s3 + $0x40] sm:$0xff]
  %v694 = vld [vmem:[%s3 + $0x48] sm:$0xff]
  %v695 = vld [vmem:[%s3 + $0x50] sm:$0xff]
  %v696 = vld [vmem:[%s3 + $0x58] sm:$0xff]
  %v697 = vld [vmem:[%s3 + $0x60] sm:$0xff]
  %v698 = vld [vmem:[%s3 + $0x68] sm:$0xff]
  %v699 = vld [vmem:[%s3 + $0x70] sm:$0xff]
  %v700 = vld [vmem:[%s3 + $0x78] sm:$0xff]
  %v701 = vld [vmem:[%s3 + $0x80] sm:$0xff]
  %v702 = vld [vmem:[%s3 + $0x88] sm:$0xff]
  %v703 = vld [vmem:[%s3 + $0x90] sm:$0xff]
  %v704 = vld [vmem:[%s3 + $0x98] sm:$0xff]
  %v705 = vld [vmem:[%s3 + $0xa0] sm:$0xff]
  %v706 = vld [vmem:[%s3 + $0xa8] sm:$0xff]
  %v707 = vld [vmem:[%s3 + $0xb0] sm:$0xff]
  %v708 = vld [vmem:[%s3 + $0xb8] sm:$0xff]
  %v709 = vld [vmem:[%s3 + $0xc0] sm:$0xff]
  %v710 = vld [vmem:[%s3 + $0xc8] sm:$0xff]
  %v711 = vld [vmem:[%s3 + $0xd0] sm:$0xff]
  %v712 = vld [vmem:[%s3 + $0xd8] sm:$0xff]
  %v713 = vld [vmem:[%s3 + $0xe0] sm:$0xff]
  %v714 = vld [vmem:[%s3 + $0xe8] sm:$0xff]
  %v715 = vld [vmem:[%s3 + $0xf0] sm:$0xff]
  %v716 = vld [vmem:[%s3 + $0xf8] sm:$0xff]
  %v717 = vld [vmem:[%s3 + $0x100] sm:$0xff]
  %v718 = vld [vmem:[%s3 + $0x108] sm:$0xff]
  %v719 = vld [vmem:[%s3 + $0x110] sm:$0xff]
  %v720 = vld [vmem:[%s3 + $0x118] sm:$0xff]
  %v721 = vld [vmem:[%s3 + $0x120] sm:$0xff]
  %v722 = vld [vmem:[%s3 + $0x128] sm:$0xff]
  %v723 = vld [vmem:[%s3 + $0x130] sm:$0xff]
  %v724 = vld [vmem:[%s3 + $0x138] sm:$0xff]
  %v725 = vld [vmem:[%s3 + $0x140] sm:$0xff]
  %v726 = vld [vmem:[%s3 + $0x148] sm:$0xff]
  %v727 = vld [vmem:[%s3 + $0x150] sm:$0xff]
  %v728 = vld [vmem:[%s3 + $0x158] sm:$0xff]
  %v729 = vld [vmem:[%s3 + $0x160] sm:$0xff]
  %v730 = vld [vmem:[%s3 + $0x168] sm:$0xff]
  %v731 = vld [vmem:[%s3 + $0x170] sm:$0xff]
  %v732 = vld [vmem:[%s3 + $0x178] sm:$0xff]
  %v733 = vrot.slane %v681, 7
  %v734 = vrot.slane %v682, 7
  %v735 = vrot.slane %v683, 7
  %v736 = vrot.slane %v684, 7
  %v737 = vsel %vm66, %v735, %v736
  %v738 = vsel %vm66, %v734, %v735
  %v739 = vsel %vm66, %v733, %v734
  %v740 = vsel %vm66, %v736, %v733
  %v741 = vmul.f32 %v740, %v74
  %v742 = vmul.f32 %v739, %v79
  %v743 = vmul.f32 %v738, %v84
  %v744 = vmul.f32 %v737, %v89
  %v745 = vrot.slane %v681, 1
  %v746 = vrot.slane %v682, 1
  %v747 = vrot.slane %v683, 1
  %v748 = vrot.slane %v684, 1
  %v749 = vsel %vm99, %v747, %v748
  %v750 = vsel %vm99, %v746, %v747
  %v751 = vsel %vm99, %v745, %v746
  %v752 = vsel %vm99, %v748, %v745
  %v753 = vmul.f32 %v751, %v106
  %v754 = vmul.f32 %v750, %v110
  %v755 = vmul.f32 %v749, %v114
  %v756 = vmul.f32 %v752, %v118
  %761 = vrot.lane.b32.xlu0 %v681, 64
  %v762 = vpop.permute.xlu0 %761
  %763 = vrot.lane.b32.xlu0 %v682, 64
  %v764 = vpop.permute.xlu0 %763
  %765 = vrot.lane.b32.xlu0 %v683, 64
  %v766 = vpop.permute.xlu0 %765
  %767 = vrot.lane.b32.xlu0 %v684, 64
  %v768 = vpop.permute.xlu0 %767
  %v773 = vsel %vm136, %v741, %v762
  %v774 = vsel %vm136, %v742, %v764
  %v775 = vsel %vm136, %v743, %v766
  %v776 = vsel %vm136, %v744, %v768
  %v778 = vperm.slane %v35, 3
  %v779 = vperm.slane %v35, 7
  %v782 = vperm.slane %v778, 3
  %v783 = vperm.slane %v779, 3
  %v785 = vsel %vm136, %v753, 0
  %v788 = vsel %vm136, %v754, 0
  %v791 = vsel %vm136, %v755, 0
  %v794 = vsel %vm136, %v756, 0
  %796 = vmatpush.msra.mxu0 %v715
  %797 = vmatpush.msra.mxu0 %v713
  %798 = vmatpush.msra.mxu0 %v711
  %799 = vmatpush.msra.mxu0 %v709
  %800 = vmatpush.msra.mxu0 %v707
  %801 = vmatpush.msra.mxu0 %v705
  %802 = vmatpush.msra.mxu0 %v703
  %803 = vmatpush.msra.mxu0 %v701
  %804 = vmatpush.msra.mxu0 %v699
  %805 = vmatpush.msra.mxu0 %v697
  %806 = vmatpush.msra.mxu0 %v695
  %807 = vmatpush.msra.mxu0 %v693
  %808 = vmatpush.msra.mxu0 %v691
  %809 = vmatpush.msra.mxu0 %v689
  %810 = vmatpush.msra.mxu0 %v687
  %811 = vmatpush.msra.mxu0 %v685
  %812 = vmatmul.f32.gmra.mxu0 %v773
  %v813 = vpop.f32.mrf.mxu0
  %v814 = vadd.f32 %v782, %v813
  %815 = vmatmul.f32.gmra.mxu0 %v774
  %v816 = vpop.f32.mrf.mxu0
  %v817 = vadd.f32 %v782, %v816
  %818 = vmatmul.f32.gmra.mxu0 %v775
  %v819 = vpop.f32.mrf.mxu0
  %v820 = vadd.f32 %v782, %v819
  %821 = vmatmul.f32.gmra.mxu0 %v776
  %v822 = vpop.f32.mrf.mxu0
  %v823 = vadd.f32 %v782, %v822
  %824 = vdwg.mxu0
  %825 = vmatpush.msra.mxu0 0.0
  %826 = vmatpush.msra.mxu0 0.0
  %827 = vmatpush.msra.mxu0 0.0
  %828 = vmatpush.msra.mxu0 0.0
  %829 = vmatpush.msra.mxu0 0.0
  %830 = vmatpush.msra.mxu0 0.0
  %831 = vmatpush.msra.mxu0 0.0
  %832 = vmatpush.msra.mxu0 0.0
  %833 = vmatpush.msra.mxu0 %v731
  %834 = vmatpush.msra.mxu0 %v729
  %835 = vmatpush.msra.mxu0 %v727
  %836 = vmatpush.msra.mxu0 %v725
  %837 = vmatpush.msra.mxu0 %v723
  %838 = vmatpush.msra.mxu0 %v721
  %839 = vmatpush.msra.mxu0 %v719
  %840 = vmatpush.msra.mxu0 %v717
  %841 = vmatmul.f32.gmra.mxu0 %v785
  %v842 = vpop.f32.mrf.mxu0
  %v843 = vadd.f32 %v814, %v842
  %844 = vmatmul.f32.gmra.mxu0 %v788
  %v845 = vpop.f32.mrf.mxu0
  %v846 = vadd.f32 %v817, %v845
  %847 = vmatmul.f32.gmra.mxu0 %v791
  %v848 = vpop.f32.mrf.mxu0
  %v849 = vadd.f32 %v820, %v848
  %850 = vmatmul.f32.gmra.mxu0 %v794
  %v851 = vpop.f32.mrf.mxu0
  %v852 = vadd.f32 %v823, %v851
  %853 = vdwg.mxu0
  %854 = vmatpush.msra.mxu0 %v716
  %855 = vmatpush.msra.mxu0 %v714
  %856 = vmatpush.msra.mxu0 %v712
  %857 = vmatpush.msra.mxu0 %v710
  %858 = vmatpush.msra.mxu0 %v708
  %859 = vmatpush.msra.mxu0 %v706
  %860 = vmatpush.msra.mxu0 %v704
  %861 = vmatpush.msra.mxu0 %v702
  %862 = vmatpush.msra.mxu0 %v700
  %863 = vmatpush.msra.mxu0 %v698
  %864 = vmatpush.msra.mxu0 %v696
  %865 = vmatpush.msra.mxu0 %v694
  %866 = vmatpush.msra.mxu0 %v692
  %867 = vmatpush.msra.mxu0 %v690
  %868 = vmatpush.msra.mxu0 %v688
  %869 = vmatpush.msra.mxu0 %v686
  %870 = vmatmul.f32.gmra.mxu0 %v773
  %v871 = vpop.f32.mrf.mxu0
  %v872 = vadd.f32 %v783, %v871
  %873 = vmatmul.f32.gmra.mxu0 %v774
  %v874 = vpop.f32.mrf.mxu0
  %v875 = vadd.f32 %v783, %v874
  %876 = vmatmul.f32.gmra.mxu0 %v775
  %v877 = vpop.f32.mrf.mxu0
  %v878 = vadd.f32 %v783, %v877
  %879 = vmatmul.f32.gmra.mxu0 %v776
  %v880 = vpop.f32.mrf.mxu0
  %v881 = vadd.f32 %v783, %v880
  %882 = vdwg.mxu0
  %883 = vmatpush.msra.mxu0 0.0
  %884 = vmatpush.msra.mxu0 0.0
  %885 = vmatpush.msra.mxu0 0.0
  %886 = vmatpush.msra.mxu0 0.0
  %887 = vmatpush.msra.mxu0 0.0
  %888 = vmatpush.msra.mxu0 0.0
  %889 = vmatpush.msra.mxu0 0.0
  %890 = vmatpush.msra.mxu0 0.0
  %891 = vmatpush.msra.mxu0 %v732
  %892 = vmatpush.msra.mxu0 %v730
  %893 = vmatpush.msra.mxu0 %v728
  %894 = vmatpush.msra.mxu0 %v726
  %895 = vmatpush.msra.mxu0 %v724
  %896 = vmatpush.msra.mxu0 %v722
  %897 = vmatpush.msra.mxu0 %v720
  %898 = vmatpush.msra.mxu0 %v718
  %899 = vmatmul.f32.gmra.mxu0 %v785
  %v900 = vpop.f32.mrf.mxu0
  %v901 = vadd.f32 %v872, %v900
  %902 = vmatmul.f32.gmra.mxu0 %v788
  %v903 = vpop.f32.mrf.mxu0
  %v904 = vadd.f32 %v875, %v903
  %905 = vmatmul.f32.gmra.mxu0 %v791
  %v906 = vpop.f32.mrf.mxu0
  %v907 = vadd.f32 %v878, %v906
  %908 = vmatmul.f32.gmra.mxu0 %v794
  %v909 = vpop.f32.mrf.mxu0
  %v910 = vadd.f32 %v881, %v909
  %911 = vdwg.mxu0
  %v912 = vadd.f32 %v843, %v23
  %v913 = vadd.f32 %v901, %v24
  %v914 = vadd.f32 %v846, %v25
  %v915 = vadd.f32 %v904, %v26
  %v916 = vadd.f32 %v849, %v27
  %v917 = vadd.f32 %v907, %v28
  %v918 = vadd.f32 %v852, %v29
  %v919 = vadd.f32 %v910, %v30
  %920 = vset.pattern.permute.xlu0 64
  %921 = vperm.xlu0 %920, %v31
  %v922 = vpop.permute.xlu0 %921
  %924 = vset.pattern.permute.xlu0 64
  %925 = vperm.xlu0 %924, %v32
  %v926 = vpop.permute.xlu0 %925
  %928 = vset.pattern.permute.xlu0 64
  %929 = vperm.xlu0 %928, %v33
  %v930 = vpop.permute.xlu0 %929
  %932 = vset.pattern.permute.xlu0 64
  %933 = vperm.xlu0 %932, %v34
  %v934 = vpop.permute.xlu0 %933
  %v936 = vmul.f32 %v673, %v922
  %v937 = vmul.f32 %v674, %v926
  %v938 = vmul.f32 %v675, %v930
  %v939 = vmul.f32 %v676, %v934
  %v940 = vmul.f32 %v912, %v922
  %v941 = vmul.f32 %v913, %v922
  %v942 = vmul.f32 %v914, %v926
  %v943 = vmul.f32 %v915, %v926
  %v944 = vmul.f32 %v916, %v930
  %v945 = vmul.f32 %v917, %v930
  %v946 = vmul.f32 %v918, %v934
  %v947 = vmul.f32 %v919, %v934
  %s948 = scalar_lea.vmem %s4, 8
  %v949 = vld [vmem:[%s948] sm:$0xff]
  %s950 = scalar_lea.vmem %s1, 384
  %v951 = vld [vmem:[%s950] sm:$0xff]
  %v952 = vld [vmem:[%s950 + $0x8] sm:$0xff]
  %v953 = vld [vmem:[%s950 + $0x10] sm:$0xff]
  %v954 = vld [vmem:[%s950 + $0x18] sm:$0xff]
  %v955 = vld [vmem:[%s950 + $0x20] sm:$0xff]
  %v956 = vld [vmem:[%s950 + $0x28] sm:$0xff]
  %v957 = vld [vmem:[%s950 + $0x30] sm:$0xff]
  %v958 = vld [vmem:[%s950 + $0x38] sm:$0xff]
  %v959 = vld [vmem:[%s950 + $0x40] sm:$0xff]
  %v960 = vld [vmem:[%s950 + $0x48] sm:$0xff]
  %v961 = vld [vmem:[%s950 + $0x50] sm:$0xff]
  %v962 = vld [vmem:[%s950 + $0x58] sm:$0xff]
  %v963 = vld [vmem:[%s950 + $0x60] sm:$0xff]
  %v964 = vld [vmem:[%s950 + $0x68] sm:$0xff]
  %v965 = vld [vmem:[%s950 + $0x70] sm:$0xff]
  %v966 = vld [vmem:[%s950 + $0x78] sm:$0xff]
  %v967 = vld [vmem:[%s950 + $0x80] sm:$0xff]
  %v968 = vld [vmem:[%s950 + $0x88] sm:$0xff]
  %v969 = vld [vmem:[%s950 + $0x90] sm:$0xff]
  %v970 = vld [vmem:[%s950 + $0x98] sm:$0xff]
  %v971 = vld [vmem:[%s950 + $0xa0] sm:$0xff]
  %v972 = vld [vmem:[%s950 + $0xa8] sm:$0xff]
  %v973 = vld [vmem:[%s950 + $0xb0] sm:$0xff]
  %v974 = vld [vmem:[%s950 + $0xb8] sm:$0xff]
  %v975 = vrot.slane %v936, 7
  %v976 = vrot.slane %v937, 7
  %v977 = vrot.slane %v938, 7
  %v978 = vrot.slane %v939, 7
  %v979 = vsel %vm66, %v977, %v978
  %v980 = vsel %vm66, %v976, %v977
  %v981 = vsel %vm66, %v975, %v976
  %v982 = vsel %vm66, %v978, %v975
  %v983 = vmul.f32 %v982, %v74
  %v984 = vmul.f32 %v981, %v79
  %v985 = vmul.f32 %v980, %v84
  %v986 = vmul.f32 %v979, %v89
  %v987 = vrot.slane %v936, 1
  %v988 = vrot.slane %v937, 1
  %v989 = vrot.slane %v938, 1
  %v990 = vrot.slane %v939, 1
  %v991 = vsel %vm99, %v989, %v990
  %v992 = vsel %vm99, %v988, %v989
  %v993 = vsel %vm99, %v987, %v988
  %v994 = vsel %vm99, %v990, %v987
  %v995 = vmul.f32 %v993, %v106
  %v996 = vmul.f32 %v992, %v110
  %v997 = vmul.f32 %v991, %v114
  %v998 = vmul.f32 %v994, %v118
  %1003 = vrot.lane.b32.xlu0 %v936, 64
  %v1004 = vpop.permute.xlu0 %1003
  %1005 = vrot.lane.b32.xlu0 %v937, 64
  %v1006 = vpop.permute.xlu0 %1005
  %1007 = vrot.lane.b32.xlu0 %v938, 64
  %v1008 = vpop.permute.xlu0 %1007
  %1009 = vrot.lane.b32.xlu0 %v939, 64
  %v1010 = vpop.permute.xlu0 %1009
  %v1015 = vsel %vm136, %v983, %v1004
  %v1016 = vsel %vm136, %v984, %v1006
  %v1017 = vsel %vm136, %v985, %v1008
  %v1018 = vsel %vm136, %v986, %v1010
  %v1019 = vperm.slane %v949, 0
  %v1021 = vsel %vm136, %v995, 0
  %v1024 = vsel %vm136, %v996, 0
  %v1027 = vsel %vm136, %v997, 0
  %v1030 = vsel %vm136, %v998, 0
  %1032 = vmatpush.msra.mxu0 %v966
  %1033 = vmatpush.msra.mxu0 %v965
  %1034 = vmatpush.msra.mxu0 %v964
  %1035 = vmatpush.msra.mxu0 %v963
  %1036 = vmatpush.msra.mxu0 %v962
  %1037 = vmatpush.msra.mxu0 %v961
  %1038 = vmatpush.msra.mxu0 %v960
  %1039 = vmatpush.msra.mxu0 %v959
  %1040 = vmatpush.msra.mxu0 %v958
  %1041 = vmatpush.msra.mxu0 %v957
  %1042 = vmatpush.msra.mxu0 %v956
  %1043 = vmatpush.msra.mxu0 %v955
  %1044 = vmatpush.msra.mxu0 %v954
  %1045 = vmatpush.msra.mxu0 %v953
  %1046 = vmatpush.msra.mxu0 %v952
  %1047 = vmatpush.msra.mxu0 %v951
  %1048 = vmatmul.f32.gmra.mxu0 %v1015
  %v1049 = vpop.f32.mrf.mxu0
  %v1050 = vadd.f32 %v1019, %v1049
  %1051 = vmatmul.f32.gmra.mxu0 %v1016
  %v1052 = vpop.f32.mrf.mxu0
  %v1053 = vadd.f32 %v1019, %v1052
  %1054 = vmatmul.f32.gmra.mxu0 %v1017
  %v1055 = vpop.f32.mrf.mxu0
  %v1056 = vadd.f32 %v1019, %v1055
  %1057 = vmatmul.f32.gmra.mxu0 %v1018
  %v1058 = vpop.f32.mrf.mxu0
  %v1059 = vadd.f32 %v1019, %v1058
  %1060 = vdwg.mxu0
  %1061 = vmatpush.msra.mxu0 0.0
  %1062 = vmatpush.msra.mxu0 0.0
  %1063 = vmatpush.msra.mxu0 0.0
  %1064 = vmatpush.msra.mxu0 0.0
  %1065 = vmatpush.msra.mxu0 0.0
  %1066 = vmatpush.msra.mxu0 0.0
  %1067 = vmatpush.msra.mxu0 0.0
  %1068 = vmatpush.msra.mxu0 0.0
  %1069 = vmatpush.msra.mxu0 %v974
  %1070 = vmatpush.msra.mxu0 %v973
  %1071 = vmatpush.msra.mxu0 %v972
  %1072 = vmatpush.msra.mxu0 %v971
  %1073 = vmatpush.msra.mxu0 %v970
  %1074 = vmatpush.msra.mxu0 %v969
  %1075 = vmatpush.msra.mxu0 %v968
  %1076 = vmatpush.msra.mxu0 %v967
  %1077 = vmatmul.f32.gmra.mxu0 %v1021
  %v1078 = vpop.f32.mrf.mxu0
  %v1079 = vadd.f32 %v1050, %v1078
  %1080 = vmatmul.f32.gmra.mxu0 %v1024
  %v1081 = vpop.f32.mrf.mxu0
  %v1082 = vadd.f32 %v1053, %v1081
  %1083 = vmatmul.f32.gmra.mxu0 %v1027
  %v1084 = vpop.f32.mrf.mxu0
  %v1085 = vadd.f32 %v1056, %v1084
  %1086 = vmatmul.f32.gmra.mxu0 %v1030
  %v1087 = vpop.f32.mrf.mxu0
  %v1088 = vadd.f32 %v1059, %v1087
  %1089 = vdwg.mxu0
  %s1090 = scalar_lea.vmem %s2, 768
  %v1091 = vld [vmem:[%s1090] sm:$0xff]
  %v1092 = vld [vmem:[%s1090 + $0x8] sm:$0xff]
  %v1093 = vld [vmem:[%s1090 + $0x10] sm:$0xff]
  %v1094 = vld [vmem:[%s1090 + $0x18] sm:$0xff]
  %v1095 = vld [vmem:[%s1090 + $0x20] sm:$0xff]
  %v1096 = vld [vmem:[%s1090 + $0x28] sm:$0xff]
  %v1097 = vld [vmem:[%s1090 + $0x30] sm:$0xff]
  %v1098 = vld [vmem:[%s1090 + $0x38] sm:$0xff]
  %v1099 = vld [vmem:[%s1090 + $0x40] sm:$0xff]
  %v1100 = vld [vmem:[%s1090 + $0x48] sm:$0xff]
  %v1101 = vld [vmem:[%s1090 + $0x50] sm:$0xff]
  %v1102 = vld [vmem:[%s1090 + $0x58] sm:$0xff]
  %v1103 = vld [vmem:[%s1090 + $0x60] sm:$0xff]
  %v1104 = vld [vmem:[%s1090 + $0x68] sm:$0xff]
  %v1105 = vld [vmem:[%s1090 + $0x70] sm:$0xff]
  %v1106 = vld [vmem:[%s1090 + $0x78] sm:$0xff]
  %v1107 = vld [vmem:[%s1090 + $0x80] sm:$0xff]
  %v1108 = vld [vmem:[%s1090 + $0x88] sm:$0xff]
  %v1109 = vld [vmem:[%s1090 + $0x90] sm:$0xff]
  %v1110 = vld [vmem:[%s1090 + $0x98] sm:$0xff]
  %v1111 = vld [vmem:[%s1090 + $0xa0] sm:$0xff]
  %v1112 = vld [vmem:[%s1090 + $0xa8] sm:$0xff]
  %v1113 = vld [vmem:[%s1090 + $0xb0] sm:$0xff]
  %v1114 = vld [vmem:[%s1090 + $0xb8] sm:$0xff]
  %v1115 = vld [vmem:[%s1090 + $0xc0] sm:$0xff]
  %v1116 = vld [vmem:[%s1090 + $0xc8] sm:$0xff]
  %v1117 = vld [vmem:[%s1090 + $0xd0] sm:$0xff]
  %v1118 = vld [vmem:[%s1090 + $0xd8] sm:$0xff]
  %v1119 = vld [vmem:[%s1090 + $0xe0] sm:$0xff]
  %v1120 = vld [vmem:[%s1090 + $0xe8] sm:$0xff]
  %v1121 = vld [vmem:[%s1090 + $0xf0] sm:$0xff]
  %v1122 = vld [vmem:[%s1090 + $0xf8] sm:$0xff]
  %1123 = vmatpush.msra.mxu0 %v1106
  %1124 = vmatpush.msra.mxu0 %v1105
  %1125 = vmatpush.msra.mxu0 %v1104
  %1126 = vmatpush.msra.mxu0 %v1103
  %1127 = vmatpush.msra.mxu0 %v1102
  %1128 = vmatpush.msra.mxu0 %v1101
  %1129 = vmatpush.msra.mxu0 %v1100
  %1130 = vmatpush.msra.mxu0 %v1099
  %1131 = vmatpush.msra.mxu0 %v1098
  %1132 = vmatpush.msra.mxu0 %v1097
  %1133 = vmatpush.msra.mxu0 %v1096
  %1134 = vmatpush.msra.mxu0 %v1095
  %1135 = vmatpush.msra.mxu0 %v1094
  %1136 = vmatpush.msra.mxu0 %v1093
  %1137 = vmatpush.msra.mxu0 %v1092
  %1138 = vmatpush.msra.mxu0 %v1091
  %1139 = vmatmul.f32.gmra.mxu0 %v940
  %v1140 = vpop.f32.mrf.mxu0
  %v1141 = vadd.f32 0.0, %v1140
  %1142 = vmatmul.f32.gmra.mxu0 %v942
  %v1143 = vpop.f32.mrf.mxu0
  %v1144 = vadd.f32 0.0, %v1143
  %1145 = vmatmul.f32.gmra.mxu0 %v944
  %v1146 = vpop.f32.mrf.mxu0
  %v1147 = vadd.f32 0.0, %v1146
  %1148 = vmatmul.f32.gmra.mxu0 %v946
  %v1149 = vpop.f32.mrf.mxu0
  %v1150 = vadd.f32 0.0, %v1149
  %1151 = vdwg.mxu0
  %1152 = vmatpush.msra.mxu0 %v1122
  %1153 = vmatpush.msra.mxu0 %v1121
  %1154 = vmatpush.msra.mxu0 %v1120
  %1155 = vmatpush.msra.mxu0 %v1119
  %1156 = vmatpush.msra.mxu0 %v1118
  %1157 = vmatpush.msra.mxu0 %v1117
  %1158 = vmatpush.msra.mxu0 %v1116
  %1159 = vmatpush.msra.mxu0 %v1115
  %1160 = vmatpush.msra.mxu0 %v1114
  %1161 = vmatpush.msra.mxu0 %v1113
  %1162 = vmatpush.msra.mxu0 %v1112
  %1163 = vmatpush.msra.mxu0 %v1111
  %1164 = vmatpush.msra.mxu0 %v1110
  %1165 = vmatpush.msra.mxu0 %v1109
  %1166 = vmatpush.msra.mxu0 %v1108
  %1167 = vmatpush.msra.mxu0 %v1107
  %1168 = vmatmul.f32.gmra.mxu0 %v941
  %v1169 = vpop.f32.mrf.mxu0
  %v1170 = vadd.f32 %v1141, %v1169
  %1171 = vmatmul.f32.gmra.mxu0 %v943
  %v1172 = vpop.f32.mrf.mxu0
  %v1173 = vadd.f32 %v1144, %v1172
  %1174 = vmatmul.f32.gmra.mxu0 %v945
  %v1175 = vpop.f32.mrf.mxu0
  %v1176 = vadd.f32 %v1147, %v1175
  %1177 = vmatmul.f32.gmra.mxu0 %v947
  %v1178 = vpop.f32.mrf.mxu0
  %v1179 = vadd.f32 %v1150, %v1178
  %1180 = vdwg.mxu0
  %s1181 = scalar_lea.vmem %s2, 1024
  %v1182 = vld [vmem:[%s1181] sm:$0xff]
  %v1183 = vld [vmem:[%s1181 + $0x8] sm:$0xff]
  %v1184 = vld [vmem:[%s1181 + $0x10] sm:$0xff]
  %v1185 = vld [vmem:[%s1181 + $0x18] sm:$0xff]
  %v1186 = vld [vmem:[%s1181 + $0x20] sm:$0xff]
  %v1187 = vld [vmem:[%s1181 + $0x28] sm:$0xff]
  %v1188 = vld [vmem:[%s1181 + $0x30] sm:$0xff]
  %v1189 = vld [vmem:[%s1181 + $0x38] sm:$0xff]
  %v1190 = vld [vmem:[%s1181 + $0x40] sm:$0xff]
  %v1191 = vld [vmem:[%s1181 + $0x48] sm:$0xff]
  %v1192 = vld [vmem:[%s1181 + $0x50] sm:$0xff]
  %v1193 = vld [vmem:[%s1181 + $0x58] sm:$0xff]
  %v1194 = vld [vmem:[%s1181 + $0x60] sm:$0xff]
  %v1195 = vld [vmem:[%s1181 + $0x68] sm:$0xff]
  %v1196 = vld [vmem:[%s1181 + $0x70] sm:$0xff]
  %v1197 = vld [vmem:[%s1181 + $0x78] sm:$0xff]
  %v1198 = vld [vmem:[%s1181 + $0x80] sm:$0xff]
  %v1199 = vld [vmem:[%s1181 + $0x88] sm:$0xff]
  %v1200 = vld [vmem:[%s1181 + $0x90] sm:$0xff]
  %v1201 = vld [vmem:[%s1181 + $0x98] sm:$0xff]
  %v1202 = vld [vmem:[%s1181 + $0xa0] sm:$0xff]
  %v1203 = vld [vmem:[%s1181 + $0xa8] sm:$0xff]
  %v1204 = vld [vmem:[%s1181 + $0xb0] sm:$0xff]
  %v1205 = vld [vmem:[%s1181 + $0xb8] sm:$0xff]
  %v1206 = vld [vmem:[%s1181 + $0xc0] sm:$0xff]
  %v1207 = vld [vmem:[%s1181 + $0xc8] sm:$0xff]
  %v1208 = vld [vmem:[%s1181 + $0xd0] sm:$0xff]
  %v1209 = vld [vmem:[%s1181 + $0xd8] sm:$0xff]
  %v1210 = vld [vmem:[%s1181 + $0xe0] sm:$0xff]
  %v1211 = vld [vmem:[%s1181 + $0xe8] sm:$0xff]
  %v1212 = vld [vmem:[%s1181 + $0xf0] sm:$0xff]
  %v1213 = vld [vmem:[%s1181 + $0xf8] sm:$0xff]
  %1214 = vmatpush.msra.mxu0 %v1197
  %1215 = vmatpush.msra.mxu0 %v1196
  %1216 = vmatpush.msra.mxu0 %v1195
  %1217 = vmatpush.msra.mxu0 %v1194
  %1218 = vmatpush.msra.mxu0 %v1193
  %1219 = vmatpush.msra.mxu0 %v1192
  %1220 = vmatpush.msra.mxu0 %v1191
  %1221 = vmatpush.msra.mxu0 %v1190
  %1222 = vmatpush.msra.mxu0 %v1189
  %1223 = vmatpush.msra.mxu0 %v1188
  %1224 = vmatpush.msra.mxu0 %v1187
  %1225 = vmatpush.msra.mxu0 %v1186
  %1226 = vmatpush.msra.mxu0 %v1185
  %1227 = vmatpush.msra.mxu0 %v1184
  %1228 = vmatpush.msra.mxu0 %v1183
  %1229 = vmatpush.msra.mxu0 %v1182
  %1230 = vmatmul.f32.gmra.mxu0 %v940
  %v1231 = vpop.f32.mrf.mxu0
  %v1232 = vadd.f32 0.0, %v1231
  %1233 = vmatmul.f32.gmra.mxu0 %v942
  %v1234 = vpop.f32.mrf.mxu0
  %v1235 = vadd.f32 0.0, %v1234
  %1236 = vmatmul.f32.gmra.mxu0 %v944
  %v1237 = vpop.f32.mrf.mxu0
  %v1238 = vadd.f32 0.0, %v1237
  %1239 = vmatmul.f32.gmra.mxu0 %v946
  %v1240 = vpop.f32.mrf.mxu0
  %v1241 = vadd.f32 0.0, %v1240
  %1242 = vdwg.mxu0
  %1243 = vmatpush.msra.mxu0 %v1213
  %1244 = vmatpush.msra.mxu0 %v1212
  %1245 = vmatpush.msra.mxu0 %v1211
  %1246 = vmatpush.msra.mxu0 %v1210
  %1247 = vmatpush.msra.mxu0 %v1209
  %1248 = vmatpush.msra.mxu0 %v1208
  %1249 = vmatpush.msra.mxu0 %v1207
  %1250 = vmatpush.msra.mxu0 %v1206
  %1251 = vmatpush.msra.mxu0 %v1205
  %1252 = vmatpush.msra.mxu0 %v1204
  %1253 = vmatpush.msra.mxu0 %v1203
  %1254 = vmatpush.msra.mxu0 %v1202
  %1255 = vmatpush.msra.mxu0 %v1201
  %1256 = vmatpush.msra.mxu0 %v1200
  %1257 = vmatpush.msra.mxu0 %v1199
  %1258 = vmatpush.msra.mxu0 %v1198
  %1259 = vmatmul.f32.gmra.mxu0 %v941
  %v1260 = vpop.f32.mrf.mxu0
  %v1261 = vadd.f32 %v1232, %v1260
  %1262 = vmatmul.f32.gmra.mxu0 %v943
  %v1263 = vpop.f32.mrf.mxu0
  %v1264 = vadd.f32 %v1235, %v1263
  %1265 = vmatmul.f32.gmra.mxu0 %v945
  %v1266 = vpop.f32.mrf.mxu0
  %v1267 = vadd.f32 %v1238, %v1266
  %1268 = vmatmul.f32.gmra.mxu0 %v947
  %v1269 = vpop.f32.mrf.mxu0
  %v1270 = vadd.f32 %v1241, %v1269
  %1271 = vdwg.mxu0
  %s1272 = scalar_lea.vmem %s2, 1280
  %v1273 = vld [vmem:[%s1272] sm:$0xff]
  %v1274 = vld [vmem:[%s1272 + $0x8] sm:$0xff]
  %v1275 = vld [vmem:[%s1272 + $0x10] sm:$0xff]
  %v1276 = vld [vmem:[%s1272 + $0x18] sm:$0xff]
  %v1277 = vld [vmem:[%s1272 + $0x20] sm:$0xff]
  %v1278 = vld [vmem:[%s1272 + $0x28] sm:$0xff]
  %v1279 = vld [vmem:[%s1272 + $0x30] sm:$0xff]
  %v1280 = vld [vmem:[%s1272 + $0x38] sm:$0xff]
  %v1281 = vld [vmem:[%s1272 + $0x40] sm:$0xff]
  %v1282 = vld [vmem:[%s1272 + $0x48] sm:$0xff]
  %v1283 = vld [vmem:[%s1272 + $0x50] sm:$0xff]
  %v1284 = vld [vmem:[%s1272 + $0x58] sm:$0xff]
  %v1285 = vld [vmem:[%s1272 + $0x60] sm:$0xff]
  %v1286 = vld [vmem:[%s1272 + $0x68] sm:$0xff]
  %v1287 = vld [vmem:[%s1272 + $0x70] sm:$0xff]
  %v1288 = vld [vmem:[%s1272 + $0x78] sm:$0xff]
  %v1289 = vld [vmem:[%s1272 + $0x80] sm:$0xff]
  %v1290 = vld [vmem:[%s1272 + $0x88] sm:$0xff]
  %v1291 = vld [vmem:[%s1272 + $0x90] sm:$0xff]
  %v1292 = vld [vmem:[%s1272 + $0x98] sm:$0xff]
  %v1293 = vld [vmem:[%s1272 + $0xa0] sm:$0xff]
  %v1294 = vld [vmem:[%s1272 + $0xa8] sm:$0xff]
  %v1295 = vld [vmem:[%s1272 + $0xb0] sm:$0xff]
  %v1296 = vld [vmem:[%s1272 + $0xb8] sm:$0xff]
  %v1297 = vld [vmem:[%s1272 + $0xc0] sm:$0xff]
  %v1298 = vld [vmem:[%s1272 + $0xc8] sm:$0xff]
  %v1299 = vld [vmem:[%s1272 + $0xd0] sm:$0xff]
  %v1300 = vld [vmem:[%s1272 + $0xd8] sm:$0xff]
  %v1301 = vld [vmem:[%s1272 + $0xe0] sm:$0xff]
  %v1302 = vld [vmem:[%s1272 + $0xe8] sm:$0xff]
  %v1303 = vld [vmem:[%s1272 + $0xf0] sm:$0xff]
  %v1304 = vld [vmem:[%s1272 + $0xf8] sm:$0xff]
  %1305 = vmatpush.msra.mxu0 %v1288
  %1306 = vmatpush.msra.mxu0 %v1287
  %1307 = vmatpush.msra.mxu0 %v1286
  %1308 = vmatpush.msra.mxu0 %v1285
  %1309 = vmatpush.msra.mxu0 %v1284
  %1310 = vmatpush.msra.mxu0 %v1283
  %1311 = vmatpush.msra.mxu0 %v1282
  %1312 = vmatpush.msra.mxu0 %v1281
  %1313 = vmatpush.msra.mxu0 %v1280
  %1314 = vmatpush.msra.mxu0 %v1279
  %1315 = vmatpush.msra.mxu0 %v1278
  %1316 = vmatpush.msra.mxu0 %v1277
  %1317 = vmatpush.msra.mxu0 %v1276
  %1318 = vmatpush.msra.mxu0 %v1275
  %1319 = vmatpush.msra.mxu0 %v1274
  %1320 = vmatpush.msra.mxu0 %v1273
  %1321 = vmatmul.f32.gmra.mxu0 %v940
  %v1322 = vpop.f32.mrf.mxu0
  %v1323 = vadd.f32 0.0, %v1322
  %1324 = vmatmul.f32.gmra.mxu0 %v942
  %v1325 = vpop.f32.mrf.mxu0
  %v1326 = vadd.f32 0.0, %v1325
  %1327 = vmatmul.f32.gmra.mxu0 %v944
  %v1328 = vpop.f32.mrf.mxu0
  %v1329 = vadd.f32 0.0, %v1328
  %1330 = vmatmul.f32.gmra.mxu0 %v946
  %v1331 = vpop.f32.mrf.mxu0
  %v1332 = vadd.f32 0.0, %v1331
  %1333 = vdwg.mxu0
  %1334 = vmatpush.msra.mxu0 %v1304
  %1335 = vmatpush.msra.mxu0 %v1303
  %1336 = vmatpush.msra.mxu0 %v1302
  %1337 = vmatpush.msra.mxu0 %v1301
  %1338 = vmatpush.msra.mxu0 %v1300
  %1339 = vmatpush.msra.mxu0 %v1299
  %1340 = vmatpush.msra.mxu0 %v1298
  %1341 = vmatpush.msra.mxu0 %v1297
  %1342 = vmatpush.msra.mxu0 %v1296
  %1343 = vmatpush.msra.mxu0 %v1295
  %1344 = vmatpush.msra.mxu0 %v1294
  %1345 = vmatpush.msra.mxu0 %v1293
  %1346 = vmatpush.msra.mxu0 %v1292
  %1347 = vmatpush.msra.mxu0 %v1291
  %1348 = vmatpush.msra.mxu0 %v1290
  %1349 = vmatpush.msra.mxu0 %v1289
  %1350 = vmatmul.f32.gmra.mxu0 %v941
  %v1351 = vpop.f32.mrf.mxu0
  %v1352 = vadd.f32 %v1323, %v1351
  %1353 = vmatmul.f32.gmra.mxu0 %v943
  %v1354 = vpop.f32.mrf.mxu0
  %v1355 = vadd.f32 %v1326, %v1354
  %1356 = vmatmul.f32.gmra.mxu0 %v945
  %v1357 = vpop.f32.mrf.mxu0
  %v1358 = vadd.f32 %v1329, %v1357
  %1359 = vmatmul.f32.gmra.mxu0 %v947
  %v1360 = vpop.f32.mrf.mxu0
  %v1361 = vadd.f32 %v1332, %v1360
  %1362 = vdwg.mxu0
  %v1363 = vrot.slane %v1170, 7
  %v1364 = vrot.slane %v1173, 7
  %v1365 = vrot.slane %v1176, 7
  %v1366 = vrot.slane %v1179, 7
  %v1367 = vsel %vm66, %v1365, %v1366
  %v1368 = vsel %vm66, %v1364, %v1365
  %v1369 = vsel %vm66, %v1363, %v1364
  %v1370 = vsel %vm66, %v1366, %v1363
  %v1371 = vmul.f32 %v1370, %v74
  %v1372 = vmul.f32 %v1369, %v79
  %v1373 = vmul.f32 %v1368, %v84
  %v1374 = vmul.f32 %v1367, %v89
  %v1375 = vadd.f32 %v1371, %v1261
  %v1376 = vadd.f32 %v1372, %v1264
  %v1377 = vadd.f32 %v1373, %v1267
  %v1378 = vadd.f32 %v1374, %v1270
  %v1379 = vrot.slane %v1352, 1
  %v1380 = vrot.slane %v1355, 1
  %v1381 = vrot.slane %v1358, 1
  %v1382 = vrot.slane %v1361, 1
  %v1383 = vsel %vm99, %v1381, %v1382
  %v1384 = vsel %vm99, %v1380, %v1381
  %v1385 = vsel %vm99, %v1379, %v1380
  %v1386 = vsel %vm99, %v1382, %v1379
  %v1387 = vmul.f32 %v1385, %v106
  %v1388 = vmul.f32 %v1384, %v110
  %v1389 = vmul.f32 %v1383, %v114
  %v1390 = vmul.f32 %v1386, %v118
  %v1391 = vadd.f32 %v1375, %v1387
  %v1392 = vadd.f32 %v1376, %v1388
  %v1393 = vadd.f32 %v1377, %v1389
  %v1394 = vadd.f32 %v1378, %v1390
  %v1395 = vperm.slane %v949, 1
  %v1396 = vadd.f32 %v1391, %v1395
  %v1397 = vadd.f32 %v1392, %v1395
  %v1398 = vadd.f32 %v1393, %v1395
  %v1399 = vadd.f32 %v1394, %v1395
  %v1400 = vadd.f32 %v1079, %v1396
  %v1401 = vadd.f32 %v1082, %v1397
  %v1402 = vadd.f32 %v1085, %v1398
  %v1403 = vadd.f32 %v1088, %v1399
  %v1404 = vmul.f32 %v1400, 0.1
  %v1405 = vmul.f32 %v1401, 0.1
  %v1406 = vmul.f32 %v1402, 0.1
  %v1407 = vmul.f32 %v1403, 0.1
  %v1408 = vmax.f32 %v1400, %v1404
  %v1409 = vmax.f32 %v1401, %v1405
  %v1410 = vmax.f32 %v1402, %v1406
  %v1411 = vmax.f32 %v1403, %v1407
  %s1412 = scalar_lea.vmem %s1, 576
  %v1413 = vld [vmem:[%s1412] sm:$0xff]
  %v1414 = vld [vmem:[%s1412 + $0x8] sm:$0xff]
  %v1415 = vld [vmem:[%s1412 + $0x10] sm:$0xff]
  %v1416 = vld [vmem:[%s1412 + $0x18] sm:$0xff]
  %v1417 = vld [vmem:[%s1412 + $0x20] sm:$0xff]
  %v1418 = vld [vmem:[%s1412 + $0x28] sm:$0xff]
  %v1419 = vld [vmem:[%s1412 + $0x30] sm:$0xff]
  %v1420 = vld [vmem:[%s1412 + $0x38] sm:$0xff]
  %v1421 = vld [vmem:[%s1412 + $0x40] sm:$0xff]
  %v1422 = vld [vmem:[%s1412 + $0x48] sm:$0xff]
  %v1423 = vld [vmem:[%s1412 + $0x50] sm:$0xff]
  %v1424 = vld [vmem:[%s1412 + $0x58] sm:$0xff]
  %v1425 = vld [vmem:[%s1412 + $0x60] sm:$0xff]
  %v1426 = vld [vmem:[%s1412 + $0x68] sm:$0xff]
  %v1427 = vld [vmem:[%s1412 + $0x70] sm:$0xff]
  %v1428 = vld [vmem:[%s1412 + $0x78] sm:$0xff]
  %v1429 = vld [vmem:[%s1412 + $0x80] sm:$0xff]
  %v1430 = vld [vmem:[%s1412 + $0x88] sm:$0xff]
  %v1431 = vld [vmem:[%s1412 + $0x90] sm:$0xff]
  %v1432 = vld [vmem:[%s1412 + $0x98] sm:$0xff]
  %v1433 = vld [vmem:[%s1412 + $0xa0] sm:$0xff]
  %v1434 = vld [vmem:[%s1412 + $0xa8] sm:$0xff]
  %v1435 = vld [vmem:[%s1412 + $0xb0] sm:$0xff]
  %v1436 = vld [vmem:[%s1412 + $0xb8] sm:$0xff]
  %v1437 = vrot.slane %v1408, 7
  %v1438 = vrot.slane %v1409, 7
  %v1439 = vrot.slane %v1410, 7
  %v1440 = vrot.slane %v1411, 7
  %v1441 = vsel %vm66, %v1439, %v1440
  %v1442 = vsel %vm66, %v1438, %v1439
  %v1443 = vsel %vm66, %v1437, %v1438
  %v1444 = vsel %vm66, %v1440, %v1437
  %v1445 = vmul.f32 %v1444, %v74
  %v1446 = vmul.f32 %v1443, %v79
  %v1447 = vmul.f32 %v1442, %v84
  %v1448 = vmul.f32 %v1441, %v89
  %v1449 = vrot.slane %v1408, 1
  %v1450 = vrot.slane %v1409, 1
  %v1451 = vrot.slane %v1410, 1
  %v1452 = vrot.slane %v1411, 1
  %v1453 = vsel %vm99, %v1451, %v1452
  %v1454 = vsel %vm99, %v1450, %v1451
  %v1455 = vsel %vm99, %v1449, %v1450
  %v1456 = vsel %vm99, %v1452, %v1449
  %v1457 = vmul.f32 %v1455, %v106
  %v1458 = vmul.f32 %v1454, %v110
  %v1459 = vmul.f32 %v1453, %v114
  %v1460 = vmul.f32 %v1456, %v118
  %1465 = vrot.lane.b32.xlu0 %v1408, 64
  %v1466 = vpop.permute.xlu0 %1465
  %1467 = vrot.lane.b32.xlu0 %v1409, 64
  %v1468 = vpop.permute.xlu0 %1467
  %1469 = vrot.lane.b32.xlu0 %v1410, 64
  %v1470 = vpop.permute.xlu0 %1469
  %1471 = vrot.lane.b32.xlu0 %v1411, 64
  %v1472 = vpop.permute.xlu0 %1471
  %v1477 = vsel %vm136, %v1445, %v1466
  %v1478 = vsel %vm136, %v1446, %v1468
  %v1479 = vsel %vm136, %v1447, %v1470
  %v1480 = vsel %vm136, %v1448, %v1472
  %v1481 = vperm.slane %v949, 2
  %v1483 = vsel %vm136, %v1457, 0
  %v1486 = vsel %vm136, %v1458, 0
  %v1489 = vsel %vm136, %v1459, 0
  %v1492 = vsel %vm136, %v1460, 0
  %1494 = vmatpush.msra.mxu0 %v1428
  %1495 = vmatpush.msra.mxu0 %v1427
  %1496 = vmatpush.msra.mxu0 %v1426
  %1497 = vmatpush.msra.mxu0 %v1425
  %1498 = vmatpush.msra.mxu0 %v1424
  %1499 = vmatpush.msra.mxu0 %v1423
  %1500 = vmatpush.msra.mxu0 %v1422
  %1501 = vmatpush.msra.mxu0 %v1421
  %1502 = vmatpush.msra.mxu0 %v1420
  %1503 = vmatpush.msra.mxu0 %v1419
  %1504 = vmatpush.msra.mxu0 %v1418
  %1505 = vmatpush.msra.mxu0 %v1417
  %1506 = vmatpush.msra.mxu0 %v1416
  %1507 = vmatpush.msra.mxu0 %v1415
  %1508 = vmatpush.msra.mxu0 %v1414
  %1509 = vmatpush.msra.mxu0 %v1413
  %1510 = vmatmul.f32.gmra.mxu0 %v1477
  %v1511 = vpop.f32.mrf.mxu0
  %v1512 = vadd.f32 %v1481, %v1511
  %1513 = vmatmul.f32.gmra.mxu0 %v1478
  %v1514 = vpop.f32.mrf.mxu0
  %v1515 = vadd.f32 %v1481, %v1514
  %1516 = vmatmul.f32.gmra.mxu0 %v1479
  %v1517 = vpop.f32.mrf.mxu0
  %v1518 = vadd.f32 %v1481, %v1517
  %1519 = vmatmul.f32.gmra.mxu0 %v1480
  %v1520 = vpop.f32.mrf.mxu0
  %v1521 = vadd.f32 %v1481, %v1520
  %1522 = vdwg.mxu0
  %1523 = vmatpush.msra.mxu0 0.0
  %1524 = vmatpush.msra.mxu0 0.0
  %1525 = vmatpush.msra.mxu0 0.0
  %1526 = vmatpush.msra.mxu0 0.0
  %1527 = vmatpush.msra.mxu0 0.0
  %1528 = vmatpush.msra.mxu0 0.0
  %1529 = vmatpush.msra.mxu0 0.0
  %1530 = vmatpush.msra.mxu0 0.0
  %1531 = vmatpush.msra.mxu0 %v1436
  %1532 = vmatpush.msra.mxu0 %v1435
  %1533 = vmatpush.msra.mxu0 %v1434
  %1534 = vmatpush.msra.mxu0 %v1433
  %1535 = vmatpush.msra.mxu0 %v1432
  %1536 = vmatpush.msra.mxu0 %v1431
  %1537 = vmatpush.msra.mxu0 %v1430
  %1538 = vmatpush.msra.mxu0 %v1429
  %1539 = vmatmul.f32.gmra.mxu0 %v1483
  %v1540 = vpop.f32.mrf.mxu0
  %v1541 = vadd.f32 %v1512, %v1540
  %1542 = vmatmul.f32.gmra.mxu0 %v1486
  %v1543 = vpop.f32.mrf.mxu0
  %v1544 = vadd.f32 %v1515, %v1543
  %1545 = vmatmul.f32.gmra.mxu0 %v1489
  %v1546 = vpop.f32.mrf.mxu0
  %v1547 = vadd.f32 %v1518, %v1546
  %1548 = vmatmul.f32.gmra.mxu0 %v1492
  %v1549 = vpop.f32.mrf.mxu0
  %v1550 = vadd.f32 %v1521, %v1549
  %1551 = vdwg.mxu0
  %v1552 = vadd.f32 %v1541, %v1079
  %v1553 = vadd.f32 %v1544, %v1082
  %v1554 = vadd.f32 %v1547, %v1085
  %v1555 = vadd.f32 %v1550, %v1088
  %v1556 = vmul.f32 %v1396, 0.1
  %v1557 = vmul.f32 %v1397, 0.1
  %v1558 = vmul.f32 %v1398, 0.1
  %v1559 = vmul.f32 %v1399, 0.1
  %v1560 = vmax.f32 %v1396, %v1556
  %v1561 = vmax.f32 %v1397, %v1557
  %v1562 = vmax.f32 %v1398, %v1558
  %v1563 = vmax.f32 %v1399, %v1559
  %s1564 = scalar_lea.vmem %s3, 384
  %v1565 = vld [vmem:[%s1564] sm:$0xff]
  %v1566 = vld [vmem:[%s1564 + $0x8] sm:$0xff]
  %v1567 = vld [vmem:[%s1564 + $0x10] sm:$0xff]
  %v1568 = vld [vmem:[%s1564 + $0x18] sm:$0xff]
  %v1569 = vld [vmem:[%s1564 + $0x20] sm:$0xff]
  %v1570 = vld [vmem:[%s1564 + $0x28] sm:$0xff]
  %v1571 = vld [vmem:[%s1564 + $0x30] sm:$0xff]
  %v1572 = vld [vmem:[%s1564 + $0x38] sm:$0xff]
  %v1573 = vld [vmem:[%s1564 + $0x40] sm:$0xff]
  %v1574 = vld [vmem:[%s1564 + $0x48] sm:$0xff]
  %v1575 = vld [vmem:[%s1564 + $0x50] sm:$0xff]
  %v1576 = vld [vmem:[%s1564 + $0x58] sm:$0xff]
  %v1577 = vld [vmem:[%s1564 + $0x60] sm:$0xff]
  %v1578 = vld [vmem:[%s1564 + $0x68] sm:$0xff]
  %v1579 = vld [vmem:[%s1564 + $0x70] sm:$0xff]
  %v1580 = vld [vmem:[%s1564 + $0x78] sm:$0xff]
  %v1581 = vld [vmem:[%s1564 + $0x80] sm:$0xff]
  %v1582 = vld [vmem:[%s1564 + $0x88] sm:$0xff]
  %v1583 = vld [vmem:[%s1564 + $0x90] sm:$0xff]
  %v1584 = vld [vmem:[%s1564 + $0x98] sm:$0xff]
  %v1585 = vld [vmem:[%s1564 + $0xa0] sm:$0xff]
  %v1586 = vld [vmem:[%s1564 + $0xa8] sm:$0xff]
  %v1587 = vld [vmem:[%s1564 + $0xb0] sm:$0xff]
  %v1588 = vld [vmem:[%s1564 + $0xb8] sm:$0xff]
  %v1589 = vld [vmem:[%s1564 + $0xc0] sm:$0xff]
  %v1590 = vld [vmem:[%s1564 + $0xc8] sm:$0xff]
  %v1591 = vld [vmem:[%s1564 + $0xd0] sm:$0xff]
  %v1592 = vld [vmem:[%s1564 + $0xd8] sm:$0xff]
  %v1593 = vld [vmem:[%s1564 + $0xe0] sm:$0xff]
  %v1594 = vld [vmem:[%s1564 + $0xe8] sm:$0xff]
  %v1595 = vld [vmem:[%s1564 + $0xf0] sm:$0xff]
  %v1596 = vld [vmem:[%s1564 + $0xf8] sm:$0xff]
  %v1597 = vld [vmem:[%s1564 + $0x100] sm:$0xff]
  %v1598 = vld [vmem:[%s1564 + $0x108] sm:$0xff]
  %v1599 = vld [vmem:[%s1564 + $0x110] sm:$0xff]
  %v1600 = vld [vmem:[%s1564 + $0x118] sm:$0xff]
  %v1601 = vld [vmem:[%s1564 + $0x120] sm:$0xff]
  %v1602 = vld [vmem:[%s1564 + $0x128] sm:$0xff]
  %v1603 = vld [vmem:[%s1564 + $0x130] sm:$0xff]
  %v1604 = vld [vmem:[%s1564 + $0x138] sm:$0xff]
  %v1605 = vld [vmem:[%s1564 + $0x140] sm:$0xff]
  %v1606 = vld [vmem:[%s1564 + $0x148] sm:$0xff]
  %v1607 = vld [vmem:[%s1564 + $0x150] sm:$0xff]
  %v1608 = vld [vmem:[%s1564 + $0x158] sm:$0xff]
  %v1609 = vld [vmem:[%s1564 + $0x160] sm:$0xff]
  %v1610 = vld [vmem:[%s1564 + $0x168] sm:$0xff]
  %v1611 = vld [vmem:[%s1564 + $0x170] sm:$0xff]
  %v1612 = vld [vmem:[%s1564 + $0x178] sm:$0xff]
  %v1613 = vrot.slane %v1560, 7
  %v1614 = vrot.slane %v1561, 7
  %v1615 = vrot.slane %v1562, 7
  %v1616 = vrot.slane %v1563, 7
  %v1617 = vsel %vm66, %v1615, %v1616
  %v1618 = vsel %vm66, %v1614, %v1615
  %v1619 = vsel %vm66, %v1613, %v1614
  %v1620 = vsel %vm66, %v1616, %v1613
  %v1621 = vmul.f32 %v1620, %v74
  %v1622 = vmul.f32 %v1619, %v79
  %v1623 = vmul.f32 %v1618, %v84
  %v1624 = vmul.f32 %v1617, %v89
  %v1625 = vrot.slane %v1560, 1
  %v1626 = vrot.slane %v1561, 1
  %v1627 = vrot.slane %v1562, 1
  %v1628 = vrot.slane %v1563, 1
  %v1629 = vsel %vm99, %v1627, %v1628
  %v1630 = vsel %vm99, %v1626, %v1627
  %v1631 = vsel %vm99, %v1625, %v1626
  %v1632 = vsel %vm99, %v1628, %v1625
  %v1633 = vmul.f32 %v1631, %v106
  %v1634 = vmul.f32 %v1630, %v110
  %v1635 = vmul.f32 %v1629, %v114
  %v1636 = vmul.f32 %v1632, %v118
  %1641 = vrot.lane.b32.xlu0 %v1560, 64
  %v1642 = vpop.permute.xlu0 %1641
  %1643 = vrot.lane.b32.xlu0 %v1561, 64
  %v1644 = vpop.permute.xlu0 %1643
  %1645 = vrot.lane.b32.xlu0 %v1562, 64
  %v1646 = vpop.permute.xlu0 %1645
  %1647 = vrot.lane.b32.xlu0 %v1563, 64
  %v1648 = vpop.permute.xlu0 %1647
  %v1653 = vsel %vm136, %v1621, %v1642
  %v1654 = vsel %vm136, %v1622, %v1644
  %v1655 = vsel %vm136, %v1623, %v1646
  %v1656 = vsel %vm136, %v1624, %v1648
  %v1658 = vperm.slane %v949, 3
  %v1659 = vperm.slane %v949, 7
  %v1662 = vperm.slane %v1658, 3
  %v1663 = vperm.slane %v1659, 3
  %v1665 = vsel %vm136, %v1633, 0
  %v1668 = vsel %vm136, %v1634, 0
  %v1671 = vsel %vm136, %v1635, 0
  %v1674 = vsel %vm136, %v1636, 0
  %1676 = vmatpush.msra.mxu0 %v1595
  %1677 = vmatpush.msra.mxu0 %v1593
  %1678 = vmatpush.msra.mxu0 %v1591
  %1679 = vmatpush.msra.mxu0 %v1589
  %1680 = vmatpush.msra.mxu0 %v1587
  %1681 = vmatpush.msra.mxu0 %v1585
  %1682 = vmatpush.msra.mxu0 %v1583
  %1683 = vmatpush.msra.mxu0 %v1581
  %1684 = vmatpush.msra.mxu0 %v1579
  %1685 = vmatpush.msra.mxu0 %v1577
  %1686 = vmatpush.msra.mxu0 %v1575
  %1687 = vmatpush.msra.mxu0 %v1573
  %1688 = vmatpush.msra.mxu0 %v1571
  %1689 = vmatpush.msra.mxu0 %v1569
  %1690 = vmatpush.msra.mxu0 %v1567
  %1691 = vmatpush.msra.mxu0 %v1565
  %1692 = vmatmul.f32.gmra.mxu0 %v1653
  %v1693 = vpop.f32.mrf.mxu0
  %v1694 = vadd.f32 %v1662, %v1693
  %1695 = vmatmul.f32.gmra.mxu0 %v1654
  %v1696 = vpop.f32.mrf.mxu0
  %v1697 = vadd.f32 %v1662, %v1696
  %1698 = vmatmul.f32.gmra.mxu0 %v1655
  %v1699 = vpop.f32.mrf.mxu0
  %v1700 = vadd.f32 %v1662, %v1699
  %1701 = vmatmul.f32.gmra.mxu0 %v1656
  %v1702 = vpop.f32.mrf.mxu0
  %v1703 = vadd.f32 %v1662, %v1702
  %1704 = vdwg.mxu0
  %1705 = vmatpush.msra.mxu0 0.0
  %1706 = vmatpush.msra.mxu0 0.0
  %1707 = vmatpush.msra.mxu0 0.0
  %1708 = vmatpush.msra.mxu0 0.0
  %1709 = vmatpush.msra.mxu0 0.0
  %1710 = vmatpush.msra.mxu0 0.0
  %1711 = vmatpush.msra.mxu0 0.0
  %1712 = vmatpush.msra.mxu0 0.0
  %1713 = vmatpush.msra.mxu0 %v1611
  %1714 = vmatpush.msra.mxu0 %v1609
  %1715 = vmatpush.msra.mxu0 %v1607
  %1716 = vmatpush.msra.mxu0 %v1605
  %1717 = vmatpush.msra.mxu0 %v1603
  %1718 = vmatpush.msra.mxu0 %v1601
  %1719 = vmatpush.msra.mxu0 %v1599
  %1720 = vmatpush.msra.mxu0 %v1597
  %1721 = vmatmul.f32.gmra.mxu0 %v1665
  %v1722 = vpop.f32.mrf.mxu0
  %v1723 = vadd.f32 %v1694, %v1722
  %1724 = vmatmul.f32.gmra.mxu0 %v1668
  %v1725 = vpop.f32.mrf.mxu0
  %v1726 = vadd.f32 %v1697, %v1725
  %1727 = vmatmul.f32.gmra.mxu0 %v1671
  %v1728 = vpop.f32.mrf.mxu0
  %v1729 = vadd.f32 %v1700, %v1728
  %1730 = vmatmul.f32.gmra.mxu0 %v1674
  %v1731 = vpop.f32.mrf.mxu0
  %v1732 = vadd.f32 %v1703, %v1731
  %1733 = vdwg.mxu0
  %1734 = vmatpush.msra.mxu0 %v1596
  %1735 = vmatpush.msra.mxu0 %v1594
  %1736 = vmatpush.msra.mxu0 %v1592
  %1737 = vmatpush.msra.mxu0 %v1590
  %1738 = vmatpush.msra.mxu0 %v1588
  %1739 = vmatpush.msra.mxu0 %v1586
  %1740 = vmatpush.msra.mxu0 %v1584
  %1741 = vmatpush.msra.mxu0 %v1582
  %1742 = vmatpush.msra.mxu0 %v1580
  %1743 = vmatpush.msra.mxu0 %v1578
  %1744 = vmatpush.msra.mxu0 %v1576
  %1745 = vmatpush.msra.mxu0 %v1574
  %1746 = vmatpush.msra.mxu0 %v1572
  %1747 = vmatpush.msra.mxu0 %v1570
  %1748 = vmatpush.msra.mxu0 %v1568
  %1749 = vmatpush.msra.mxu0 %v1566
  %1750 = vmatmul.f32.gmra.mxu0 %v1653
  %v1751 = vpop.f32.mrf.mxu0
  %v1752 = vadd.f32 %v1663, %v1751
  %1753 = vmatmul.f32.gmra.mxu0 %v1654
  %v1754 = vpop.f32.mrf.mxu0
  %v1755 = vadd.f32 %v1663, %v1754
  %1756 = vmatmul.f32.gmra.mxu0 %v1655
  %v1757 = vpop.f32.mrf.mxu0
  %v1758 = vadd.f32 %v1663, %v1757
  %1759 = vmatmul.f32.gmra.mxu0 %v1656
  %v1760 = vpop.f32.mrf.mxu0
  %v1761 = vadd.f32 %v1663, %v1760
  %1762 = vdwg.mxu0
  %1763 = vmatpush.msra.mxu0 0.0
  %1764 = vmatpush.msra.mxu0 0.0
  %1765 = vmatpush.msra.mxu0 0.0
  %1766 = vmatpush.msra.mxu0 0.0
  %1767 = vmatpush.msra.mxu0 0.0
  %1768 = vmatpush.msra.mxu0 0.0
  %1769 = vmatpush.msra.mxu0 0.0
  %1770 = vmatpush.msra.mxu0 0.0
  %1771 = vmatpush.msra.mxu0 %v1612
  %1772 = vmatpush.msra.mxu0 %v1610
  %1773 = vmatpush.msra.mxu0 %v1608
  %1774 = vmatpush.msra.mxu0 %v1606
  %1775 = vmatpush.msra.mxu0 %v1604
  %1776 = vmatpush.msra.mxu0 %v1602
  %1777 = vmatpush.msra.mxu0 %v1600
  %1778 = vmatpush.msra.mxu0 %v1598
  %1779 = vmatmul.f32.gmra.mxu0 %v1665
  %v1780 = vpop.f32.mrf.mxu0
  %v1781 = vadd.f32 %v1752, %v1780
  %1782 = vmatmul.f32.gmra.mxu0 %v1668
  %v1783 = vpop.f32.mrf.mxu0
  %v1784 = vadd.f32 %v1755, %v1783
  %1785 = vmatmul.f32.gmra.mxu0 %v1671
  %v1786 = vpop.f32.mrf.mxu0
  %v1787 = vadd.f32 %v1758, %v1786
  %1788 = vmatmul.f32.gmra.mxu0 %v1674
  %v1789 = vpop.f32.mrf.mxu0
  %v1790 = vadd.f32 %v1761, %v1789
  %1791 = vdwg.mxu0
  %v1792 = vadd.f32 %v1723, %v940
  %v1793 = vadd.f32 %v1781, %v941
  %v1794 = vadd.f32 %v1726, %v942
  %v1795 = vadd.f32 %v1784, %v943
  %v1796 = vadd.f32 %v1729, %v944
  %v1797 = vadd.f32 %v1787, %v945
  %v1798 = vadd.f32 %v1732, %v946
  %v1799 = vadd.f32 %v1790, %v947
  %v1800 = vmul.f32 %v1552, %v922
  %v1801 = vmul.f32 %v1553, %v926
  %v1802 = vmul.f32 %v1554, %v930
  %v1803 = vmul.f32 %v1555, %v934
  %v1804 = vmul.f32 %v1792, %v922
  %v1805 = vmul.f32 %v1793, %v922
  %v1806 = vmul.f32 %v1794, %v926
  %v1807 = vmul.f32 %v1795, %v926
  %v1808 = vmul.f32 %v1796, %v930
  %v1809 = vmul.f32 %v1797, %v930
  %v1810 = vmul.f32 %v1798, %v934
  %v1811 = vmul.f32 %v1799, %v934
  %s1812 = scalar_lea.vmem %s4, 16
  %v1813 = vld [vmem:[%s1812] sm:$0xff]
  %s1814 = scalar_lea.vmem %s1, 768
  %v1815 = vld [vmem:[%s1814] sm:$0xff]
  %v1816 = vld [vmem:[%s1814 + $0x8] sm:$0xff]
  %v1817 = vld [vmem:[%s1814 + $0x10] sm:$0xff]
  %v1818 = vld [vmem:[%s1814 + $0x18] sm:$0xff]
  %v1819 = vld [vmem:[%s1814 + $0x20] sm:$0xff]
  %v1820 = vld [vmem:[%s1814 + $0x28] sm:$0xff]
  %v1821 = vld [vmem:[%s1814 + $0x30] sm:$0xff]
  %v1822 = vld [vmem:[%s1814 + $0x38] sm:$0xff]
  %v1823 = vld [vmem:[%s1814 + $0x40] sm:$0xff]
  %v1824 = vld [vmem:[%s1814 + $0x48] sm:$0xff]
  %v1825 = vld [vmem:[%s1814 + $0x50] sm:$0xff]
  %v1826 = vld [vmem:[%s1814 + $0x58] sm:$0xff]
  %v1827 = vld [vmem:[%s1814 + $0x60] sm:$0xff]
  %v1828 = vld [vmem:[%s1814 + $0x68] sm:$0xff]
  %v1829 = vld [vmem:[%s1814 + $0x70] sm:$0xff]
  %v1830 = vld [vmem:[%s1814 + $0x78] sm:$0xff]
  %v1831 = vld [vmem:[%s1814 + $0x80] sm:$0xff]
  %v1832 = vld [vmem:[%s1814 + $0x88] sm:$0xff]
  %v1833 = vld [vmem:[%s1814 + $0x90] sm:$0xff]
  %v1834 = vld [vmem:[%s1814 + $0x98] sm:$0xff]
  %v1835 = vld [vmem:[%s1814 + $0xa0] sm:$0xff]
  %v1836 = vld [vmem:[%s1814 + $0xa8] sm:$0xff]
  %v1837 = vld [vmem:[%s1814 + $0xb0] sm:$0xff]
  %v1838 = vld [vmem:[%s1814 + $0xb8] sm:$0xff]
  %v1839 = vrot.slane %v1800, 7
  %v1840 = vrot.slane %v1801, 7
  %v1841 = vrot.slane %v1802, 7
  %v1842 = vrot.slane %v1803, 7
  %v1843 = vsel %vm66, %v1841, %v1842
  %v1844 = vsel %vm66, %v1840, %v1841
  %v1845 = vsel %vm66, %v1839, %v1840
  %v1846 = vsel %vm66, %v1842, %v1839
  %v1847 = vmul.f32 %v1846, %v74
  %v1848 = vmul.f32 %v1845, %v79
  %v1849 = vmul.f32 %v1844, %v84
  %v1850 = vmul.f32 %v1843, %v89
  %v1851 = vrot.slane %v1800, 1
  %v1852 = vrot.slane %v1801, 1
  %v1853 = vrot.slane %v1802, 1
  %v1854 = vrot.slane %v1803, 1
  %v1855 = vsel %vm99, %v1853, %v1854
  %v1856 = vsel %vm99, %v1852, %v1853
  %v1857 = vsel %vm99, %v1851, %v1852
  %v1858 = vsel %vm99, %v1854, %v1851
  %v1859 = vmul.f32 %v1857, %v106
  %v1860 = vmul.f32 %v1856, %v110
  %v1861 = vmul.f32 %v1855, %v114
  %v1862 = vmul.f32 %v1858, %v118
  %1867 = vrot.lane.b32.xlu0 %v1800, 64
  %v1868 = vpop.permute.xlu0 %1867
  %1869 = vrot.lane.b32.xlu0 %v1801, 64
  %v1870 = vpop.permute.xlu0 %1869
  %1871 = vrot.lane.b32.xlu0 %v1802, 64
  %v1872 = vpop.permute.xlu0 %1871
  %1873 = vrot.lane.b32.xlu0 %v1803, 64
  %v1874 = vpop.permute.xlu0 %1873
  %v1879 = vsel %vm136, %v1847, %v1868
  %v1880 = vsel %vm136, %v1848, %v1870
  %v1881 = vsel %vm136, %v1849, %v1872
  %v1882 = vsel %vm136, %v1850, %v1874
  %v1883 = vperm.slane %v1813, 0
  %v1885 = vsel %vm136, %v1859, 0
  %v1888 = vsel %vm136, %v1860, 0
  %v1891 = vsel %vm136, %v1861, 0
  %v1894 = vsel %vm136, %v1862, 0
  %1896 = vmatpush.msra.mxu0 %v1830
  %1897 = vmatpush.msra.mxu0 %v1829
  %1898 = vmatpush.msra.mxu0 %v1828
  %1899 = vmatpush.msra.mxu0 %v1827
  %1900 = vmatpush.msra.mxu0 %v1826
  %1901 = vmatpush.msra.mxu0 %v1825
  %1902 = vmatpush.msra.mxu0 %v1824
  %1903 = vmatpush.msra.mxu0 %v1823
  %1904 = vmatpush.msra.mxu0 %v1822
  %1905 = vmatpush.msra.mxu0 %v1821
  %1906 = vmatpush.msra.mxu0 %v1820
  %1907 = vmatpush.msra.mxu0 %v1819
  %1908 = vmatpush.msra.mxu0 %v1818
  %1909 = vmatpush.msra.mxu0 %v1817
  %1910 = vmatpush.msra.mxu0 %v1816
  %1911 = vmatpush.msra.mxu0 %v1815
  %1912 = vmatmul.f32.gmra.mxu0 %v1879
  %v1913 = vpop.f32.mrf.mxu0
  %v1914 = vadd.f32 %v1883, %v1913
  %1915 = vmatmul.f32.gmra.mxu0 %v1880
  %v1916 = vpop.f32.mrf.mxu0
  %v1917 = vadd.f32 %v1883, %v1916
  %1918 = vmatmul.f32.gmra.mxu0 %v1881
  %v1919 = vpop.f32.mrf.mxu0
  %v1920 = vadd.f32 %v1883, %v1919
  %1921 = vmatmul.f32.gmra.mxu0 %v1882
  %v1922 = vpop.f32.mrf.mxu0
  %v1923 = vadd.f32 %v1883, %v1922
  %1924 = vdwg.mxu0
  %1925 = vmatpush.msra.mxu0 0.0
  %1926 = vmatpush.msra.mxu0 0.0
  %1927 = vmatpush.msra.mxu0 0.0
  %1928 = vmatpush.msra.mxu0 0.0
  %1929 = vmatpush.msra.mxu0 0.0
  %1930 = vmatpush.msra.mxu0 0.0
  %1931 = vmatpush.msra.mxu0 0.0
  %1932 = vmatpush.msra.mxu0 0.0
  %1933 = vmatpush.msra.mxu0 %v1838
  %1934 = vmatpush.msra.mxu0 %v1837
  %1935 = vmatpush.msra.mxu0 %v1836
  %1936 = vmatpush.msra.mxu0 %v1835
  %1937 = vmatpush.msra.mxu0 %v1834
  %1938 = vmatpush.msra.mxu0 %v1833
  %1939 = vmatpush.msra.mxu0 %v1832
  %1940 = vmatpush.msra.mxu0 %v1831
  %1941 = vmatmul.f32.gmra.mxu0 %v1885
  %v1942 = vpop.f32.mrf.mxu0
  %v1943 = vadd.f32 %v1914, %v1942
  %1944 = vmatmul.f32.gmra.mxu0 %v1888
  %v1945 = vpop.f32.mrf.mxu0
  %v1946 = vadd.f32 %v1917, %v1945
  %1947 = vmatmul.f32.gmra.mxu0 %v1891
  %v1948 = vpop.f32.mrf.mxu0
  %v1949 = vadd.f32 %v1920, %v1948
  %1950 = vmatmul.f32.gmra.mxu0 %v1894
  %v1951 = vpop.f32.mrf.mxu0
  %v1952 = vadd.f32 %v1923, %v1951
  %1953 = vdwg.mxu0
  %s1954 = scalar_lea.vmem %s2, 1536
  %v1955 = vld [vmem:[%s1954] sm:$0xff]
  %v1956 = vld [vmem:[%s1954 + $0x8] sm:$0xff]
  %v1957 = vld [vmem:[%s1954 + $0x10] sm:$0xff]
  %v1958 = vld [vmem:[%s1954 + $0x18] sm:$0xff]
  %v1959 = vld [vmem:[%s1954 + $0x20] sm:$0xff]
  %v1960 = vld [vmem:[%s1954 + $0x28] sm:$0xff]
  %v1961 = vld [vmem:[%s1954 + $0x30] sm:$0xff]
  %v1962 = vld [vmem:[%s1954 + $0x38] sm:$0xff]
  %v1963 = vld [vmem:[%s1954 + $0x40] sm:$0xff]
  %v1964 = vld [vmem:[%s1954 + $0x48] sm:$0xff]
  %v1965 = vld [vmem:[%s1954 + $0x50] sm:$0xff]
  %v1966 = vld [vmem:[%s1954 + $0x58] sm:$0xff]
  %v1967 = vld [vmem:[%s1954 + $0x60] sm:$0xff]
  %v1968 = vld [vmem:[%s1954 + $0x68] sm:$0xff]
  %v1969 = vld [vmem:[%s1954 + $0x70] sm:$0xff]
  %v1970 = vld [vmem:[%s1954 + $0x78] sm:$0xff]
  %v1971 = vld [vmem:[%s1954 + $0x80] sm:$0xff]
  %v1972 = vld [vmem:[%s1954 + $0x88] sm:$0xff]
  %v1973 = vld [vmem:[%s1954 + $0x90] sm:$0xff]
  %v1974 = vld [vmem:[%s1954 + $0x98] sm:$0xff]
  %v1975 = vld [vmem:[%s1954 + $0xa0] sm:$0xff]
  %v1976 = vld [vmem:[%s1954 + $0xa8] sm:$0xff]
  %v1977 = vld [vmem:[%s1954 + $0xb0] sm:$0xff]
  %v1978 = vld [vmem:[%s1954 + $0xb8] sm:$0xff]
  %v1979 = vld [vmem:[%s1954 + $0xc0] sm:$0xff]
  %v1980 = vld [vmem:[%s1954 + $0xc8] sm:$0xff]
  %v1981 = vld [vmem:[%s1954 + $0xd0] sm:$0xff]
  %v1982 = vld [vmem:[%s1954 + $0xd8] sm:$0xff]
  %v1983 = vld [vmem:[%s1954 + $0xe0] sm:$0xff]
  %v1984 = vld [vmem:[%s1954 + $0xe8] sm:$0xff]
  %v1985 = vld [vmem:[%s1954 + $0xf0] sm:$0xff]
  %v1986 = vld [vmem:[%s1954 + $0xf8] sm:$0xff]
  %1987 = vmatpush.msra.mxu0 %v1970
  %1988 = vmatpush.msra.mxu0 %v1969
  %1989 = vmatpush.msra.mxu0 %v1968
  %1990 = vmatpush.msra.mxu0 %v1967
  %1991 = vmatpush.msra.mxu0 %v1966
  %1992 = vmatpush.msra.mxu0 %v1965
  %1993 = vmatpush.msra.mxu0 %v1964
  %1994 = vmatpush.msra.mxu0 %v1963
  %1995 = vmatpush.msra.mxu0 %v1962
  %1996 = vmatpush.msra.mxu0 %v1961
  %1997 = vmatpush.msra.mxu0 %v1960
  %1998 = vmatpush.msra.mxu0 %v1959
  %1999 = vmatpush.msra.mxu0 %v1958
  %2000 = vmatpush.msra.mxu0 %v1957
  %2001 = vmatpush.msra.mxu0 %v1956
  %2002 = vmatpush.msra.mxu0 %v1955
  %2003 = vmatmul.f32.gmra.mxu0 %v1804
  %v2004 = vpop.f32.mrf.mxu0
  %v2005 = vadd.f32 0.0, %v2004
  %2006 = vmatmul.f32.gmra.mxu0 %v1806
  %v2007 = vpop.f32.mrf.mxu0
  %v2008 = vadd.f32 0.0, %v2007
  %2009 = vmatmul.f32.gmra.mxu0 %v1808
  %v2010 = vpop.f32.mrf.mxu0
  %v2011 = vadd.f32 0.0, %v2010
  %2012 = vmatmul.f32.gmra.mxu0 %v1810
  %v2013 = vpop.f32.mrf.mxu0
  %v2014 = vadd.f32 0.0, %v2013
  %2015 = vdwg.mxu0
  %2016 = vmatpush.msra.mxu0 %v1986
  %2017 = vmatpush.msra.mxu0 %v1985
  %2018 = vmatpush.msra.mxu0 %v1984
  %2019 = vmatpush.msra.mxu0 %v1983
  %2020 = vmatpush.msra.mxu0 %v1982
  %2021 = vmatpush.msra.mxu0 %v1981
  %2022 = vmatpush.msra.mxu0 %v1980
  %2023 = vmatpush.msra.mxu0 %v1979
  %2024 = vmatpush.msra.mxu0 %v1978
  %2025 = vmatpush.msra.mxu0 %v1977
  %2026 = vmatpush.msra.mxu0 %v1976
  %2027 = vmatpush.msra.mxu0 %v1975
  %2028 = vmatpush.msra.mxu0 %v1974
  %2029 = vmatpush.msra.mxu0 %v1973
  %2030 = vmatpush.msra.mxu0 %v1972
  %2031 = vmatpush.msra.mxu0 %v1971
  %2032 = vmatmul.f32.gmra.mxu0 %v1805
  %v2033 = vpop.f32.mrf.mxu0
  %v2034 = vadd.f32 %v2005, %v2033
  %2035 = vmatmul.f32.gmra.mxu0 %v1807
  %v2036 = vpop.f32.mrf.mxu0
  %v2037 = vadd.f32 %v2008, %v2036
  %2038 = vmatmul.f32.gmra.mxu0 %v1809
  %v2039 = vpop.f32.mrf.mxu0
  %v2040 = vadd.f32 %v2011, %v2039
  %2041 = vmatmul.f32.gmra.mxu0 %v1811
  %v2042 = vpop.f32.mrf.mxu0
  %v2043 = vadd.f32 %v2014, %v2042
  %2044 = vdwg.mxu0
  %s2045 = scalar_lea.vmem %s2, 1792
  %v2046 = vld [vmem:[%s2045] sm:$0xff]
  %v2047 = vld [vmem:[%s2045 + $0x8] sm:$0xff]
  %v2048 = vld [vmem:[%s2045 + $0x10] sm:$0xff]
  %v2049 = vld [vmem:[%s2045 + $0x18] sm:$0xff]
  %v2050 = vld [vmem:[%s2045 + $0x20] sm:$0xff]
  %v2051 = vld [vmem:[%s2045 + $0x28] sm:$0xff]
  %v2052 = vld [vmem:[%s2045 + $0x30] sm:$0xff]
  %v2053 = vld [vmem:[%s2045 + $0x38] sm:$0xff]
  %v2054 = vld [vmem:[%s2045 + $0x40] sm:$0xff]
  %v2055 = vld [vmem:[%s2045 + $0x48] sm:$0xff]
  %v2056 = vld [vmem:[%s2045 + $0x50] sm:$0xff]
  %v2057 = vld [vmem:[%s2045 + $0x58] sm:$0xff]
  %v2058 = vld [vmem:[%s2045 + $0x60] sm:$0xff]
  %v2059 = vld [vmem:[%s2045 + $0x68] sm:$0xff]
  %v2060 = vld [vmem:[%s2045 + $0x70] sm:$0xff]
  %v2061 = vld [vmem:[%s2045 + $0x78] sm:$0xff]
  %v2062 = vld [vmem:[%s2045 + $0x80] sm:$0xff]
  %v2063 = vld [vmem:[%s2045 + $0x88] sm:$0xff]
  %v2064 = vld [vmem:[%s2045 + $0x90] sm:$0xff]
  %v2065 = vld [vmem:[%s2045 + $0x98] sm:$0xff]
  %v2066 = vld [vmem:[%s2045 + $0xa0] sm:$0xff]
  %v2067 = vld [vmem:[%s2045 + $0xa8] sm:$0xff]
  %v2068 = vld [vmem:[%s2045 + $0xb0] sm:$0xff]
  %v2069 = vld [vmem:[%s2045 + $0xb8] sm:$0xff]
  %v2070 = vld [vmem:[%s2045 + $0xc0] sm:$0xff]
  %v2071 = vld [vmem:[%s2045 + $0xc8] sm:$0xff]
  %v2072 = vld [vmem:[%s2045 + $0xd0] sm:$0xff]
  %v2073 = vld [vmem:[%s2045 + $0xd8] sm:$0xff]
  %v2074 = vld [vmem:[%s2045 + $0xe0] sm:$0xff]
  %v2075 = vld [vmem:[%s2045 + $0xe8] sm:$0xff]
  %v2076 = vld [vmem:[%s2045 + $0xf0] sm:$0xff]
  %v2077 = vld [vmem:[%s2045 + $0xf8] sm:$0xff]
  %2078 = vmatpush.msra.mxu0 %v2061
  %2079 = vmatpush.msra.mxu0 %v2060
  %2080 = vmatpush.msra.mxu0 %v2059
  %2081 = vmatpush.msra.mxu0 %v2058
  %2082 = vmatpush.msra.mxu0 %v2057
  %2083 = vmatpush.msra.mxu0 %v2056
  %2084 = vmatpush.msra.mxu0 %v2055
  %2085 = vmatpush.msra.mxu0 %v2054
  %2086 = vmatpush.msra.mxu0 %v2053
  %2087 = vmatpush.msra.mxu0 %v2052
  %2088 = vmatpush.msra.mxu0 %v2051
  %2089 = vmatpush.msra.mxu0 %v2050
  %2090 = vmatpush.msra.mxu0 %v2049
  %2091 = vmatpush.msra.mxu0 %v2048
  %2092 = vmatpush.msra.mxu0 %v2047
  %2093 = vmatpush.msra.mxu0 %v2046
  %2094 = vmatmul.f32.gmra.mxu0 %v1804
  %v2095 = vpop.f32.mrf.mxu0
  %v2096 = vadd.f32 0.0, %v2095
  %2097 = vmatmul.f32.gmra.mxu0 %v1806
  %v2098 = vpop.f32.mrf.mxu0
  %v2099 = vadd.f32 0.0, %v2098
  %2100 = vmatmul.f32.gmra.mxu0 %v1808
  %v2101 = vpop.f32.mrf.mxu0
  %v2102 = vadd.f32 0.0, %v2101
  %2103 = vmatmul.f32.gmra.mxu0 %v1810
  %v2104 = vpop.f32.mrf.mxu0
  %v2105 = vadd.f32 0.0, %v2104
  %2106 = vdwg.mxu0
  %2107 = vmatpush.msra.mxu0 %v2077
  %2108 = vmatpush.msra.mxu0 %v2076
  %2109 = vmatpush.msra.mxu0 %v2075
  %2110 = vmatpush.msra.mxu0 %v2074
  %2111 = vmatpush.msra.mxu0 %v2073
  %2112 = vmatpush.msra.mxu0 %v2072
  %2113 = vmatpush.msra.mxu0 %v2071
  %2114 = vmatpush.msra.mxu0 %v2070
  %2115 = vmatpush.msra.mxu0 %v2069
  %2116 = vmatpush.msra.mxu0 %v2068
  %2117 = vmatpush.msra.mxu0 %v2067
  %2118 = vmatpush.msra.mxu0 %v2066
  %2119 = vmatpush.msra.mxu0 %v2065
  %2120 = vmatpush.msra.mxu0 %v2064
  %2121 = vmatpush.msra.mxu0 %v2063
  %2122 = vmatpush.msra.mxu0 %v2062
  %2123 = vmatmul.f32.gmra.mxu0 %v1805
  %v2124 = vpop.f32.mrf.mxu0
  %v2125 = vadd.f32 %v2096, %v2124
  %2126 = vmatmul.f32.gmra.mxu0 %v1807
  %v2127 = vpop.f32.mrf.mxu0
  %v2128 = vadd.f32 %v2099, %v2127
  %2129 = vmatmul.f32.gmra.mxu0 %v1809
  %v2130 = vpop.f32.mrf.mxu0
  %v2131 = vadd.f32 %v2102, %v2130
  %2132 = vmatmul.f32.gmra.mxu0 %v1811
  %v2133 = vpop.f32.mrf.mxu0
  %v2134 = vadd.f32 %v2105, %v2133
  %2135 = vdwg.mxu0
  %s2136 = scalar_lea.vmem %s2, 2048
  %v2137 = vld [vmem:[%s2136] sm:$0xff]
  %v2138 = vld [vmem:[%s2136 + $0x8] sm:$0xff]
  %v2139 = vld [vmem:[%s2136 + $0x10] sm:$0xff]
  %v2140 = vld [vmem:[%s2136 + $0x18] sm:$0xff]
  %v2141 = vld [vmem:[%s2136 + $0x20] sm:$0xff]
  %v2142 = vld [vmem:[%s2136 + $0x28] sm:$0xff]
  %v2143 = vld [vmem:[%s2136 + $0x30] sm:$0xff]
  %v2144 = vld [vmem:[%s2136 + $0x38] sm:$0xff]
  %v2145 = vld [vmem:[%s2136 + $0x40] sm:$0xff]
  %v2146 = vld [vmem:[%s2136 + $0x48] sm:$0xff]
  %v2147 = vld [vmem:[%s2136 + $0x50] sm:$0xff]
  %v2148 = vld [vmem:[%s2136 + $0x58] sm:$0xff]
  %v2149 = vld [vmem:[%s2136 + $0x60] sm:$0xff]
  %v2150 = vld [vmem:[%s2136 + $0x68] sm:$0xff]
  %v2151 = vld [vmem:[%s2136 + $0x70] sm:$0xff]
  %v2152 = vld [vmem:[%s2136 + $0x78] sm:$0xff]
  %v2153 = vld [vmem:[%s2136 + $0x80] sm:$0xff]
  %v2154 = vld [vmem:[%s2136 + $0x88] sm:$0xff]
  %v2155 = vld [vmem:[%s2136 + $0x90] sm:$0xff]
  %v2156 = vld [vmem:[%s2136 + $0x98] sm:$0xff]
  %v2157 = vld [vmem:[%s2136 + $0xa0] sm:$0xff]
  %v2158 = vld [vmem:[%s2136 + $0xa8] sm:$0xff]
  %v2159 = vld [vmem:[%s2136 + $0xb0] sm:$0xff]
  %v2160 = vld [vmem:[%s2136 + $0xb8] sm:$0xff]
  %v2161 = vld [vmem:[%s2136 + $0xc0] sm:$0xff]
  %v2162 = vld [vmem:[%s2136 + $0xc8] sm:$0xff]
  %v2163 = vld [vmem:[%s2136 + $0xd0] sm:$0xff]
  %v2164 = vld [vmem:[%s2136 + $0xd8] sm:$0xff]
  %v2165 = vld [vmem:[%s2136 + $0xe0] sm:$0xff]
  %v2166 = vld [vmem:[%s2136 + $0xe8] sm:$0xff]
  %v2167 = vld [vmem:[%s2136 + $0xf0] sm:$0xff]
  %v2168 = vld [vmem:[%s2136 + $0xf8] sm:$0xff]
  %2169 = vmatpush.msra.mxu0 %v2152
  %2170 = vmatpush.msra.mxu0 %v2151
  %2171 = vmatpush.msra.mxu0 %v2150
  %2172 = vmatpush.msra.mxu0 %v2149
  %2173 = vmatpush.msra.mxu0 %v2148
  %2174 = vmatpush.msra.mxu0 %v2147
  %2175 = vmatpush.msra.mxu0 %v2146
  %2176 = vmatpush.msra.mxu0 %v2145
  %2177 = vmatpush.msra.mxu0 %v2144
  %2178 = vmatpush.msra.mxu0 %v2143
  %2179 = vmatpush.msra.mxu0 %v2142
  %2180 = vmatpush.msra.mxu0 %v2141
  %2181 = vmatpush.msra.mxu0 %v2140
  %2182 = vmatpush.msra.mxu0 %v2139
  %2183 = vmatpush.msra.mxu0 %v2138
  %2184 = vmatpush.msra.mxu0 %v2137
  %2185 = vmatmul.f32.gmra.mxu0 %v1804
  %v2186 = vpop.f32.mrf.mxu0
  %v2187 = vadd.f32 0.0, %v2186
  %2188 = vmatmul.f32.gmra.mxu0 %v1806
  %v2189 = vpop.f32.mrf.mxu0
  %v2190 = vadd.f32 0.0, %v2189
  %2191 = vmatmul.f32.gmra.mxu0 %v1808
  %v2192 = vpop.f32.mrf.mxu0
  %v2193 = vadd.f32 0.0, %v2192
  %2194 = vmatmul.f32.gmra.mxu0 %v1810
  %v2195 = vpop.f32.mrf.mxu0
  %v2196 = vadd.f32 0.0, %v2195
  %2197 = vdwg.mxu0
  %2198 = vmatpush.msra.mxu0 %v2168
  %2199 = vmatpush.msra.mxu0 %v2167
  %2200 = vmatpush.msra.mxu0 %v2166
  %2201 = vmatpush.msra.mxu0 %v2165
  %2202 = vmatpush.msra.mxu0 %v2164
  %2203 = vmatpush.msra.mxu0 %v2163
  %2204 = vmatpush.msra.mxu0 %v2162
  %2205 = vmatpush.msra.mxu0 %v2161
  %2206 = vmatpush.msra.mxu0 %v2160
  %2207 = vmatpush.msra.mxu0 %v2159
  %2208 = vmatpush.msra.mxu0 %v2158
  %2209 = vmatpush.msra.mxu0 %v2157
  %2210 = vmatpush.msra.mxu0 %v2156
  %2211 = vmatpush.msra.mxu0 %v2155
  %2212 = vmatpush.msra.mxu0 %v2154
  %2213 = vmatpush.msra.mxu0 %v2153
  %2214 = vmatmul.f32.gmra.mxu0 %v1805
  %v2215 = vpop.f32.mrf.mxu0
  %v2216 = vadd.f32 %v2187, %v2215
  %2217 = vmatmul.f32.gmra.mxu0 %v1807
  %v2218 = vpop.f32.mrf.mxu0
  %v2219 = vadd.f32 %v2190, %v2218
  %2220 = vmatmul.f32.gmra.mxu0 %v1809
  %v2221 = vpop.f32.mrf.mxu0
  %v2222 = vadd.f32 %v2193, %v2221
  %2223 = vmatmul.f32.gmra.mxu0 %v1811
  %v2224 = vpop.f32.mrf.mxu0
  %v2225 = vadd.f32 %v2196, %v2224
  %2226 = vdwg.mxu0
  %v2227 = vrot.slane %v2034, 7
  %v2228 = vrot.slane %v2037, 7
  %v2229 = vrot.slane %v2040, 7
  %v2230 = vrot.slane %v2043, 7
  %v2231 = vsel %vm66, %v2229, %v2230
  %v2232 = vsel %vm66, %v2228, %v2229
  %v2233 = vsel %vm66, %v2227, %v2228
  %v2234 = vsel %vm66, %v2230, %v2227
  %v2235 = vmul.f32 %v2234, %v74
  %v2236 = vmul.f32 %v2233, %v79
  %v2237 = vmul.f32 %v2232, %v84
  %v2238 = vmul.f32 %v2231, %v89
  %v2239 = vadd.f32 %v2235, %v2125
  %v2240 = vadd.f32 %v2236, %v2128
  %v2241 = vadd.f32 %v2237, %v2131
  %v2242 = vadd.f32 %v2238, %v2134
  %v2243 = vrot.slane %v2216, 1
  %v2244 = vrot.slane %v2219, 1
  %v2245 = vrot.slane %v2222, 1
  %v2246 = vrot.slane %v2225, 1
  %v2247 = vsel %vm99, %v2245, %v2246
  %v2248 = vsel %vm99, %v2244, %v2245
  %v2249 = vsel %vm99, %v2243, %v2244
  %v2250 = vsel %vm99, %v2246, %v2243
  %v2251 = vmul.f32 %v2249, %v106
  %v2252 = vmul.f32 %v2248, %v110
  %v2253 = vmul.f32 %v2247, %v114
  %v2254 = vmul.f32 %v2250, %v118
  %v2255 = vadd.f32 %v2239, %v2251
  %v2256 = vadd.f32 %v2240, %v2252
  %v2257 = vadd.f32 %v2241, %v2253
  %v2258 = vadd.f32 %v2242, %v2254
  %v2259 = vperm.slane %v1813, 1
  %v2260 = vadd.f32 %v2255, %v2259
  %v2261 = vadd.f32 %v2256, %v2259
  %v2262 = vadd.f32 %v2257, %v2259
  %v2263 = vadd.f32 %v2258, %v2259
  %v2264 = vadd.f32 %v1943, %v2260
  %v2265 = vadd.f32 %v1946, %v2261
  %v2266 = vadd.f32 %v1949, %v2262
  %v2267 = vadd.f32 %v1952, %v2263
  %v2268 = vmul.f32 %v2264, 0.1
  %v2269 = vmul.f32 %v2265, 0.1
  %v2270 = vmul.f32 %v2266, 0.1
  %v2271 = vmul.f32 %v2267, 0.1
  %v2272 = vmax.f32 %v2264, %v2268
  %v2273 = vmax.f32 %v2265, %v2269
  %v2274 = vmax.f32 %v2266, %v2270
  %v2275 = vmax.f32 %v2267, %v2271
  %s2276 = scalar_lea.vmem %s1, 960
  %v2277 = vld [vmem:[%s2276] sm:$0xff]
  %v2278 = vld [vmem:[%s2276 + $0x8] sm:$0xff]
  %v2279 = vld [vmem:[%s2276 + $0x10] sm:$0xff]
  %v2280 = vld [vmem:[%s2276 + $0x18] sm:$0xff]
  %v2281 = vld [vmem:[%s2276 + $0x20] sm:$0xff]
  %v2282 = vld [vmem:[%s2276 + $0x28] sm:$0xff]
  %v2283 = vld [vmem:[%s2276 + $0x30] sm:$0xff]
  %v2284 = vld [vmem:[%s2276 + $0x38] sm:$0xff]
  %v2285 = vld [vmem:[%s2276 + $0x40] sm:$0xff]
  %v2286 = vld [vmem:[%s2276 + $0x48] sm:$0xff]
  %v2287 = vld [vmem:[%s2276 + $0x50] sm:$0xff]
  %v2288 = vld [vmem:[%s2276 + $0x58] sm:$0xff]
  %v2289 = vld [vmem:[%s2276 + $0x60] sm:$0xff]
  %v2290 = vld [vmem:[%s2276 + $0x68] sm:$0xff]
  %v2291 = vld [vmem:[%s2276 + $0x70] sm:$0xff]
  %v2292 = vld [vmem:[%s2276 + $0x78] sm:$0xff]
  %v2293 = vld [vmem:[%s2276 + $0x80] sm:$0xff]
  %v2294 = vld [vmem:[%s2276 + $0x88] sm:$0xff]
  %v2295 = vld [vmem:[%s2276 + $0x90] sm:$0xff]
  %v2296 = vld [vmem:[%s2276 + $0x98] sm:$0xff]
  %v2297 = vld [vmem:[%s2276 + $0xa0] sm:$0xff]
  %v2298 = vld [vmem:[%s2276 + $0xa8] sm:$0xff]
  %v2299 = vld [vmem:[%s2276 + $0xb0] sm:$0xff]
  %v2300 = vld [vmem:[%s2276 + $0xb8] sm:$0xff]
  %v2301 = vrot.slane %v2272, 7
  %v2302 = vrot.slane %v2273, 7
  %v2303 = vrot.slane %v2274, 7
  %v2304 = vrot.slane %v2275, 7
  %v2305 = vsel %vm66, %v2303, %v2304
  %v2306 = vsel %vm66, %v2302, %v2303
  %v2307 = vsel %vm66, %v2301, %v2302
  %v2308 = vsel %vm66, %v2304, %v2301
  %v2309 = vmul.f32 %v2308, %v74
  %v2310 = vmul.f32 %v2307, %v79
  %v2311 = vmul.f32 %v2306, %v84
  %v2312 = vmul.f32 %v2305, %v89
  %v2313 = vrot.slane %v2272, 1
  %v2314 = vrot.slane %v2273, 1
  %v2315 = vrot.slane %v2274, 1
  %v2316 = vrot.slane %v2275, 1
  %v2317 = vsel %vm99, %v2315, %v2316
  %v2318 = vsel %vm99, %v2314, %v2315
  %v2319 = vsel %vm99, %v2313, %v2314
  %v2320 = vsel %vm99, %v2316, %v2313
  %v2321 = vmul.f32 %v2319, %v106
  %v2322 = vmul.f32 %v2318, %v110
  %v2323 = vmul.f32 %v2317, %v114
  %v2324 = vmul.f32 %v2320, %v118
  %2329 = vrot.lane.b32.xlu0 %v2272, 64
  %v2330 = vpop.permute.xlu0 %2329
  %2331 = vrot.lane.b32.xlu0 %v2273, 64
  %v2332 = vpop.permute.xlu0 %2331
  %2333 = vrot.lane.b32.xlu0 %v2274, 64
  %v2334 = vpop.permute.xlu0 %2333
  %2335 = vrot.lane.b32.xlu0 %v2275, 64
  %v2336 = vpop.permute.xlu0 %2335
  %v2341 = vsel %vm136, %v2309, %v2330
  %v2342 = vsel %vm136, %v2310, %v2332
  %v2343 = vsel %vm136, %v2311, %v2334
  %v2344 = vsel %vm136, %v2312, %v2336
  %v2345 = vperm.slane %v1813, 2
  %v2347 = vsel %vm136, %v2321, 0
  %v2350 = vsel %vm136, %v2322, 0
  %v2353 = vsel %vm136, %v2323, 0
  %v2356 = vsel %vm136, %v2324, 0
  %2358 = vmatpush.msra.mxu0 %v2292
  %2359 = vmatpush.msra.mxu0 %v2291
  %2360 = vmatpush.msra.mxu0 %v2290
  %2361 = vmatpush.msra.mxu0 %v2289
  %2362 = vmatpush.msra.mxu0 %v2288
  %2363 = vmatpush.msra.mxu0 %v2287
  %2364 = vmatpush.msra.mxu0 %v2286
  %2365 = vmatpush.msra.mxu0 %v2285
  %2366 = vmatpush.msra.mxu0 %v2284
  %2367 = vmatpush.msra.mxu0 %v2283
  %2368 = vmatpush.msra.mxu0 %v2282
  %2369 = vmatpush.msra.mxu0 %v2281
  %2370 = vmatpush.msra.mxu0 %v2280
  %2371 = vmatpush.msra.mxu0 %v2279
  %2372 = vmatpush.msra.mxu0 %v2278
  %2373 = vmatpush.msra.mxu0 %v2277
  %2374 = vmatmul.f32.gmra.mxu0 %v2341
  %v2375 = vpop.f32.mrf.mxu0
  %v2376 = vadd.f32 %v2345, %v2375
  %2377 = vmatmul.f32.gmra.mxu0 %v2342
  %v2378 = vpop.f32.mrf.mxu0
  %v2379 = vadd.f32 %v2345, %v2378
  %2380 = vmatmul.f32.gmra.mxu0 %v2343
  %v2381 = vpop.f32.mrf.mxu0
  %v2382 = vadd.f32 %v2345, %v2381
  %2383 = vmatmul.f32.gmra.mxu0 %v2344
  %v2384 = vpop.f32.mrf.mxu0
  %v2385 = vadd.f32 %v2345, %v2384
  %2386 = vdwg.mxu0
  %2387 = vmatpush.msra.mxu0 0.0
  %2388 = vmatpush.msra.mxu0 0.0
  %2389 = vmatpush.msra.mxu0 0.0
  %2390 = vmatpush.msra.mxu0 0.0
  %2391 = vmatpush.msra.mxu0 0.0
  %2392 = vmatpush.msra.mxu0 0.0
  %2393 = vmatpush.msra.mxu0 0.0
  %2394 = vmatpush.msra.mxu0 0.0
  %2395 = vmatpush.msra.mxu0 %v2300
  %2396 = vmatpush.msra.mxu0 %v2299
  %2397 = vmatpush.msra.mxu0 %v2298
  %2398 = vmatpush.msra.mxu0 %v2297
  %2399 = vmatpush.msra.mxu0 %v2296
  %2400 = vmatpush.msra.mxu0 %v2295
  %2401 = vmatpush.msra.mxu0 %v2294
  %2402 = vmatpush.msra.mxu0 %v2293
  %2403 = vmatmul.f32.gmra.mxu0 %v2347
  %v2404 = vpop.f32.mrf.mxu0
  %v2405 = vadd.f32 %v2376, %v2404
  %2406 = vmatmul.f32.gmra.mxu0 %v2350
  %v2407 = vpop.f32.mrf.mxu0
  %v2408 = vadd.f32 %v2379, %v2407
  %2409 = vmatmul.f32.gmra.mxu0 %v2353
  %v2410 = vpop.f32.mrf.mxu0
  %v2411 = vadd.f32 %v2382, %v2410
  %2412 = vmatmul.f32.gmra.mxu0 %v2356
  %v2413 = vpop.f32.mrf.mxu0
  %v2414 = vadd.f32 %v2385, %v2413
  %2415 = vdwg.mxu0
  %v2416 = vadd.f32 %v2405, %v1943
  %v2417 = vadd.f32 %v2408, %v1946
  %v2418 = vadd.f32 %v2411, %v1949
  %v2419 = vadd.f32 %v2414, %v1952
  %v2420 = vmul.f32 %v2260, 0.1
  %v2421 = vmul.f32 %v2261, 0.1
  %v2422 = vmul.f32 %v2262, 0.1
  %v2423 = vmul.f32 %v2263, 0.1
  %v2424 = vmax.f32 %v2260, %v2420
  %v2425 = vmax.f32 %v2261, %v2421
  %v2426 = vmax.f32 %v2262, %v2422
  %v2427 = vmax.f32 %v2263, %v2423
  %s2428 = scalar_lea.vmem %s3, 768
  %v2429 = vld [vmem:[%s2428] sm:$0xff]
  %v2430 = vld [vmem:[%s2428 + $0x8] sm:$0xff]
  %v2431 = vld [vmem:[%s2428 + $0x10] sm:$0xff]
  %v2432 = vld [vmem:[%s2428 + $0x18] sm:$0xff]
  %v2433 = vld [vmem:[%s2428 + $0x20] sm:$0xff]
  %v2434 = vld [vmem:[%s2428 + $0x28] sm:$0xff]
  %v2435 = vld [vmem:[%s2428 + $0x30] sm:$0xff]
  %v2436 = vld [vmem:[%s2428 + $0x38] sm:$0xff]
  %v2437 = vld [vmem:[%s2428 + $0x40] sm:$0xff]
  %v2438 = vld [vmem:[%s2428 + $0x48] sm:$0xff]
  %v2439 = vld [vmem:[%s2428 + $0x50] sm:$0xff]
  %v2440 = vld [vmem:[%s2428 + $0x58] sm:$0xff]
  %v2441 = vld [vmem:[%s2428 + $0x60] sm:$0xff]
  %v2442 = vld [vmem:[%s2428 + $0x68] sm:$0xff]
  %v2443 = vld [vmem:[%s2428 + $0x70] sm:$0xff]
  %v2444 = vld [vmem:[%s2428 + $0x78] sm:$0xff]
  %v2445 = vld [vmem:[%s2428 + $0x80] sm:$0xff]
  %v2446 = vld [vmem:[%s2428 + $0x88] sm:$0xff]
  %v2447 = vld [vmem:[%s2428 + $0x90] sm:$0xff]
  %v2448 = vld [vmem:[%s2428 + $0x98] sm:$0xff]
  %v2449 = vld [vmem:[%s2428 + $0xa0] sm:$0xff]
  %v2450 = vld [vmem:[%s2428 + $0xa8] sm:$0xff]
  %v2451 = vld [vmem:[%s2428 + $0xb0] sm:$0xff]
  %v2452 = vld [vmem:[%s2428 + $0xb8] sm:$0xff]
  %v2453 = vld [vmem:[%s2428 + $0xc0] sm:$0xff]
  %v2454 = vld [vmem:[%s2428 + $0xc8] sm:$0xff]
  %v2455 = vld [vmem:[%s2428 + $0xd0] sm:$0xff]
  %v2456 = vld [vmem:[%s2428 + $0xd8] sm:$0xff]
  %v2457 = vld [vmem:[%s2428 + $0xe0] sm:$0xff]
  %v2458 = vld [vmem:[%s2428 + $0xe8] sm:$0xff]
  %v2459 = vld [vmem:[%s2428 + $0xf0] sm:$0xff]
  %v2460 = vld [vmem:[%s2428 + $0xf8] sm:$0xff]
  %v2461 = vld [vmem:[%s2428 + $0x100] sm:$0xff]
  %v2462 = vld [vmem:[%s2428 + $0x108] sm:$0xff]
  %v2463 = vld [vmem:[%s2428 + $0x110] sm:$0xff]
  %v2464 = vld [vmem:[%s2428 + $0x118] sm:$0xff]
  %v2465 = vld [vmem:[%s2428 + $0x120] sm:$0xff]
  %v2466 = vld [vmem:[%s2428 + $0x128] sm:$0xff]
  %v2467 = vld [vmem:[%s2428 + $0x130] sm:$0xff]
  %v2468 = vld [vmem:[%s2428 + $0x138] sm:$0xff]
  %v2469 = vld [vmem:[%s2428 + $0x140] sm:$0xff]
  %v2470 = vld [vmem:[%s2428 + $0x148] sm:$0xff]
  %v2471 = vld [vmem:[%s2428 + $0x150] sm:$0xff]
  %v2472 = vld [vmem:[%s2428 + $0x158] sm:$0xff]
  %v2473 = vld [vmem:[%s2428 + $0x160] sm:$0xff]
  %v2474 = vld [vmem:[%s2428 + $0x168] sm:$0xff]
  %v2475 = vld [vmem:[%s2428 + $0x170] sm:$0xff]
  %v2476 = vld [vmem:[%s2428 + $0x178] sm:$0xff]
  %v2477 = vrot.slane %v2424, 7
  %v2478 = vrot.slane %v2425, 7
  %v2479 = vrot.slane %v2426, 7
  %v2480 = vrot.slane %v2427, 7
  %v2481 = vsel %vm66, %v2479, %v2480
  %v2482 = vsel %vm66, %v2478, %v2479
  %v2483 = vsel %vm66, %v2477, %v2478
  %v2484 = vsel %vm66, %v2480, %v2477
  %v2485 = vmul.f32 %v2484, %v74
  %v2486 = vmul.f32 %v2483, %v79
  %v2487 = vmul.f32 %v2482, %v84
  %v2488 = vmul.f32 %v2481, %v89
  %v2489 = vrot.slane %v2424, 1
  %v2490 = vrot.slane %v2425, 1
  %v2491 = vrot.slane %v2426, 1
  %v2492 = vrot.slane %v2427, 1
  %v2493 = vsel %vm99, %v2491, %v2492
  %v2494 = vsel %vm99, %v2490, %v2491
  %v2495 = vsel %vm99, %v2489, %v2490
  %v2496 = vsel %vm99, %v2492, %v2489
  %v2497 = vmul.f32 %v2495, %v106
  %v2498 = vmul.f32 %v2494, %v110
  %v2499 = vmul.f32 %v2493, %v114
  %v2500 = vmul.f32 %v2496, %v118
  %2505 = vrot.lane.b32.xlu0 %v2424, 64
  %v2506 = vpop.permute.xlu0 %2505
  %2507 = vrot.lane.b32.xlu0 %v2425, 64
  %v2508 = vpop.permute.xlu0 %2507
  %2509 = vrot.lane.b32.xlu0 %v2426, 64
  %v2510 = vpop.permute.xlu0 %2509
  %2511 = vrot.lane.b32.xlu0 %v2427, 64
  %v2512 = vpop.permute.xlu0 %2511
  %v2517 = vsel %vm136, %v2485, %v2506
  %v2518 = vsel %vm136, %v2486, %v2508
  %v2519 = vsel %vm136, %v2487, %v2510
  %v2520 = vsel %vm136, %v2488, %v2512
  %v2522 = vperm.slane %v1813, 3
  %v2523 = vperm.slane %v1813, 7
  %v2526 = vperm.slane %v2522, 3
  %v2527 = vperm.slane %v2523, 3
  %v2529 = vsel %vm136, %v2497, 0
  %v2532 = vsel %vm136, %v2498, 0
  %v2535 = vsel %vm136, %v2499, 0
  %v2538 = vsel %vm136, %v2500, 0
  %2540 = vmatpush.msra.mxu0 %v2459
  %2541 = vmatpush.msra.mxu0 %v2457
  %2542 = vmatpush.msra.mxu0 %v2455
  %2543 = vmatpush.msra.mxu0 %v2453
  %2544 = vmatpush.msra.mxu0 %v2451
  %2545 = vmatpush.msra.mxu0 %v2449
  %2546 = vmatpush.msra.mxu0 %v2447
  %2547 = vmatpush.msra.mxu0 %v2445
  %2548 = vmatpush.msra.mxu0 %v2443
  %2549 = vmatpush.msra.mxu0 %v2441
  %2550 = vmatpush.msra.mxu0 %v2439
  %2551 = vmatpush.msra.mxu0 %v2437
  %2552 = vmatpush.msra.mxu0 %v2435
  %2553 = vmatpush.msra.mxu0 %v2433
  %2554 = vmatpush.msra.mxu0 %v2431
  %2555 = vmatpush.msra.mxu0 %v2429
  %2556 = vmatmul.f32.gmra.mxu0 %v2517
  %v2557 = vpop.f32.mrf.mxu0
  %v2558 = vadd.f32 %v2526, %v2557
  %2559 = vmatmul.f32.gmra.mxu0 %v2518
  %v2560 = vpop.f32.mrf.mxu0
  %v2561 = vadd.f32 %v2526, %v2560
  %2562 = vmatmul.f32.gmra.mxu0 %v2519
  %v2563 = vpop.f32.mrf.mxu0
  %v2564 = vadd.f32 %v2526, %v2563
  %2565 = vmatmul.f32.gmra.mxu0 %v2520
  %v2566 = vpop.f32.mrf.mxu0
  %v2567 = vadd.f32 %v2526, %v2566
  %2568 = vdwg.mxu0
  %2569 = vmatpush.msra.mxu0 0.0
  %2570 = vmatpush.msra.mxu0 0.0
  %2571 = vmatpush.msra.mxu0 0.0
  %2572 = vmatpush.msra.mxu0 0.0
  %2573 = vmatpush.msra.mxu0 0.0
  %2574 = vmatpush.msra.mxu0 0.0
  %2575 = vmatpush.msra.mxu0 0.0
  %2576 = vmatpush.msra.mxu0 0.0
  %2577 = vmatpush.msra.mxu0 %v2475
  %2578 = vmatpush.msra.mxu0 %v2473
  %2579 = vmatpush.msra.mxu0 %v2471
  %2580 = vmatpush.msra.mxu0 %v2469
  %2581 = vmatpush.msra.mxu0 %v2467
  %2582 = vmatpush.msra.mxu0 %v2465
  %2583 = vmatpush.msra.mxu0 %v2463
  %2584 = vmatpush.msra.mxu0 %v2461
  %2585 = vmatmul.f32.gmra.mxu0 %v2529
  %v2586 = vpop.f32.mrf.mxu0
  %v2587 = vadd.f32 %v2558, %v2586
  %2588 = vmatmul.f32.gmra.mxu0 %v2532
  %v2589 = vpop.f32.mrf.mxu0
  %v2590 = vadd.f32 %v2561, %v2589
  %2591 = vmatmul.f32.gmra.mxu0 %v2535
  %v2592 = vpop.f32.mrf.mxu0
  %v2593 = vadd.f32 %v2564, %v2592
  %2594 = vmatmul.f32.gmra.mxu0 %v2538
  %v2595 = vpop.f32.mrf.mxu0
  %v2596 = vadd.f32 %v2567, %v2595
  %2597 = vdwg.mxu0
  %2598 = vmatpush.msra.mxu0 %v2460
  %2599 = vmatpush.msra.mxu0 %v2458
  %2600 = vmatpush.msra.mxu0 %v2456
  %2601 = vmatpush.msra.mxu0 %v2454
  %2602 = vmatpush.msra.mxu0 %v2452
  %2603 = vmatpush.msra.mxu0 %v2450
  %2604 = vmatpush.msra.mxu0 %v2448
  %2605 = vmatpush.msra.mxu0 %v2446
  %2606 = vmatpush.msra.mxu0 %v2444
  %2607 = vmatpush.msra.mxu0 %v2442
  %2608 = vmatpush.msra.mxu0 %v2440
  %2609 = vmatpush.msra.mxu0 %v2438
  %2610 = vmatpush.msra.mxu0 %v2436
  %2611 = vmatpush.msra.mxu0 %v2434
  %2612 = vmatpush.msra.mxu0 %v2432
  %2613 = vmatpush.msra.mxu0 %v2430
  %2614 = vmatmul.f32.gmra.mxu0 %v2517
  %v2615 = vpop.f32.mrf.mxu0
  %v2616 = vadd.f32 %v2527, %v2615
  %2617 = vmatmul.f32.gmra.mxu0 %v2518
  %v2618 = vpop.f32.mrf.mxu0
  %v2619 = vadd.f32 %v2527, %v2618
  %2620 = vmatmul.f32.gmra.mxu0 %v2519
  %v2621 = vpop.f32.mrf.mxu0
  %v2622 = vadd.f32 %v2527, %v2621
  %2623 = vmatmul.f32.gmra.mxu0 %v2520
  %v2624 = vpop.f32.mrf.mxu0
  %v2625 = vadd.f32 %v2527, %v2624
  %2626 = vdwg.mxu0
  %2627 = vmatpush.msra.mxu0 0.0
  %2628 = vmatpush.msra.mxu0 0.0
  %2629 = vmatpush.msra.mxu0 0.0
  %2630 = vmatpush.msra.mxu0 0.0
  %2631 = vmatpush.msra.mxu0 0.0
  %2632 = vmatpush.msra.mxu0 0.0
  %2633 = vmatpush.msra.mxu0 0.0
  %2634 = vmatpush.msra.mxu0 0.0
  %2635 = vmatpush.msra.mxu0 %v2476
  %2636 = vmatpush.msra.mxu0 %v2474
  %2637 = vmatpush.msra.mxu0 %v2472
  %2638 = vmatpush.msra.mxu0 %v2470
  %2639 = vmatpush.msra.mxu0 %v2468
  %2640 = vmatpush.msra.mxu0 %v2466
  %2641 = vmatpush.msra.mxu0 %v2464
  %2642 = vmatpush.msra.mxu0 %v2462
  %2643 = vmatmul.f32.gmra.mxu0 %v2529
  %v2644 = vpop.f32.mrf.mxu0
  %v2645 = vadd.f32 %v2616, %v2644
  %2646 = vmatmul.f32.gmra.mxu0 %v2532
  %v2647 = vpop.f32.mrf.mxu0
  %v2648 = vadd.f32 %v2619, %v2647
  %2649 = vmatmul.f32.gmra.mxu0 %v2535
  %v2650 = vpop.f32.mrf.mxu0
  %v2651 = vadd.f32 %v2622, %v2650
  %2652 = vmatmul.f32.gmra.mxu0 %v2538
  %v2653 = vpop.f32.mrf.mxu0
  %v2654 = vadd.f32 %v2625, %v2653
  %2655 = vdwg.mxu0
  %v2656 = vadd.f32 %v2587, %v1804
  %v2657 = vadd.f32 %v2645, %v1805
  %v2658 = vadd.f32 %v2590, %v1806
  %v2659 = vadd.f32 %v2648, %v1807
  %v2660 = vadd.f32 %v2593, %v1808
  %v2661 = vadd.f32 %v2651, %v1809
  %v2662 = vadd.f32 %v2596, %v1810
  %v2663 = vadd.f32 %v2654, %v1811
  %v2664 = vmul.f32 %v2416, %v922
  %v2665 = vmul.f32 %v2417, %v926
  %v2666 = vmul.f32 %v2418, %v930
  %v2667 = vmul.f32 %v2419, %v934
  %v2668 = vmul.f32 %v2656, %v922
  %v2669 = vmul.f32 %v2657, %v922
  %v2670 = vmul.f32 %v2658, %v926
  %v2671 = vmul.f32 %v2659, %v926
  %v2672 = vmul.f32 %v2660, %v930
  %v2673 = vmul.f32 %v2661, %v930
  %v2674 = vmul.f32 %v2662, %v934
  %v2675 = vmul.f32 %v2663, %v934
  %s2676 = scalar_lea.vmem %s4, 24
  %v2677 = vld [vmem:[%s2676] sm:$0xff]
  %s2678 = scalar_lea.vmem %s1, 1152
  %v2679 = vld [vmem:[%s2678] sm:$0xff]
  %v2680 = vld [vmem:[%s2678 + $0x8] sm:$0xff]
  %v2681 = vld [vmem:[%s2678 + $0x10] sm:$0xff]
  %v2682 = vld [vmem:[%s2678 + $0x18] sm:$0xff]
  %v2683 = vld [vmem:[%s2678 + $0x20] sm:$0xff]
  %v2684 = vld [vmem:[%s2678 + $0x28] sm:$0xff]
  %v2685 = vld [vmem:[%s2678 + $0x30] sm:$0xff]
  %v2686 = vld [vmem:[%s2678 + $0x38] sm:$0xff]
  %v2687 = vld [vmem:[%s2678 + $0x40] sm:$0xff]
  %v2688 = vld [vmem:[%s2678 + $0x48] sm:$0xff]
  %v2689 = vld [vmem:[%s2678 + $0x50] sm:$0xff]
  %v2690 = vld [vmem:[%s2678 + $0x58] sm:$0xff]
  %v2691 = vld [vmem:[%s2678 + $0x60] sm:$0xff]
  %v2692 = vld [vmem:[%s2678 + $0x68] sm:$0xff]
  %v2693 = vld [vmem:[%s2678 + $0x70] sm:$0xff]
  %v2694 = vld [vmem:[%s2678 + $0x78] sm:$0xff]
  %v2695 = vld [vmem:[%s2678 + $0x80] sm:$0xff]
  %v2696 = vld [vmem:[%s2678 + $0x88] sm:$0xff]
  %v2697 = vld [vmem:[%s2678 + $0x90] sm:$0xff]
  %v2698 = vld [vmem:[%s2678 + $0x98] sm:$0xff]
  %v2699 = vld [vmem:[%s2678 + $0xa0] sm:$0xff]
  %v2700 = vld [vmem:[%s2678 + $0xa8] sm:$0xff]
  %v2701 = vld [vmem:[%s2678 + $0xb0] sm:$0xff]
  %v2702 = vld [vmem:[%s2678 + $0xb8] sm:$0xff]
  %v2703 = vrot.slane %v2664, 7
  %v2704 = vrot.slane %v2665, 7
  %v2705 = vrot.slane %v2666, 7
  %v2706 = vrot.slane %v2667, 7
  %v2707 = vsel %vm66, %v2705, %v2706
  %v2708 = vsel %vm66, %v2704, %v2705
  %v2709 = vsel %vm66, %v2703, %v2704
  %v2710 = vsel %vm66, %v2706, %v2703
  %v2711 = vmul.f32 %v2710, %v74
  %v2712 = vmul.f32 %v2709, %v79
  %v2713 = vmul.f32 %v2708, %v84
  %v2714 = vmul.f32 %v2707, %v89
  %v2715 = vrot.slane %v2664, 1
  %v2716 = vrot.slane %v2665, 1
  %v2717 = vrot.slane %v2666, 1
  %v2718 = vrot.slane %v2667, 1
  %v2719 = vsel %vm99, %v2717, %v2718
  %v2720 = vsel %vm99, %v2716, %v2717
  %v2721 = vsel %vm99, %v2715, %v2716
  %v2722 = vsel %vm99, %v2718, %v2715
  %v2723 = vmul.f32 %v2721, %v106
  %v2724 = vmul.f32 %v2720, %v110
  %v2725 = vmul.f32 %v2719, %v114
  %v2726 = vmul.f32 %v2722, %v118
  %2731 = vrot.lane.b32.xlu0 %v2664, 64
  %v2732 = vpop.permute.xlu0 %2731
  %2733 = vrot.lane.b32.xlu0 %v2665, 64
  %v2734 = vpop.permute.xlu0 %2733
  %2735 = vrot.lane.b32.xlu0 %v2666, 64
  %v2736 = vpop.permute.xlu0 %2735
  %2737 = vrot.lane.b32.xlu0 %v2667, 64
  %v2738 = vpop.permute.xlu0 %2737
  %v2743 = vsel %vm136, %v2711, %v2732
  %v2744 = vsel %vm136, %v2712, %v2734
  %v2745 = vsel %vm136, %v2713, %v2736
  %v2746 = vsel %vm136, %v2714, %v2738
  %v2747 = vperm.slane %v2677, 0
  %v2749 = vsel %vm136, %v2723, 0
  %v2752 = vsel %vm136, %v2724, 0
  %v2755 = vsel %vm136, %v2725, 0
  %v2758 = vsel %vm136, %v2726, 0
  %2760 = vmatpush.msra.mxu0 %v2694
  %2761 = vmatpush.msra.mxu0 %v2693
  %2762 = vmatpush.msra.mxu0 %v2692
  %2763 = vmatpush.msra.mxu0 %v2691
  %2764 = vmatpush.msra.mxu0 %v2690
  %2765 = vmatpush.msra.mxu0 %v2689
  %2766 = vmatpush.msra.mxu0 %v2688
  %2767 = vmatpush.msra.mxu0 %v2687
  %2768 = vmatpush.msra.mxu0 %v2686
  %2769 = vmatpush.msra.mxu0 %v2685
  %2770 = vmatpush.msra.mxu0 %v2684
  %2771 = vmatpush.msra.mxu0 %v2683
  %2772 = vmatpush.msra.mxu0 %v2682
  %2773 = vmatpush.msra.mxu0 %v2681
  %2774 = vmatpush.msra.mxu0 %v2680
  %2775 = vmatpush.msra.mxu0 %v2679
  %2776 = vmatmul.f32.gmra.mxu0 %v2743
  %v2777 = vpop.f32.mrf.mxu0
  %v2778 = vadd.f32 %v2747, %v2777
  %2779 = vmatmul.f32.gmra.mxu0 %v2744
  %v2780 = vpop.f32.mrf.mxu0
  %v2781 = vadd.f32 %v2747, %v2780
  %2782 = vmatmul.f32.gmra.mxu0 %v2745
  %v2783 = vpop.f32.mrf.mxu0
  %v2784 = vadd.f32 %v2747, %v2783
  %2785 = vmatmul.f32.gmra.mxu0 %v2746
  %v2786 = vpop.f32.mrf.mxu0
  %v2787 = vadd.f32 %v2747, %v2786
  %2788 = vdwg.mxu0
  %2789 = vmatpush.msra.mxu0 0.0
  %2790 = vmatpush.msra.mxu0 0.0
  %2791 = vmatpush.msra.mxu0 0.0
  %2792 = vmatpush.msra.mxu0 0.0
  %2793 = vmatpush.msra.mxu0 0.0
  %2794 = vmatpush.msra.mxu0 0.0
  %2795 = vmatpush.msra.mxu0 0.0
  %2796 = vmatpush.msra.mxu0 0.0
  %2797 = vmatpush.msra.mxu0 %v2702
  %2798 = vmatpush.msra.mxu0 %v2701
  %2799 = vmatpush.msra.mxu0 %v2700
  %2800 = vmatpush.msra.mxu0 %v2699
  %2801 = vmatpush.msra.mxu0 %v2698
  %2802 = vmatpush.msra.mxu0 %v2697
  %2803 = vmatpush.msra.mxu0 %v2696
  %2804 = vmatpush.msra.mxu0 %v2695
  %2805 = vmatmul.f32.gmra.mxu0 %v2749
  %v2806 = vpop.f32.mrf.mxu0
  %v2807 = vadd.f32 %v2778, %v2806
  %2808 = vmatmul.f32.gmra.mxu0 %v2752
  %v2809 = vpop.f32.mrf.mxu0
  %v2810 = vadd.f32 %v2781, %v2809
  %2811 = vmatmul.f32.gmra.mxu0 %v2755
  %v2812 = vpop.f32.mrf.mxu0
  %v2813 = vadd.f32 %v2784, %v2812
  %2814 = vmatmul.f32.gmra.mxu0 %v2758
  %v2815 = vpop.f32.mrf.mxu0
  %v2816 = vadd.f32 %v2787, %v2815
  %2817 = vdwg.mxu0
  %s2818 = scalar_lea.vmem %s2, 2304
  %v2819 = vld [vmem:[%s2818] sm:$0xff]
  %v2820 = vld [vmem:[%s2818 + $0x8] sm:$0xff]
  %v2821 = vld [vmem:[%s2818 + $0x10] sm:$0xff]
  %v2822 = vld [vmem:[%s2818 + $0x18] sm:$0xff]
  %v2823 = vld [vmem:[%s2818 + $0x20] sm:$0xff]
  %v2824 = vld [vmem:[%s2818 + $0x28] sm:$0xff]
  %v2825 = vld [vmem:[%s2818 + $0x30] sm:$0xff]
  %v2826 = vld [vmem:[%s2818 + $0x38] sm:$0xff]
  %v2827 = vld [vmem:[%s2818 + $0x40] sm:$0xff]
  %v2828 = vld [vmem:[%s2818 + $0x48] sm:$0xff]
  %v2829 = vld [vmem:[%s2818 + $0x50] sm:$0xff]
  %v2830 = vld [vmem:[%s2818 + $0x58] sm:$0xff]
  %v2831 = vld [vmem:[%s2818 + $0x60] sm:$0xff]
  %v2832 = vld [vmem:[%s2818 + $0x68] sm:$0xff]
  %v2833 = vld [vmem:[%s2818 + $0x70] sm:$0xff]
  %v2834 = vld [vmem:[%s2818 + $0x78] sm:$0xff]
  %v2835 = vld [vmem:[%s2818 + $0x80] sm:$0xff]
  %v2836 = vld [vmem:[%s2818 + $0x88] sm:$0xff]
  %v2837 = vld [vmem:[%s2818 + $0x90] sm:$0xff]
  %v2838 = vld [vmem:[%s2818 + $0x98] sm:$0xff]
  %v2839 = vld [vmem:[%s2818 + $0xa0] sm:$0xff]
  %v2840 = vld [vmem:[%s2818 + $0xa8] sm:$0xff]
  %v2841 = vld [vmem:[%s2818 + $0xb0] sm:$0xff]
  %v2842 = vld [vmem:[%s2818 + $0xb8] sm:$0xff]
  %v2843 = vld [vmem:[%s2818 + $0xc0] sm:$0xff]
  %v2844 = vld [vmem:[%s2818 + $0xc8] sm:$0xff]
  %v2845 = vld [vmem:[%s2818 + $0xd0] sm:$0xff]
  %v2846 = vld [vmem:[%s2818 + $0xd8] sm:$0xff]
  %v2847 = vld [vmem:[%s2818 + $0xe0] sm:$0xff]
  %v2848 = vld [vmem:[%s2818 + $0xe8] sm:$0xff]
  %v2849 = vld [vmem:[%s2818 + $0xf0] sm:$0xff]
  %v2850 = vld [vmem:[%s2818 + $0xf8] sm:$0xff]
  %2851 = vmatpush.msra.mxu0 %v2834
  %2852 = vmatpush.msra.mxu0 %v2833
  %2853 = vmatpush.msra.mxu0 %v2832
  %2854 = vmatpush.msra.mxu0 %v2831
  %2855 = vmatpush.msra.mxu0 %v2830
  %2856 = vmatpush.msra.mxu0 %v2829
  %2857 = vmatpush.msra.mxu0 %v2828
  %2858 = vmatpush.msra.mxu0 %v2827
  %2859 = vmatpush.msra.mxu0 %v2826
  %2860 = vmatpush.msra.mxu0 %v2825
  %2861 = vmatpush.msra.mxu0 %v2824
  %2862 = vmatpush.msra.mxu0 %v2823
  %2863 = vmatpush.msra.mxu0 %v2822
  %2864 = vmatpush.msra.mxu0 %v2821
  %2865 = vmatpush.msra.mxu0 %v2820
  %2866 = vmatpush.msra.mxu0 %v2819
  %2867 = vmatmul.f32.gmra.mxu0 %v2668
  %v2868 = vpop.f32.mrf.mxu0
  %v2869 = vadd.f32 0.0, %v2868
  %2870 = vmatmul.f32.gmra.mxu0 %v2670
  %v2871 = vpop.f32.mrf.mxu0
  %v2872 = vadd.f32 0.0, %v2871
  %2873 = vmatmul.f32.gmra.mxu0 %v2672
  %v2874 = vpop.f32.mrf.mxu0
  %v2875 = vadd.f32 0.0, %v2874
  %2876 = vmatmul.f32.gmra.mxu0 %v2674
  %v2877 = vpop.f32.mrf.mxu0
  %v2878 = vadd.f32 0.0, %v2877
  %2879 = vdwg.mxu0
  %2880 = vmatpush.msra.mxu0 %v2850
  %2881 = vmatpush.msra.mxu0 %v2849
  %2882 = vmatpush.msra.mxu0 %v2848
  %2883 = vmatpush.msra.mxu0 %v2847
  %2884 = vmatpush.msra.mxu0 %v2846
  %2885 = vmatpush.msra.mxu0 %v2845
  %2886 = vmatpush.msra.mxu0 %v2844
  %2887 = vmatpush.msra.mxu0 %v2843
  %2888 = vmatpush.msra.mxu0 %v2842
  %2889 = vmatpush.msra.mxu0 %v2841
  %2890 = vmatpush.msra.mxu0 %v2840
  %2891 = vmatpush.msra.mxu0 %v2839
  %2892 = vmatpush.msra.mxu0 %v2838
  %2893 = vmatpush.msra.mxu0 %v2837
  %2894 = vmatpush.msra.mxu0 %v2836
  %2895 = vmatpush.msra.mxu0 %v2835
  %2896 = vmatmul.f32.gmra.mxu0 %v2669
  %v2897 = vpop.f32.mrf.mxu0
  %v2898 = vadd.f32 %v2869, %v2897
  %2899 = vmatmul.f32.gmra.mxu0 %v2671
  %v2900 = vpop.f32.mrf.mxu0
  %v2901 = vadd.f32 %v2872, %v2900
  %2902 = vmatmul.f32.gmra.mxu0 %v2673
  %v2903 = vpop.f32.mrf.mxu0
  %v2904 = vadd.f32 %v2875, %v2903
  %2905 = vmatmul.f32.gmra.mxu0 %v2675
  %v2906 = vpop.f32.mrf.mxu0
  %v2907 = vadd.f32 %v2878, %v2906
  %2908 = vdwg.mxu0
  %s2909 = scalar_lea.vmem %s2, 2560
  %v2910 = vld [vmem:[%s2909] sm:$0xff]
  %v2911 = vld [vmem:[%s2909 + $0x8] sm:$0xff]
  %v2912 = vld [vmem:[%s2909 + $0x10] sm:$0xff]
  %v2913 = vld [vmem:[%s2909 + $0x18] sm:$0xff]
  %v2914 = vld [vmem:[%s2909 + $0x20] sm:$0xff]
  %v2915 = vld [vmem:[%s2909 + $0x28] sm:$0xff]
  %v2916 = vld [vmem:[%s2909 + $0x30] sm:$0xff]
  %v2917 = vld [vmem:[%s2909 + $0x38] sm:$0xff]
  %v2918 = vld [vmem:[%s2909 + $0x40] sm:$0xff]
  %v2919 = vld [vmem:[%s2909 + $0x48] sm:$0xff]
  %v2920 = vld [vmem:[%s2909 + $0x50] sm:$0xff]
  %v2921 = vld [vmem:[%s2909 + $0x58] sm:$0xff]
  %v2922 = vld [vmem:[%s2909 + $0x60] sm:$0xff]
  %v2923 = vld [vmem:[%s2909 + $0x68] sm:$0xff]
  %v2924 = vld [vmem:[%s2909 + $0x70] sm:$0xff]
  %v2925 = vld [vmem:[%s2909 + $0x78] sm:$0xff]
  %v2926 = vld [vmem:[%s2909 + $0x80] sm:$0xff]
  %v2927 = vld [vmem:[%s2909 + $0x88] sm:$0xff]
  %v2928 = vld [vmem:[%s2909 + $0x90] sm:$0xff]
  %v2929 = vld [vmem:[%s2909 + $0x98] sm:$0xff]
  %v2930 = vld [vmem:[%s2909 + $0xa0] sm:$0xff]
  %v2931 = vld [vmem:[%s2909 + $0xa8] sm:$0xff]
  %v2932 = vld [vmem:[%s2909 + $0xb0] sm:$0xff]
  %v2933 = vld [vmem:[%s2909 + $0xb8] sm:$0xff]
  %v2934 = vld [vmem:[%s2909 + $0xc0] sm:$0xff]
  %v2935 = vld [vmem:[%s2909 + $0xc8] sm:$0xff]
  %v2936 = vld [vmem:[%s2909 + $0xd0] sm:$0xff]
  %v2937 = vld [vmem:[%s2909 + $0xd8] sm:$0xff]
  %v2938 = vld [vmem:[%s2909 + $0xe0] sm:$0xff]
  %v2939 = vld [vmem:[%s2909 + $0xe8] sm:$0xff]
  %v2940 = vld [vmem:[%s2909 + $0xf0] sm:$0xff]
  %v2941 = vld [vmem:[%s2909 + $0xf8] sm:$0xff]
  %2942 = vmatpush.msra.mxu0 %v2925
  %2943 = vmatpush.msra.mxu0 %v2924
  %2944 = vmatpush.msra.mxu0 %v2923
  %2945 = vmatpush.msra.mxu0 %v2922
  %2946 = vmatpush.msra.mxu0 %v2921
  %2947 = vmatpush.msra.mxu0 %v2920
  %2948 = vmatpush.msra.mxu0 %v2919
  %2949 = vmatpush.msra.mxu0 %v2918
  %2950 = vmatpush.msra.mxu0 %v2917
  %2951 = vmatpush.msra.mxu0 %v2916
  %2952 = vmatpush.msra.mxu0 %v2915
  %2953 = vmatpush.msra.mxu0 %v2914
  %2954 = vmatpush.msra.mxu0 %v2913
  %2955 = vmatpush.msra.mxu0 %v2912
  %2956 = vmatpush.msra.mxu0 %v2911
  %2957 = vmatpush.msra.mxu0 %v2910
  %2958 = vmatmul.f32.gmra.mxu0 %v2668
  %v2959 = vpop.f32.mrf.mxu0
  %v2960 = vadd.f32 0.0, %v2959
  %2961 = vmatmul.f32.gmra.mxu0 %v2670
  %v2962 = vpop.f32.mrf.mxu0
  %v2963 = vadd.f32 0.0, %v2962
  %2964 = vmatmul.f32.gmra.mxu0 %v2672
  %v2965 = vpop.f32.mrf.mxu0
  %v2966 = vadd.f32 0.0, %v2965
  %2967 = vmatmul.f32.gmra.mxu0 %v2674
  %v2968 = vpop.f32.mrf.mxu0
  %v2969 = vadd.f32 0.0, %v2968
  %2970 = vdwg.mxu0
  %2971 = vmatpush.msra.mxu0 %v2941
  %2972 = vmatpush.msra.mxu0 %v2940
  %2973 = vmatpush.msra.mxu0 %v2939
  %2974 = vmatpush.msra.mxu0 %v2938
  %2975 = vmatpush.msra.mxu0 %v2937
  %2976 = vmatpush.msra.mxu0 %v2936
  %2977 = vmatpush.msra.mxu0 %v2935
  %2978 = vmatpush.msra.mxu0 %v2934
  %2979 = vmatpush.msra.mxu0 %v2933
  %2980 = vmatpush.msra.mxu0 %v2932
  %2981 = vmatpush.msra.mxu0 %v2931
  %2982 = vmatpush.msra.mxu0 %v2930
  %2983 = vmatpush.msra.mxu0 %v2929
  %2984 = vmatpush.msra.mxu0 %v2928
  %2985 = vmatpush.msra.mxu0 %v2927
  %2986 = vmatpush.msra.mxu0 %v2926
  %2987 = vmatmul.f32.gmra.mxu0 %v2669
  %v2988 = vpop.f32.mrf.mxu0
  %v2989 = vadd.f32 %v2960, %v2988
  %2990 = vmatmul.f32.gmra.mxu0 %v2671
  %v2991 = vpop.f32.mrf.mxu0
  %v2992 = vadd.f32 %v2963, %v2991
  %2993 = vmatmul.f32.gmra.mxu0 %v2673
  %v2994 = vpop.f32.mrf.mxu0
  %v2995 = vadd.f32 %v2966, %v2994
  %2996 = vmatmul.f32.gmra.mxu0 %v2675
  %v2997 = vpop.f32.mrf.mxu0
  %v2998 = vadd.f32 %v2969, %v2997
  %2999 = vdwg.mxu0
  %s3000 = scalar_lea.vmem %s2, 2816
  %v3001 = vld [vmem:[%s3000] sm:$0xff]
  %v3002 = vld [vmem:[%s3000 + $0x8] sm:$0xff]
  %v3003 = vld [vmem:[%s3000 + $0x10] sm:$0xff]
  %v3004 = vld [vmem:[%s3000 + $0x18] sm:$0xff]
  %v3005 = vld [vmem:[%s3000 + $0x20] sm:$0xff]
  %v3006 = vld [vmem:[%s3000 + $0x28] sm:$0xff]
  %v3007 = vld [vmem:[%s3000 + $0x30] sm:$0xff]
  %v3008 = vld [vmem:[%s3000 + $0x38] sm:$0xff]
  %v3009 = vld [vmem:[%s3000 + $0x40] sm:$0xff]
  %v3010 = vld [vmem:[%s3000 + $0x48] sm:$0xff]
  %v3011 = vld [vmem:[%s3000 + $0x50] sm:$0xff]
  %v3012 = vld [vmem:[%s3000 + $0x58] sm:$0xff]
  %v3013 = vld [vmem:[%s3000 + $0x60] sm:$0xff]
  %v3014 = vld [vmem:[%s3000 + $0x68] sm:$0xff]
  %v3015 = vld [vmem:[%s3000 + $0x70] sm:$0xff]
  %v3016 = vld [vmem:[%s3000 + $0x78] sm:$0xff]
  %v3017 = vld [vmem:[%s3000 + $0x80] sm:$0xff]
  %v3018 = vld [vmem:[%s3000 + $0x88] sm:$0xff]
  %v3019 = vld [vmem:[%s3000 + $0x90] sm:$0xff]
  %v3020 = vld [vmem:[%s3000 + $0x98] sm:$0xff]
  %v3021 = vld [vmem:[%s3000 + $0xa0] sm:$0xff]
  %v3022 = vld [vmem:[%s3000 + $0xa8] sm:$0xff]
  %v3023 = vld [vmem:[%s3000 + $0xb0] sm:$0xff]
  %v3024 = vld [vmem:[%s3000 + $0xb8] sm:$0xff]
  %v3025 = vld [vmem:[%s3000 + $0xc0] sm:$0xff]
  %v3026 = vld [vmem:[%s3000 + $0xc8] sm:$0xff]
  %v3027 = vld [vmem:[%s3000 + $0xd0] sm:$0xff]
  %v3028 = vld [vmem:[%s3000 + $0xd8] sm:$0xff]
  %v3029 = vld [vmem:[%s3000 + $0xe0] sm:$0xff]
  %v3030 = vld [vmem:[%s3000 + $0xe8] sm:$0xff]
  %v3031 = vld [vmem:[%s3000 + $0xf0] sm:$0xff]
  %v3032 = vld [vmem:[%s3000 + $0xf8] sm:$0xff]
  %3033 = vmatpush.msra.mxu0 %v3016
  %3034 = vmatpush.msra.mxu0 %v3015
  %3035 = vmatpush.msra.mxu0 %v3014
  %3036 = vmatpush.msra.mxu0 %v3013
  %3037 = vmatpush.msra.mxu0 %v3012
  %3038 = vmatpush.msra.mxu0 %v3011
  %3039 = vmatpush.msra.mxu0 %v3010
  %3040 = vmatpush.msra.mxu0 %v3009
  %3041 = vmatpush.msra.mxu0 %v3008
  %3042 = vmatpush.msra.mxu0 %v3007
  %3043 = vmatpush.msra.mxu0 %v3006
  %3044 = vmatpush.msra.mxu0 %v3005
  %3045 = vmatpush.msra.mxu0 %v3004
  %3046 = vmatpush.msra.mxu0 %v3003
  %3047 = vmatpush.msra.mxu0 %v3002
  %3048 = vmatpush.msra.mxu0 %v3001
  %3049 = vmatmul.f32.gmra.mxu0 %v2668
  %v3050 = vpop.f32.mrf.mxu0
  %v3051 = vadd.f32 0.0, %v3050
  %3052 = vmatmul.f32.gmra.mxu0 %v2670
  %v3053 = vpop.f32.mrf.mxu0
  %v3054 = vadd.f32 0.0, %v3053
  %3055 = vmatmul.f32.gmra.mxu0 %v2672
  %v3056 = vpop.f32.mrf.mxu0
  %v3057 = vadd.f32 0.0, %v3056
  %3058 = vmatmul.f32.gmra.mxu0 %v2674
  %v3059 = vpop.f32.mrf.mxu0
  %v3060 = vadd.f32 0.0, %v3059
  %3061 = vdwg.mxu0
  %3062 = vmatpush.msra.mxu0 %v3032
  %3063 = vmatpush.msra.mxu0 %v3031
  %3064 = vmatpush.msra.mxu0 %v3030
  %3065 = vmatpush.msra.mxu0 %v3029
  %3066 = vmatpush.msra.mxu0 %v3028
  %3067 = vmatpush.msra.mxu0 %v3027
  %3068 = vmatpush.msra.mxu0 %v3026
  %3069 = vmatpush.msra.mxu0 %v3025
  %3070 = vmatpush.msra.mxu0 %v3024
  %3071 = vmatpush.msra.mxu0 %v3023
  %3072 = vmatpush.msra.mxu0 %v3022
  %3073 = vmatpush.msra.mxu0 %v3021
  %3074 = vmatpush.msra.mxu0 %v3020
  %3075 = vmatpush.msra.mxu0 %v3019
  %3076 = vmatpush.msra.mxu0 %v3018
  %3077 = vmatpush.msra.mxu0 %v3017
  %3078 = vmatmul.f32.gmra.mxu0 %v2669
  %v3079 = vpop.f32.mrf.mxu0
  %v3080 = vadd.f32 %v3051, %v3079
  %3081 = vmatmul.f32.gmra.mxu0 %v2671
  %v3082 = vpop.f32.mrf.mxu0
  %v3083 = vadd.f32 %v3054, %v3082
  %3084 = vmatmul.f32.gmra.mxu0 %v2673
  %v3085 = vpop.f32.mrf.mxu0
  %v3086 = vadd.f32 %v3057, %v3085
  %3087 = vmatmul.f32.gmra.mxu0 %v2675
  %v3088 = vpop.f32.mrf.mxu0
  %v3089 = vadd.f32 %v3060, %v3088
  %3090 = vdwg.mxu0
  %v3091 = vrot.slane %v2898, 7
  %v3092 = vrot.slane %v2901, 7
  %v3093 = vrot.slane %v2904, 7
  %v3094 = vrot.slane %v2907, 7
  %v3095 = vsel %vm66, %v3093, %v3094
  %v3096 = vsel %vm66, %v3092, %v3093
  %v3097 = vsel %vm66, %v3091, %v3092
  %v3098 = vsel %vm66, %v3094, %v3091
  %v3099 = vmul.f32 %v3098, %v74
  %v3100 = vmul.f32 %v3097, %v79
  %v3101 = vmul.f32 %v3096, %v84
  %v3102 = vmul.f32 %v3095, %v89
  %v3103 = vadd.f32 %v3099, %v2989
  %v3104 = vadd.f32 %v3100, %v2992
  %v3105 = vadd.f32 %v3101, %v2995
  %v3106 = vadd.f32 %v3102, %v2998
  %v3107 = vrot.slane %v3080, 1
  %v3108 = vrot.slane %v3083, 1
  %v3109 = vrot.slane %v3086, 1
  %v3110 = vrot.slane %v3089, 1
  %v3111 = vsel %vm99, %v3109, %v3110
  %v3112 = vsel %vm99, %v3108, %v3109
  %v3113 = vsel %vm99, %v3107, %v3108
  %v3114 = vsel %vm99, %v3110, %v3107
  %v3115 = vmul.f32 %v3113, %v106
  %v3116 = vmul.f32 %v3112, %v110
  %v3117 = vmul.f32 %v3111, %v114
  %v3118 = vmul.f32 %v3114, %v118
  %v3119 = vadd.f32 %v3103, %v3115
  %v3120 = vadd.f32 %v3104, %v3116
  %v3121 = vadd.f32 %v3105, %v3117
  %v3122 = vadd.f32 %v3106, %v3118
  %v3123 = vperm.slane %v2677, 1
  %v3124 = vadd.f32 %v3119, %v3123
  %v3125 = vadd.f32 %v3120, %v3123
  %v3126 = vadd.f32 %v3121, %v3123
  %v3127 = vadd.f32 %v3122, %v3123
  %v3128 = vadd.f32 %v2807, %v3124
  %v3129 = vadd.f32 %v2810, %v3125
  %v3130 = vadd.f32 %v2813, %v3126
  %v3131 = vadd.f32 %v2816, %v3127
  %v3132 = vmul.f32 %v3128, 0.1
  %v3133 = vmul.f32 %v3129, 0.1
  %v3134 = vmul.f32 %v3130, 0.1
  %v3135 = vmul.f32 %v3131, 0.1
  %v3136 = vmax.f32 %v3128, %v3132
  %v3137 = vmax.f32 %v3129, %v3133
  %v3138 = vmax.f32 %v3130, %v3134
  %v3139 = vmax.f32 %v3131, %v3135
  %s3140 = scalar_lea.vmem %s1, 1344
  %v3141 = vld [vmem:[%s3140] sm:$0xff]
  %v3142 = vld [vmem:[%s3140 + $0x8] sm:$0xff]
  %v3143 = vld [vmem:[%s3140 + $0x10] sm:$0xff]
  %v3144 = vld [vmem:[%s3140 + $0x18] sm:$0xff]
  %v3145 = vld [vmem:[%s3140 + $0x20] sm:$0xff]
  %v3146 = vld [vmem:[%s3140 + $0x28] sm:$0xff]
  %v3147 = vld [vmem:[%s3140 + $0x30] sm:$0xff]
  %v3148 = vld [vmem:[%s3140 + $0x38] sm:$0xff]
  %v3149 = vld [vmem:[%s3140 + $0x40] sm:$0xff]
  %v3150 = vld [vmem:[%s3140 + $0x48] sm:$0xff]
  %v3151 = vld [vmem:[%s3140 + $0x50] sm:$0xff]
  %v3152 = vld [vmem:[%s3140 + $0x58] sm:$0xff]
  %v3153 = vld [vmem:[%s3140 + $0x60] sm:$0xff]
  %v3154 = vld [vmem:[%s3140 + $0x68] sm:$0xff]
  %v3155 = vld [vmem:[%s3140 + $0x70] sm:$0xff]
  %v3156 = vld [vmem:[%s3140 + $0x78] sm:$0xff]
  %v3157 = vld [vmem:[%s3140 + $0x80] sm:$0xff]
  %v3158 = vld [vmem:[%s3140 + $0x88] sm:$0xff]
  %v3159 = vld [vmem:[%s3140 + $0x90] sm:$0xff]
  %v3160 = vld [vmem:[%s3140 + $0x98] sm:$0xff]
  %v3161 = vld [vmem:[%s3140 + $0xa0] sm:$0xff]
  %v3162 = vld [vmem:[%s3140 + $0xa8] sm:$0xff]
  %v3163 = vld [vmem:[%s3140 + $0xb0] sm:$0xff]
  %v3164 = vld [vmem:[%s3140 + $0xb8] sm:$0xff]
  %v3165 = vrot.slane %v3136, 7
  %v3166 = vrot.slane %v3137, 7
  %v3167 = vrot.slane %v3138, 7
  %v3168 = vrot.slane %v3139, 7
  %v3169 = vsel %vm66, %v3167, %v3168
  %v3170 = vsel %vm66, %v3166, %v3167
  %v3171 = vsel %vm66, %v3165, %v3166
  %v3172 = vsel %vm66, %v3168, %v3165
  %v3173 = vmul.f32 %v3172, %v74
  %v3174 = vmul.f32 %v3171, %v79
  %v3175 = vmul.f32 %v3170, %v84
  %v3176 = vmul.f32 %v3169, %v89
  %v3177 = vrot.slane %v3136, 1
  %v3178 = vrot.slane %v3137, 1
  %v3179 = vrot.slane %v3138, 1
  %v3180 = vrot.slane %v3139, 1
  %v3181 = vsel %vm99, %v3179, %v3180
  %v3182 = vsel %vm99, %v3178, %v3179
  %v3183 = vsel %vm99, %v3177, %v3178
  %v3184 = vsel %vm99, %v3180, %v3177
  %v3185 = vmul.f32 %v3183, %v106
  %v3186 = vmul.f32 %v3182, %v110
  %v3187 = vmul.f32 %v3181, %v114
  %v3188 = vmul.f32 %v3184, %v118
  %3193 = vrot.lane.b32.xlu0 %v3136, 64
  %v3194 = vpop.permute.xlu0 %3193
  %3195 = vrot.lane.b32.xlu0 %v3137, 64
  %v3196 = vpop.permute.xlu0 %3195
  %3197 = vrot.lane.b32.xlu0 %v3138, 64
  %v3198 = vpop.permute.xlu0 %3197
  %3199 = vrot.lane.b32.xlu0 %v3139, 64
  %v3200 = vpop.permute.xlu0 %3199
  %v3205 = vsel %vm136, %v3173, %v3194
  %v3206 = vsel %vm136, %v3174, %v3196
  %v3207 = vsel %vm136, %v3175, %v3198
  %v3208 = vsel %vm136, %v3176, %v3200
  %v3209 = vperm.slane %v2677, 2
  %v3211 = vsel %vm136, %v3185, 0
  %v3214 = vsel %vm136, %v3186, 0
  %v3217 = vsel %vm136, %v3187, 0
  %v3220 = vsel %vm136, %v3188, 0
  %3222 = vmatpush.msra.mxu0 %v3156
  %3223 = vmatpush.msra.mxu0 %v3155
  %3224 = vmatpush.msra.mxu0 %v3154
  %3225 = vmatpush.msra.mxu0 %v3153
  %3226 = vmatpush.msra.mxu0 %v3152
  %3227 = vmatpush.msra.mxu0 %v3151
  %3228 = vmatpush.msra.mxu0 %v3150
  %3229 = vmatpush.msra.mxu0 %v3149
  %3230 = vmatpush.msra.mxu0 %v3148
  %3231 = vmatpush.msra.mxu0 %v3147
  %3232 = vmatpush.msra.mxu0 %v3146
  %3233 = vmatpush.msra.mxu0 %v3145
  %3234 = vmatpush.msra.mxu0 %v3144
  %3235 = vmatpush.msra.mxu0 %v3143
  %3236 = vmatpush.msra.mxu0 %v3142
  %3237 = vmatpush.msra.mxu0 %v3141
  %3238 = vmatmul.f32.gmra.mxu0 %v3205
  %v3239 = vpop.f32.mrf.mxu0
  %v3240 = vadd.f32 %v3209, %v3239
  %3241 = vmatmul.f32.gmra.mxu0 %v3206
  %v3242 = vpop.f32.mrf.mxu0
  %v3243 = vadd.f32 %v3209, %v3242
  %3244 = vmatmul.f32.gmra.mxu0 %v3207
  %v3245 = vpop.f32.mrf.mxu0
  %v3246 = vadd.f32 %v3209, %v3245
  %3247 = vmatmul.f32.gmra.mxu0 %v3208
  %v3248 = vpop.f32.mrf.mxu0
  %v3249 = vadd.f32 %v3209, %v3248
  %3250 = vdwg.mxu0
  %3251 = vmatpush.msra.mxu0 0.0
  %3252 = vmatpush.msra.mxu0 0.0
  %3253 = vmatpush.msra.mxu0 0.0
  %3254 = vmatpush.msra.mxu0 0.0
  %3255 = vmatpush.msra.mxu0 0.0
  %3256 = vmatpush.msra.mxu0 0.0
  %3257 = vmatpush.msra.mxu0 0.0
  %3258 = vmatpush.msra.mxu0 0.0
  %3259 = vmatpush.msra.mxu0 %v3164
  %3260 = vmatpush.msra.mxu0 %v3163
  %3261 = vmatpush.msra.mxu0 %v3162
  %3262 = vmatpush.msra.mxu0 %v3161
  %3263 = vmatpush.msra.mxu0 %v3160
  %3264 = vmatpush.msra.mxu0 %v3159
  %3265 = vmatpush.msra.mxu0 %v3158
  %3266 = vmatpush.msra.mxu0 %v3157
  %3267 = vmatmul.f32.gmra.mxu0 %v3211
  %v3268 = vpop.f32.mrf.mxu0
  %v3269 = vadd.f32 %v3240, %v3268
  %3270 = vmatmul.f32.gmra.mxu0 %v3214
  %v3271 = vpop.f32.mrf.mxu0
  %v3272 = vadd.f32 %v3243, %v3271
  %3273 = vmatmul.f32.gmra.mxu0 %v3217
  %v3274 = vpop.f32.mrf.mxu0
  %v3275 = vadd.f32 %v3246, %v3274
  %3276 = vmatmul.f32.gmra.mxu0 %v3220
  %v3277 = vpop.f32.mrf.mxu0
  %v3278 = vadd.f32 %v3249, %v3277
  %3279 = vdwg.mxu0
  %v3280 = vadd.f32 %v3269, %v2807
  %v3281 = vadd.f32 %v3272, %v2810
  %v3282 = vadd.f32 %v3275, %v2813
  %v3283 = vadd.f32 %v3278, %v2816
  %v3284 = vmul.f32 %v3280, %v922
  %v3285 = vmul.f32 %v3281, %v926
  %v3286 = vmul.f32 %v3282, %v930
  %v3287 = vmul.f32 %v3283, %v934
  %v3288 = vld [vmem:[%s5] sm:$0x1]
  %v3289 = vld [vmem:[%s5 + $0x1] sm:$0x1]
  %v3290 = vperm.slane %v3288, 0
  %v3291 = vmul.f32 %v3284, %v3290
  %v3292 = vmul.f32 %v3285, %v3290
  %v3293 = vmul.f32 %v3286, %v3290
  %v3294 = vmul.f32 %v3287, %v3290
  %v3295 = vsel %vm136, %v3291, 0.0
  %3296 = vadd.xlane.f32.xlu0 %v3295
  %v3297 = vpop.xlane.xlu0 %3296
  %v3298 = vsel %vm136, %v3292, 0.0
  %3299 = vadd.xlane.f32.xlu0 %v3298
  %v3300 = vpop.xlane.xlu0 %3299
  %v3301 = vsel %vm136, %v3293, 0.0
  %3302 = vadd.xlane.f32.xlu0 %v3301
  %v3303 = vpop.xlane.xlu0 %3302
  %v3304 = vsel %vm136, %v3294, 0.0
  %3305 = vadd.xlane.f32.xlu0 %v3304
  %v3306 = vpop.xlane.xlu0 %3305
  %v3307 = vperm.slane %v3289, 0
  %v3308 = vadd.f32 %v3297, %v3307
  %v3309 = vadd.f32 %v3300, %v3307
  %v3310 = vadd.f32 %v3303, %v3307
  %v3311 = vadd.f32 %v3306, %v3307
  %3312 = vrot.lane.b32.xlu0 %v1800, 8
  %v3313 = vpop.permute.xlu0 %3312
  %3314 = vrot.lane.b32.xlu0 %v1801, 8
  %v3315 = vpop.permute.xlu0 %3314
  %3316 = vrot.lane.b32.xlu0 %v1802, 8
  %v3317 = vpop.permute.xlu0 %3316
  %3318 = vrot.lane.b32.xlu0 %v1803, 8
  %v3319 = vpop.permute.xlu0 %3318
  %3324 = vrot.lane.b32.xlu0 %v2664, 24
  %v3325 = vpop.permute.xlu0 %3324
  %3326 = vrot.lane.b32.xlu0 %v2665, 24
  %v3327 = vpop.permute.xlu0 %3326
  %3328 = vrot.lane.b32.xlu0 %v2666, 24
  %v3329 = vpop.permute.xlu0 %3328
  %3330 = vrot.lane.b32.xlu0 %v2667, 24
  %v3331 = vpop.permute.xlu0 %3330
  %3340 = vrot.lane.b32.xlu0 %v3284, 56
  %v3341 = vpop.permute.xlu0 %3340
  %3342 = vrot.lane.b32.xlu0 %v3285, 56
  %v3343 = vpop.permute.xlu0 %3342
  %3344 = vrot.lane.b32.xlu0 %v3286, 56
  %v3345 = vpop.permute.xlu0 %3344
  %3346 = vrot.lane.b32.xlu0 %v3287, 56
  %v3347 = vpop.permute.xlu0 %3346
  %3356 = vrot.lane.b32.xlu0 %v3308, 120
  %v3357 = vpop.permute.xlu0 %3356
  %3358 = vrot.lane.b32.xlu0 %v3309, 120
  %v3359 = vpop.permute.xlu0 %3358
  %3360 = vrot.lane.b32.xlu0 %v3310, 120
  %v3361 = vpop.permute.xlu0 %3360
  %3362 = vrot.lane.b32.xlu0 %v3311, 120
  %v3363 = vpop.permute.xlu0 %3362
  %vm3368 = vcmask 64512
  %v3369 = vsel %vm3368, %v936, %v3313
  %v3370 = vsel %vm3368, %v937, %v3315
  %v3371 = vsel %vm3368, %v938, %v3317
  %v3372 = vsel %vm3368, %v939, %v3319
  %vm3373 = vcmask 195584
  %v3374 = vsel %vm3373, %v3369, %v3325
  %v3375 = vsel %vm3373, %v3370, %v3327
  %v3376 = vsel %vm3373, %v3371, %v3329
  %v3377 = vsel %vm3373, %v3372, %v3331
  %vm3378 = vcmask 457728
  %v3379 = vsel %vm3378, %v3374, %v3341
  %v3380 = vsel %vm3378, %v3375, %v3343
  %v3381 = vsel %vm3378, %v3376, %v3345
  %v3382 = vsel %vm3378, %v3377, %v3347
  %vm3383 = vcmask 982016
  %v3384 = vsel %vm3383, %v3379, %v3357
  %v3385 = vsel %vm3383, %v3380, %v3359
  %v3386 = vsel %vm3383, %v3381, %v3361
  %v3387 = vsel %vm3383, %v3382, %v3363
  %vm3388 = vcmask 990208
  %v3389 = vsel %vm3388, %v3384, 0.0
  %v3390 = vsel %vm3388, %v3385, 0.0
  %v3391 = vsel %vm3388, %v3386, 0.0
  %v3392 = vsel %vm3388, %v3387, 0.0
  %3393 = vst [vmem:[%s6] sm:$0xff] %v3389
  %3394 = vst [vmem:[%s6 + $0x8] sm:$0xff] %v3390
  %3395 = vst [vmem:[%s6 + $0x10] sm:$0xff] %v3391
  %3396 = vst [vmem:[%s6 + $0x18] sm:$0xff] %v3392
  // Predicated region
  $region26: #{multi_spectro_discriminator.1} parent=0 // pred_check
    _
  $region27: #{multi_spectro_discriminator.1} parent=0 // pred_check_branch
    %3398 = sbr.rel (0) target = $region29
  $region28: #{multi_spectro_discriminator.1} parent=0 // pred_region
    _
  $region29: #{multi_spectro_discriminator.1} parent=0 // pred_fallthru
    _
  // Predicated region
  $region30: #{multi_spectro_discriminator.1} parent=0 // pred_check
    _
  $region31: #{multi_spectro_discriminator.1} parent=0 // pred_check_branch
    %3400 = sbr.rel (0) target = $region33
  $region32: #{multi_spectro_discriminator.1} parent=0 // pred_region
    _
  $region33: #{multi_spectro_discriminator.1} parent=0 // pred_fallthru
    _

</llo_original>
